<compile_context>
chip_gen: v6e
topology: v6e:2x2x1
jax: 0.10.0
libtpu: 0.0.40
codegen_flags: <defaults>
</compile_context>

<pallas_src>
import functools

import jax
import jax.numpy as jnp
from jax.experimental import pallas as pl
from jax.experimental.pallas import tpu as pltpu


# ----------------------------------------------------------------------------
# Fused Pallas kernel
# ----------------------------------------------------------------------------
def _lstm_cell(gx_t, h, c, whh_bf16, H):
    """One LSTM step. gx_t already holds x_t @ W_ih + b (PyTorch gate order)."""
    gates = gx_t + jnp.dot(h.astype(jnp.bfloat16), whh_bf16,
                           preferred_element_type=jnp.float32)      # (Bp, 4H)
    i_g = jax.nn.sigmoid(gates[:, 0 * H:1 * H])
    f_g = jax.nn.sigmoid(gates[:, 1 * H:2 * H])
    g_g = jnp.tanh(gates[:, 2 * H:3 * H])
    o_g = jax.nn.sigmoid(gates[:, 3 * H:4 * H])
    c_new = f_g * c + i_g * g_g
    h_new = o_g * jnp.tanh(c_new)
    return h_new, c_new


def _fused_forward_kernel(ids_ref, emb_ref, w1x_ref, w1h_ref, b1_ref,
                          w2x_ref, w2h_ref, b2_ref, wfc_ref, bfc_ref,
                          out_ref):
    """Embedding -> LSTM1 -> LSTM2 -> FC, entirely in VMEM.

    ids_ref : (T*Bp, 1) int32   time-major flattened token ids
    emb_ref : (Vp, E)   bf16    embedding table (vocab zero-padded)
    w1x/w1h : (E, 4H1)/(H1, 4H1)   bf16   layer-1 weights (gates i,f,g,o)
    w2x/w2h : (H1, 4H2p)/(H2p, 4H2p) bf16 layer-2 weights, gate-lane padded
    b1/b2   : (1, 4H*) f32
    wfc/bfc : (H2p, Op) bf16 / (1, Op) f32   FC, zero-padded to 128 lanes
    out_ref : (Bp, Op) f32      padded logits
    """
    TB = ids_ref.shape[0]
    V = emb_ref.shape[0]
    H1 = w1h_ref.shape[0]
    H2P = w2h_ref.shape[0]
    Bp = out_ref.shape[0]
    T = TB // Bp

    # ---- Embedding lookup as a one-hot MXU matmul (no HBM round-trip) ----
    ids = ids_ref[...]                                                # (TB, 1)
    onehot = (ids == jax.lax.broadcasted_iota(jnp.int32, (TB, V), 1)
              ).astype(jnp.bfloat16)                                  # (TB, V)
    x = jnp.dot(onehot, emb_ref[...],
                preferred_element_type=jnp.float32)                   # (TB, E)

    # ---- Layer 1: hoisted input projection, then unrolled recurrence ----
    w1h = w1h_ref[...]
    gx1 = jnp.dot(x.astype(jnp.bfloat16), w1x_ref[...],
                  preferred_element_type=jnp.float32) + b1_ref[...]   # (TB, 4H1)

    h1 = jnp.zeros((Bp, H1), jnp.float32)
    c1 = jnp.zeros((Bp, H1), jnp.float32)
    h1_seq = []
    for t in range(T):                       # static T -> fully unrolled
        h1, c1 = _lstm_cell(gx1[t * Bp:(t + 1) * Bp, :], h1, c1, w1h, H1)
        h1_seq.append(h1)
    x2 = jnp.concatenate(h1_seq, axis=0)                              # (TB, H1)

    # ---- Layer 2 (hidden 64 -> 128 lanes per gate, exact zero padding) ----
    w2h = w2h_ref[...]
    gx2 = jnp.dot(x2.astype(jnp.bfloat16), w2x_ref[...],
                  preferred_element_type=jnp.float32) + b2_ref[...]   # (TB, 4H2p)

    h2 = jnp.zeros((Bp, H2P), jnp.float32)
    c2 = jnp.zeros((Bp, H2P), jnp.float32)
    for t in range(T):
        h2, c2 = _lstm_cell(gx2[t * Bp:(t + 1) * Bp, :], h2, c2, w2h, H2P)

    # ---- FC epilogue on hn[-1]; lane-dense (Bp, 128) output slab ----
    logits = jnp.dot(h2.astype(jnp.bfloat16), wfc_ref[...],
                     preferred_element_type=jnp.float32) + bfc_ref[...]
    out_ref[...] = logits.astype(out_ref.dtype)


# ----------------------------------------------------------------------------
# pallas_call wrapper
# ----------------------------------------------------------------------------
def _fused_call(ids_flat, p, Bp):
    TB = ids_flat.shape[0]
    V, E = p["emb"].shape
    H1 = p["w1h"].shape[0]
    H2P = p["w2h"].shape[0]
    OP = p["wfc"].shape[1]

    def full(shape):
        return pl.BlockSpec(shape, lambda i: (0,) * len(shape))

    return pl.pallas_call(
        _fused_forward_kernel,
        out_shape=jax.ShapeDtypeStruct((Bp, OP), jnp.float32),
        grid_spec=pltpu.PrefetchScalarGridSpec(
            num_scalar_prefetch=0,
            grid=(1,),
            in_specs=[
                full((TB, 1)),             # token ids
                full((V, E)),              # embedding table
                full((E, 4 * H1)),         # w1x
                full((H1, 4 * H1)),        # w1h
                full((1, 4 * H1)),         # b1
                full((H1, 4 * H2P)),       # w2x
                full((H2P, 4 * H2P)),      # w2h
                full((1, 4 * H2P)),        # b2
                full((H2P, OP)),           # wfc
                full((1, OP)),             # bfc
            ],
            out_specs=full((Bp, OP)),
        ),
        compiler_params=pltpu.CompilerParams(
            dimension_semantics=("arbitrary",)),
    )(ids_flat, p["emb"], p["w1x"], p["w1h"], p["b1"],
      p["w2x"], p["w2h"], p["b2"], p["wfc"], p["bfc"])


@functools.partial(jax.jit, static_argnames=("output_dim",))
def movie_review_forward(params, token_ids, output_dim=10):
    """token_ids: (T, B) int32 (seq-major, PyTorch batch_first=False).

    Returns logits (B, output_dim) == fc(hn[-1]) of the PyTorch module.
    """
    T, B = token_ids.shape
    Bp = max(8, -(-B // 8) * 8)                       # pad batch to sublanes
    ids = jnp.zeros((T, Bp), jnp.int32).at[:, :B].set(token_ids)
    ids_flat = ids.reshape(T * Bp, 1)                 # time-major flattening
    logits_padded = _fused_call(ids_flat, params, Bp)  # (Bp, 128)
    return logits_padded[:B, :output_dim]


# ----------------------------------------------------------------------------
# Parameters: PyTorch-layout init + conversion to kernel layout
# ----------------------------------------------------------------------------
def init_torch_params(key, input_dim, hidden_dim=128, output_dim=10,
                      embed_dim=128):
    """Parameters in the layout the PyTorch MovieReviewNN would hold."""
    h1, h2 = hidden_dim, hidden_dim // 2
    ks = jax.random.split(key, 12)

    def u(k, shape, fan):
        b = 1.0 / jnp.sqrt(fan)
        return jax.random.uniform(k, shape, jnp.float32, -b, b)

    return {
        "embedding.weight": jax.random.normal(ks[0], (input_dim, embed_dim),
                                              jnp.float32),
        "lstm1.weight_ih": u(ks[1], (4 * h1, embed_dim), h1),
        "lstm1.weight_hh": u(ks[2], (4 * h1, h1), h1),
        "lstm1.bias_ih": u(ks[3], (4 * h1,), h1),
        "lstm1.bias_hh": u(ks[4], (4 * h1,), h1),
        "lstm2.weight_ih": u(ks[5], (4 * h2, h1), h2),
        "lstm2.weight_hh": u(ks[6], (4 * h2, h2), h2),
        "lstm2.bias_ih": u(ks[7], (4 * h2,), h2),
        "lstm2.bias_hh": u(ks[8], (4 * h2,), h2),
        "fc.weight": u(ks[9], (output_dim, h2), h2),
        "fc.bias": u(ks[10], (output_dim,), h2),
    }


def _pad_gate_cols(w, h, hp):
    """(rows, 4*h) -> (rows, 4*hp): each gate's columns zero-padded to hp."""
    rows = w.shape[0]
    w4 = w.reshape(rows, 4, h)
    out = jnp.zeros((rows, 4, hp), w.dtype).at[:, :, :h].set(w4)
    return out.reshape(rows, 4 * hp)


def prepare_params(tp, lane=128, sub=8):
    """PyTorch-layout -> fused-kernel layout: transpose, lane-align each gate
    of the H=64 layer (pad 64->128 with exact zeros), pad vocab / FC output,
    cast weights to bf16 (biases stay f32)."""
    emb = tp["embedding.weight"]
    V, E = emb.shape
    Vp = max(sub, -(-V // sub) * sub)
    emb_p = jnp.zeros((Vp, E), jnp.float32).at[:V].set(emb).astype(jnp.bfloat16)

    h1 = tp["lstm1.weight_hh"].shape[1]
    h2 = tp["lstm2.weight_hh"].shape[1]
    h2p = max(lane, -(-h2 // lane) * lane)

    # Layer 1 (h1 = 128: already lane-aligned).
    w1x = tp["lstm1.weight_ih"].T.astype(jnp.bfloat16)                # (E, 4h1)
    w1h = tp["lstm1.weight_hh"].T.astype(jnp.bfloat16)                # (h1, 4h1)
    b1 = (tp["lstm1.bias_ih"] + tp["lstm1.bias_hh"]).reshape(1, 4 * h1)

    # Layer 2: pad each gate's columns 64 -> 128, pad hidden rows 64 -> 128.
    w2x = _pad_gate_cols(tp["lstm2.weight_ih"].T, h2, h2p).astype(jnp.bfloat16)
    w2h_t = _pad_gate_cols(tp["lstm2.weight_hh"].T, h2, h2p)          # (h2, 4h2p)
    w2h = jnp.zeros((h2p, 4 * h2p), jnp.float32).at[:h2].set(
        w2h_t).astype(jnp.bfloat16)
    b2 = _pad_gate_cols((tp["lstm2.bias_ih"] + tp["lstm2.bias_hh"]
                         ).reshape(1, 4 * h2), h2, h2p)

    # FC: rows h2 -> h2p, cols out -> 128 (lane-dense output slab).
    out_dim = tp["fc.weight"].shape[0]
    op = max(lane, -(-out_dim // lane) * lane)
    wfc = jnp.zeros((h2p, op), jnp.float32).at[:h2, :out_dim].set(
        tp["fc.weight"].T)
    bfc = jnp.zeros((1, op), jnp.float32).at[0, :out_dim].set(tp["fc.bias"])

    return {
        "emb": emb_p,
        "w1x": w1x, "w1h": w1h, "b1": b1.astype(jnp.float32),
        "w2x": w2x, "w2h": w2h, "b2": b2.astype(jnp.float32),
        "wfc": wfc.astype(jnp.bfloat16), "bfc": bfc,
    }


# ----------------------------------------------------------------------------
# Pure-JAX reference (same bf16-matmul / f32-accumulate numerics)
# ----------------------------------------------------------------------------
def _ref_lstm(x_seq, w_ih, w_hh, b_ih, b_hh):
    T, B, _ = x_seq.shape
    H = w_hh.shape[1]
    wiT = w_ih.T.astype(jnp.bfloat16)
    whT = w_hh.T.astype(jnp.bfloat16)
    b = (b_ih + b_hh).astype(jnp.float32)

    def step(carry, x_t):
        h, c = carry
        g = (jnp.dot(x_t.astype(jnp.bfloat16), wiT,
                     preferred_element_type=jnp.float32)
             + jnp.dot(h.astype(jnp.bfloat16), whT,
                       preferred_element_type=jnp.float32) + b)
        i = jax.nn.sigmoid(g[:, 0 * H:1 * H])
        f = jax.nn.sigmoid(g[:, 1 * H:2 * H])
        gg = jnp.tanh(g[:, 2 * H:3 * H])
        o = jax.nn.sigmoid(g[:, 3 * H:4 * H])
        c = f * c + i * gg
        h = o * jnp.tanh(c)
        return (h, c), h

    init = (jnp.zeros((B, H), jnp.float32), jnp.zeros((B, H), jnp.float32))
    (h_last, _), ys = jax.lax.scan(step, init, x_seq)
    return ys, h_last


def _ref_forward(tp, token_ids):
    emb = tp["embedding.weight"].astype(jnp.bfloat16).astype(jnp.float32)
    x = jnp.take(emb, token_ids, axis=0)                         # (T, B, 128)
    y1, _ = _ref_lstm(x, tp["lstm1.weight_ih"], tp["lstm1.weight_hh"],
                      tp["lstm1.bias_ih"], tp["lstm1.bias_hh"])
    _, hn = _ref_lstm(y1, tp["lstm2.weight_ih"], tp["lstm2.weight_hh"],
                      tp["lstm2.bias_ih"], tp["lstm2.bias_hh"])
    return (jnp.dot(hn.astype(jnp.bfloat16),
                    tp["fc.weight"].T.astype(jnp.bfloat16),
                    preferred_element_type=jnp.float32) + tp["fc.bias"])


# ----------------------------------------------------------------------------
if __name__ == "__main__":
    key = jax.random.PRNGKey(0)
    k_param, k_tok = jax.random.split(key)

    VOCAB = 50          # input_dim
    HIDDEN = 128        # hidden_dim
    OUT = 10            # output_dim
    T, B = 8, 4         # small seq length and batch

    torch_params = init_torch_params(k_param, VOCAB, HIDDEN, OUT)
    params = prepare_params(torch_params)
    token_ids = jax.random.randint(k_tok, (T, B), 0, VOCAB, dtype=jnp.int32)

    logits = movie_review_forward(params, token_ids, output_dim=OUT)
    logits = jax.block_until_ready(logits)
    assert logits.shape == (B, OUT), logits.shape

    ref = jax.block_until_ready(_ref_forward(torch_params, token_ids))
    max_err = float(jnp.max(jnp.abs(logits - ref)))
    assert max_err < 2e-2, max_err

    print("KERNEL_OK")
</pallas_src>

<mosaic_0001>
module attributes {stable_mosaic.version = 11 : i64} {
  func.func @_fused_forward_kernel(%arg0: i32, %arg1: memref<64x1xi32, #tpu.memory_space<vmem>>, %arg2: memref<56x128xbf16, #tpu.memory_space<vmem>>, %arg3: memref<128x512xbf16, #tpu.memory_space<vmem>>, %arg4: memref<128x512xbf16, #tpu.memory_space<vmem>>, %arg5: memref<1x512xf32, #tpu.memory_space<vmem>>, %arg6: memref<128x512xbf16, #tpu.memory_space<vmem>>, %arg7: memref<128x512xbf16, #tpu.memory_space<vmem>>, %arg8: memref<1x512xf32, #tpu.memory_space<vmem>>, %arg9: memref<128x128xbf16, #tpu.memory_space<vmem>>, %arg10: memref<1x128xf32, #tpu.memory_space<vmem>>, %arg11: memref<8x128xf32, #tpu.memory_space<vmem>>) attributes {dimension_semantics = [#tpu.dimension_semantics<arbitrary>], iteration_bounds = array<i64: 1>, scalar_prefetch = 0 : i64, scratch_operands = 0 : i64, tpu.core_type = #tpu.core_type<tc>, window_params = [{pipeline_mode = #tpu.pipeline_mode<synchronous>, transform_indices = @transform_0, window_bounds = array<i64: 64, 1>}, {pipeline_mode = #tpu.pipeline_mode<synchronous>, transform_indices = @transform_1, window_bounds = array<i64: 56, 128>}, {pipeline_mode = #tpu.pipeline_mode<synchronous>, transform_indices = @transform_2, window_bounds = array<i64: 128, 512>}, {pipeline_mode = #tpu.pipeline_mode<synchronous>, transform_indices = @transform_3, window_bounds = array<i64: 128, 512>}, {pipeline_mode = #tpu.pipeline_mode<synchronous>, transform_indices = @transform_4, window_bounds = array<i64: 1, 512>}, {pipeline_mode = #tpu.pipeline_mode<synchronous>, transform_indices = @transform_5, window_bounds = array<i64: 128, 512>}, {pipeline_mode = #tpu.pipeline_mode<synchronous>, transform_indices = @transform_6, window_bounds = array<i64: 128, 512>}, {pipeline_mode = #tpu.pipeline_mode<synchronous>, transform_indices = @transform_7, window_bounds = array<i64: 1, 512>}, {pipeline_mode = #tpu.pipeline_mode<synchronous>, transform_indices = @transform_8, window_bounds = array<i64: 128, 128>}, {pipeline_mode = #tpu.pipeline_mode<synchronous>, transform_indices = @transform_9, window_bounds = array<i64: 1, 128>}, {pipeline_mode = #tpu.pipeline_mode<synchronous>, transform_indices = @transform_10, window_bounds = array<i64: 8, 128>}]} {
    %c0 = arith.constant 0 : index
    %c0_0 = arith.constant 0 : index
    %0 = vector.load %arg1[%c0, %c0_0] : memref<64x1xi32, #tpu.memory_space<vmem>>, vector<64x1xi32>
    %1 = tpu.iota {dimensions = array<i32: 1>} : vector<64x56xi32>
    %2 = vector.broadcast %0 : vector<64x1xi32> to vector<64x56xi32>
    %3 = arith.cmpi eq, %2, %1 : vector<64x56xi32>
    %4 = arith.extui %3 : vector<64x56xi1> to vector<64x56xi32>
    %5 = arith.sitofp %4 : vector<64x56xi32> to vector<64x56xf32>
    %6 = arith.truncf %5 : vector<64x56xf32> to vector<64x56xbf16>
    %c0_1 = arith.constant 0 : index
    %c0_2 = arith.constant 0 : index
    %7 = vector.load %arg2[%c0_1, %c0_2] : memref<56x128xbf16, #tpu.memory_space<vmem>>, vector<56x128xbf16>
    %cst = arith.constant dense<0.000000e+00> : vector<64x128xf32>
    %8 = tpu.matmul %6, %7, %cst {dimension_numbers = #tpu.dot_dimension_numbers<[1], [0], [0], [1], [0, 0, 1, 1], [], []>} : vector<64x56xbf16>, vector<56x128xbf16>, vector<64x128xf32> -> vector<64x128xf32>
    %c0_3 = arith.constant 0 : index
    %c0_4 = arith.constant 0 : index
    %9 = vector.load %arg4[%c0_3, %c0_4] : memref<128x512xbf16, #tpu.memory_space<vmem>>, vector<128x512xbf16>
    %10 = arith.truncf %8 : vector<64x128xf32> to vector<64x128xbf16>
    %c0_5 = arith.constant 0 : index
    %c0_6 = arith.constant 0 : index
    %11 = vector.load %arg3[%c0_5, %c0_6] : memref<128x512xbf16, #tpu.memory_space<vmem>>, vector<128x512xbf16>
    %cst_7 = arith.constant dense<0.000000e+00> : vector<64x512xf32>
    %12 = tpu.matmul %10, %11, %cst_7 {dimension_numbers = #tpu.dot_dimension_numbers<[1], [0], [0], [1], [0, 0, 1, 1], [], []>} : vector<64x128xbf16>, vector<128x512xbf16>, vector<64x512xf32> -> vector<64x512xf32>
    %c0_8 = arith.constant 0 : index
    %c0_9 = arith.constant 0 : index
    %13 = vector.load %arg5[%c0_8, %c0_9] : memref<1x512xf32, #tpu.memory_space<vmem>>, vector<1x512xf32>
    %14 = vector.broadcast %13 : vector<1x512xf32> to vector<64x512xf32>
    %15 = arith.addf %12, %14 : vector<64x512xf32>
    %cst_10 = arith.constant 0.000000e+00 : f32
    %16 = vector.broadcast %cst_10 : f32 to vector<8x128xf32>
    %cst_11 = arith.constant 0.000000e+00 : f32
    %17 = vector.broadcast %cst_11 : f32 to vector<8x128xf32>
    %18 = vector.extract_strided_slice %15 {offsets = [0, 0], sizes = [8, 512], strides = [1, 1]} : vector<64x512xf32> to vector<8x512xf32>
    %19 = arith.truncf %16 : vector<8x128xf32> to vector<8x128xbf16>
    %cst_12 = arith.constant dense<0.000000e+00> : vector<8x512xf32>
    %20 = tpu.matmul %19, %9, %cst_12 {dimension_numbers = #tpu.dot_dimension_numbers<[1], [0], [0], [1], [0, 0, 1, 1], [], []>} : vector<8x128xbf16>, vector<128x512xbf16>, vector<8x512xf32> -> vector<8x512xf32>
    %21 = arith.addf %18, %20 : vector<8x512xf32>
    %22 = vector.extract_strided_slice %21 {offsets = [0, 0], sizes = [8, 128], strides = [1, 1]} : vector<8x512xf32> to vector<8x128xf32>
    %23 = arith.negf %22 : vector<8x128xf32>
    %24 = math.exp %23 : vector<8x128xf32>
    %cst_13 = arith.constant 1.000000e+00 : f32
    %25 = vector.broadcast %cst_13 : f32 to vector<8x128xf32>
    %26 = arith.addf %25, %24 : vector<8x128xf32>
    %27 = arith.divf %25, %26 : vector<8x128xf32>
    %28 = vector.extract_strided_slice %21 {offsets = [0, 128], sizes = [8, 128], strides = [1, 1]} : vector<8x512xf32> to vector<8x128xf32>
    %29 = arith.negf %28 : vector<8x128xf32>
    %30 = math.exp %29 : vector<8x128xf32>
    %cst_14 = arith.constant 1.000000e+00 : f32
    %31 = vector.broadcast %cst_14 : f32 to vector<8x128xf32>
    %32 = arith.addf %31, %30 : vector<8x128xf32>
    %33 = arith.divf %31, %32 : vector<8x128xf32>
    %34 = vector.extract_strided_slice %21 {offsets = [0, 256], sizes = [8, 128], strides = [1, 1]} : vector<8x512xf32> to vector<8x128xf32>
    %35 = math.tanh %34 : vector<8x128xf32>
    %36 = vector.extract_strided_slice %21 {offsets = [0, 384], sizes = [8, 128], strides = [1, 1]} : vector<8x512xf32> to vector<8x128xf32>
    %37 = arith.negf %36 : vector<8x128xf32>
    %38 = math.exp %37 : vector<8x128xf32>
    %cst_15 = arith.constant 1.000000e+00 : f32
    %39 = vector.broadcast %cst_15 : f32 to vector<8x128xf32>
    %40 = arith.addf %39, %38 : vector<8x128xf32>
    %41 = arith.divf %39, %40 : vector<8x128xf32>
    %42 = arith.mulf %33, %17 : vector<8x128xf32>
    %43 = arith.mulf %27, %35 : vector<8x128xf32>
    %44 = arith.addf %42, %43 : vector<8x128xf32>
    %45 = math.tanh %44 : vector<8x128xf32>
    %46 = arith.mulf %41, %45 : vector<8x128xf32>
    %47 = vector.extract_strided_slice %15 {offsets = [8, 0], sizes = [8, 512], strides = [1, 1]} : vector<64x512xf32> to vector<8x512xf32>
    %48 = arith.truncf %46 : vector<8x128xf32> to vector<8x128xbf16>
    %cst_16 = arith.constant dense<0.000000e+00> : vector<8x512xf32>
    %49 = tpu.matmul %48, %9, %cst_16 {dimension_numbers = #tpu.dot_dimension_numbers<[1], [0], [0], [1], [0, 0, 1, 1], [], []>} : vector<8x128xbf16>, vector<128x512xbf16>, vector<8x512xf32> -> vector<8x512xf32>
    %50 = arith.addf %47, %49 : vector<8x512xf32>
    %51 = vector.extract_strided_slice %50 {offsets = [0, 0], sizes = [8, 128], strides = [1, 1]} : vector<8x512xf32> to vector<8x128xf32>
    %52 = arith.negf %51 : vector<8x128xf32>
    %53 = math.exp %52 : vector<8x128xf32>
    %cst_17 = arith.constant 1.000000e+00 : f32
    %54 = vector.broadcast %cst_17 : f32 to vector<8x128xf32>
    %55 = arith.addf %54, %53 : vector<8x128xf32>
    %56 = arith.divf %54, %55 : vector<8x128xf32>
    %57 = vector.extract_strided_slice %50 {offsets = [0, 128], sizes = [8, 128], strides = [1, 1]} : vector<8x512xf32> to vector<8x128xf32>
    %58 = arith.negf %57 : vector<8x128xf32>
    %59 = math.exp %58 : vector<8x128xf32>
    %cst_18 = arith.constant 1.000000e+00 : f32
    %60 = vector.broadcast %cst_18 : f32 to vector<8x128xf32>
    %61 = arith.addf %60, %59 : vector<8x128xf32>
    %62 = arith.divf %60, %61 : vector<8x128xf32>
    %63 = vector.extract_strided_slice %50 {offsets = [0, 256], sizes = [8, 128], strides = [1, 1]} : vector<8x512xf32> to vector<8x128xf32>
    %64 = math.tanh %63 : vector<8x128xf32>
    %65 = vector.extract_strided_slice %50 {offsets = [0, 384], sizes = [8, 128], strides = [1, 1]} : vector<8x512xf32> to vector<8x128xf32>
    %66 = arith.negf %65 : vector<8x128xf32>
    %67 = math.exp %66 : vector<8x128xf32>
    %cst_19 = arith.constant 1.000000e+00 : f32
    %68 = vector.broadcast %cst_19 : f32 to vector<8x128xf32>
    %69 = arith.addf %68, %67 : vector<8x128xf32>
    %70 = arith.divf %68, %69 : vector<8x128xf32>
    %71 = arith.mulf %62, %44 : vector<8x128xf32>
    %72 = arith.mulf %56, %64 : vector<8x128xf32>
    %73 = arith.addf %71, %72 : vector<8x128xf32>
    %74 = math.tanh %73 : vector<8x128xf32>
    %75 = arith.mulf %70, %74 : vector<8x128xf32>
    %76 = vector.extract_strided_slice %15 {offsets = [16, 0], sizes = [8, 512], strides = [1, 1]} : vector<64x512xf32> to vector<8x512xf32>
    %77 = arith.truncf %75 : vector<8x128xf32> to vector<8x128xbf16>
    %cst_20 = arith.constant dense<0.000000e+00> : vector<8x512xf32>
    %78 = tpu.matmul %77, %9, %cst_20 {dimension_numbers = #tpu.dot_dimension_numbers<[1], [0], [0], [1], [0, 0, 1, 1], [], []>} : vector<8x128xbf16>, vector<128x512xbf16>, vector<8x512xf32> -> vector<8x512xf32>
    %79 = arith.addf %76, %78 : vector<8x512xf32>
    %80 = vector.extract_strided_slice %79 {offsets = [0, 0], sizes = [8, 128], strides = [1, 1]} : vector<8x512xf32> to vector<8x128xf32>
    %81 = arith.negf %80 : vector<8x128xf32>
    %82 = math.exp %81 : vector<8x128xf32>
    %cst_21 = arith.constant 1.000000e+00 : f32
    %83 = vector.broadcast %cst_21 : f32 to vector<8x128xf32>
    %84 = arith.addf %83, %82 : vector<8x128xf32>
    %85 = arith.divf %83, %84 : vector<8x128xf32>
    %86 = vector.extract_strided_slice %79 {offsets = [0, 128], sizes = [8, 128], strides = [1, 1]} : vector<8x512xf32> to vector<8x128xf32>
    %87 = arith.negf %86 : vector<8x128xf32>
    %88 = math.exp %87 : vector<8x128xf32>
    %cst_22 = arith.constant 1.000000e+00 : f32
    %89 = vector.broadcast %cst_22 : f32 to vector<8x128xf32>
    %90 = arith.addf %89, %88 : vector<8x128xf32>
    %91 = arith.divf %89, %90 : vector<8x128xf32>
    %92 = vector.extract_strided_slice %79 {offsets = [0, 256], sizes = [8, 128], strides = [1, 1]} : vector<8x512xf32> to vector<8x128xf32>
    %93 = math.tanh %92 : vector<8x128xf32>
    %94 = vector.extract_strided_slice %79 {offsets = [0, 384], sizes = [8, 128], strides = [1, 1]} : vector<8x512xf32> to vector<8x128xf32>
    %95 = arith.negf %94 : vector<8x128xf32>
    %96 = math.exp %95 : vector<8x128xf32>
    %cst_23 = arith.constant 1.000000e+00 : f32
    %97 = vector.broadcast %cst_23 : f32 to vector<8x128xf32>
    %98 = arith.addf %97, %96 : vector<8x128xf32>
    %99 = arith.divf %97, %98 : vector<8x128xf32>
    %100 = arith.mulf %91, %73 : vector<8x128xf32>
    %101 = arith.mulf %85, %93 : vector<8x128xf32>
    %102 = arith.addf %100, %101 : vector<8x128xf32>
    %103 = math.tanh %102 : vector<8x128xf32>
    %104 = arith.mulf %99, %103 : vector<8x128xf32>
    %105 = vector.extract_strided_slice %15 {offsets = [24, 0], sizes = [8, 512], strides = [1, 1]} : vector<64x512xf32> to vector<8x512xf32>
    %106 = arith.truncf %104 : vector<8x128xf32> to vector<8x128xbf16>
    %cst_24 = arith.constant dense<0.000000e+00> : vector<8x512xf32>
    %107 = tpu.matmul %106, %9, %cst_24 {dimension_numbers = #tpu.dot_dimension_numbers<[1], [0], [0], [1], [0, 0, 1, 1], [], []>} : vector<8x128xbf16>, vector<128x512xbf16>, vector<8x512xf32> -> vector<8x512xf32>
    %108 = arith.addf %105, %107 : vector<8x512xf32>
    %109 = vector.extract_strided_slice %108 {offsets = [0, 0], sizes = [8, 128], strides = [1, 1]} : vector<8x512xf32> to vector<8x128xf32>
    %110 = arith.negf %109 : vector<8x128xf32>
    %111 = math.exp %110 : vector<8x128xf32>
    %cst_25 = arith.constant 1.000000e+00 : f32
    %112 = vector.broadcast %cst_25 : f32 to vector<8x128xf32>
    %113 = arith.addf %112, %111 : vector<8x128xf32>
    %114 = arith.divf %112, %113 : vector<8x128xf32>
    %115 = vector.extract_strided_slice %108 {offsets = [0, 128], sizes = [8, 128], strides = [1, 1]} : vector<8x512xf32> to vector<8x128xf32>
    %116 = arith.negf %115 : vector<8x128xf32>
    %117 = math.exp %116 : vector<8x128xf32>
    %cst_26 = arith.constant 1.000000e+00 : f32
    %118 = vector.broadcast %cst_26 : f32 to vector<8x128xf32>
    %119 = arith.addf %118, %117 : vector<8x128xf32>
    %120 = arith.divf %118, %119 : vector<8x128xf32>
    %121 = vector.extract_strided_slice %108 {offsets = [0, 256], sizes = [8, 128], strides = [1, 1]} : vector<8x512xf32> to vector<8x128xf32>
    %122 = math.tanh %121 : vector<8x128xf32>
    %123 = vector.extract_strided_slice %108 {offsets = [0, 384], sizes = [8, 128], strides = [1, 1]} : vector<8x512xf32> to vector<8x128xf32>
    %124 = arith.negf %123 : vector<8x128xf32>
    %125 = math.exp %124 : vector<8x128xf32>
    %cst_27 = arith.constant 1.000000e+00 : f32
    %126 = vector.broadcast %cst_27 : f32 to vector<8x128xf32>
    %127 = arith.addf %126, %125 : vector<8x128xf32>
    %128 = arith.divf %126, %127 : vector<8x128xf32>
    %129 = arith.mulf %120, %102 : vector<8x128xf32>
    %130 = arith.mulf %114, %122 : vector<8x128xf32>
    %131 = arith.addf %129, %130 : vector<8x128xf32>
    %132 = math.tanh %131 : vector<8x128xf32>
    %133 = arith.mulf %128, %132 : vector<8x128xf32>
    %134 = vector.extract_strided_slice %15 {offsets = [32, 0], sizes = [8, 512], strides = [1, 1]} : vector<64x512xf32> to vector<8x512xf32>
    %135 = arith.truncf %133 : vector<8x128xf32> to vector<8x128xbf16>
    %cst_28 = arith.constant dense<0.000000e+00> : vector<8x512xf32>
    %136 = tpu.matmul %135, %9, %cst_28 {dimension_numbers = #tpu.dot_dimension_numbers<[1], [0], [0], [1], [0, 0, 1, 1], [], []>} : vector<8x128xbf16>, vector<128x512xbf16>, vector<8x512xf32> -> vector<8x512xf32>
    %137 = arith.addf %134, %136 : vector<8x512xf32>
    %138 = vector.extract_strided_slice %137 {offsets = [0, 0], sizes = [8, 128], strides = [1, 1]} : vector<8x512xf32> to vector<8x128xf32>
    %139 = arith.negf %138 : vector<8x128xf32>
    %140 = math.exp %139 : vector<8x128xf32>
    %cst_29 = arith.constant 1.000000e+00 : f32
    %141 = vector.broadcast %cst_29 : f32 to vector<8x128xf32>
    %142 = arith.addf %141, %140 : vector<8x128xf32>
    %143 = arith.divf %141, %142 : vector<8x128xf32>
    %144 = vector.extract_strided_slice %137 {offsets = [0, 128], sizes = [8, 128], strides = [1, 1]} : vector<8x512xf32> to vector<8x128xf32>
    %145 = arith.negf %144 : vector<8x128xf32>
    %146 = math.exp %145 : vector<8x128xf32>
    %cst_30 = arith.constant 1.000000e+00 : f32
    %147 = vector.broadcast %cst_30 : f32 to vector<8x128xf32>
    %148 = arith.addf %147, %146 : vector<8x128xf32>
    %149 = arith.divf %147, %148 : vector<8x128xf32>
    %150 = vector.extract_strided_slice %137 {offsets = [0, 256], sizes = [8, 128], strides = [1, 1]} : vector<8x512xf32> to vector<8x128xf32>
    %151 = math.tanh %150 : vector<8x128xf32>
    %152 = vector.extract_strided_slice %137 {offsets = [0, 384], sizes = [8, 128], strides = [1, 1]} : vector<8x512xf32> to vector<8x128xf32>
    %153 = arith.negf %152 : vector<8x128xf32>
    %154 = math.exp %153 : vector<8x128xf32>
    %cst_31 = arith.constant 1.000000e+00 : f32
    %155 = vector.broadcast %cst_31 : f32 to vector<8x128xf32>
    %156 = arith.addf %155, %154 : vector<8x128xf32>
    %157 = arith.divf %155, %156 : vector<8x128xf32>
    %158 = arith.mulf %149, %131 : vector<8x128xf32>
    %159 = arith.mulf %143, %151 : vector<8x128xf32>
    %160 = arith.addf %158, %159 : vector<8x128xf32>
    %161 = math.tanh %160 : vector<8x128xf32>
    %162 = arith.mulf %157, %161 : vector<8x128xf32>
    %163 = vector.extract_strided_slice %15 {offsets = [40, 0], sizes = [8, 512], strides = [1, 1]} : vector<64x512xf32> to vector<8x512xf32>
    %164 = arith.truncf %162 : vector<8x128xf32> to vector<8x128xbf16>
    %cst_32 = arith.constant dense<0.000000e+00> : vector<8x512xf32>
    %165 = tpu.matmul %164, %9, %cst_32 {dimension_numbers = #tpu.dot_dimension_numbers<[1], [0], [0], [1], [0, 0, 1, 1], [], []>} : vector<8x128xbf16>, vector<128x512xbf16>, vector<8x512xf32> -> vector<8x512xf32>
    %166 = arith.addf %163, %165 : vector<8x512xf32>
    %167 = vector.extract_strided_slice %166 {offsets = [0, 0], sizes = [8, 128], strides = [1, 1]} : vector<8x512xf32> to vector<8x128xf32>
    %168 = arith.negf %167 : vector<8x128xf32>
    %169 = math.exp %168 : vector<8x128xf32>
    %cst_33 = arith.constant 1.000000e+00 : f32
    %170 = vector.broadcast %cst_33 : f32 to vector<8x128xf32>
    %171 = arith.addf %170, %169 : vector<8x128xf32>
    %172 = arith.divf %170, %171 : vector<8x128xf32>
    %173 = vector.extract_strided_slice %166 {offsets = [0, 128], sizes = [8, 128], strides = [1, 1]} : vector<8x512xf32> to vector<8x128xf32>
    %174 = arith.negf %173 : vector<8x128xf32>
    %175 = math.exp %174 : vector<8x128xf32>
    %cst_34 = arith.constant 1.000000e+00 : f32
    %176 = vector.broadcast %cst_34 : f32 to vector<8x128xf32>
    %177 = arith.addf %176, %175 : vector<8x128xf32>
    %178 = arith.divf %176, %177 : vector<8x128xf32>
    %179 = vector.extract_strided_slice %166 {offsets = [0, 256], sizes = [8, 128], strides = [1, 1]} : vector<8x512xf32> to vector<8x128xf32>
    %180 = math.tanh %179 : vector<8x128xf32>
    %181 = vector.extract_strided_slice %166 {offsets = [0, 384], sizes = [8, 128], strides = [1, 1]} : vector<8x512xf32> to vector<8x128xf32>
    %182 = arith.negf %181 : vector<8x128xf32>
    %183 = math.exp %182 : vector<8x128xf32>
    %cst_35 = arith.constant 1.000000e+00 : f32
    %184 = vector.broadcast %cst_35 : f32 to vector<8x128xf32>
    %185 = arith.addf %184, %183 : vector<8x128xf32>
    %186 = arith.divf %184, %185 : vector<8x128xf32>
    %187 = arith.mulf %178, %160 : vector<8x128xf32>
    %188 = arith.mulf %172, %180 : vector<8x128xf32>
    %189 = arith.addf %187, %188 : vector<8x128xf32>
    %190 = math.tanh %189 : vector<8x128xf32>
    %191 = arith.mulf %186, %190 : vector<8x128xf32>
    %192 = vector.extract_strided_slice %15 {offsets = [48, 0], sizes = [8, 512], strides = [1, 1]} : vector<64x512xf32> to vector<8x512xf32>
    %193 = arith.truncf %191 : vector<8x128xf32> to vector<8x128xbf16>
    %cst_36 = arith.constant dense<0.000000e+00> : vector<8x512xf32>
    %194 = tpu.matmul %193, %9, %cst_36 {dimension_numbers = #tpu.dot_dimension_numbers<[1], [0], [0], [1], [0, 0, 1, 1], [], []>} : vector<8x128xbf16>, vector<128x512xbf16>, vector<8x512xf32> -> vector<8x512xf32>
    %195 = arith.addf %192, %194 : vector<8x512xf32>
    %196 = vector.extract_strided_slice %195 {offsets = [0, 0], sizes = [8, 128], strides = [1, 1]} : vector<8x512xf32> to vector<8x128xf32>
    %197 = arith.negf %196 : vector<8x128xf32>
    %198 = math.exp %197 : vector<8x128xf32>
    %cst_37 = arith.constant 1.000000e+00 : f32
    %199 = vector.broadcast %cst_37 : f32 to vector<8x128xf32>
    %200 = arith.addf %199, %198 : vector<8x128xf32>
    %201 = arith.divf %199, %200 : vector<8x128xf32>
    %202 = vector.extract_strided_slice %195 {offsets = [0, 128], sizes = [8, 128], strides = [1, 1]} : vector<8x512xf32> to vector<8x128xf32>
    %203 = arith.negf %202 : vector<8x128xf32>
    %204 = math.exp %203 : vector<8x128xf32>
    %cst_38 = arith.constant 1.000000e+00 : f32
    %205 = vector.broadcast %cst_38 : f32 to vector<8x128xf32>
    %206 = arith.addf %205, %204 : vector<8x128xf32>
    %207 = arith.divf %205, %206 : vector<8x128xf32>
    %208 = vector.extract_strided_slice %195 {offsets = [0, 256], sizes = [8, 128], strides = [1, 1]} : vector<8x512xf32> to vector<8x128xf32>
    %209 = math.tanh %208 : vector<8x128xf32>
    %210 = vector.extract_strided_slice %195 {offsets = [0, 384], sizes = [8, 128], strides = [1, 1]} : vector<8x512xf32> to vector<8x128xf32>
    %211 = arith.negf %210 : vector<8x128xf32>
    %212 = math.exp %211 : vector<8x128xf32>
    %cst_39 = arith.constant 1.000000e+00 : f32
    %213 = vector.broadcast %cst_39 : f32 to vector<8x128xf32>
    %214 = arith.addf %213, %212 : vector<8x128xf32>
    %215 = arith.divf %213, %214 : vector<8x128xf32>
    %216 = arith.mulf %207, %189 : vector<8x128xf32>
    %217 = arith.mulf %201, %209 : vector<8x128xf32>
    %218 = arith.addf %216, %217 : vector<8x128xf32>
    %219 = math.tanh %218 : vector<8x128xf32>
    %220 = arith.mulf %215, %219 : vector<8x128xf32>
    %221 = vector.extract_strided_slice %15 {offsets = [56, 0], sizes = [8, 512], strides = [1, 1]} : vector<64x512xf32> to vector<8x512xf32>
    %222 = arith.truncf %220 : vector<8x128xf32> to vector<8x128xbf16>
    %cst_40 = arith.constant dense<0.000000e+00> : vector<8x512xf32>
    %223 = tpu.matmul %222, %9, %cst_40 {dimension_numbers = #tpu.dot_dimension_numbers<[1], [0], [0], [1], [0, 0, 1, 1], [], []>} : vector<8x128xbf16>, vector<128x512xbf16>, vector<8x512xf32> -> vector<8x512xf32>
    %224 = arith.addf %221, %223 : vector<8x512xf32>
    %225 = vector.extract_strided_slice %224 {offsets = [0, 0], sizes = [8, 128], strides = [1, 1]} : vector<8x512xf32> to vector<8x128xf32>
    %226 = arith.negf %225 : vector<8x128xf32>
    %227 = math.exp %226 : vector<8x128xf32>
    %cst_41 = arith.constant 1.000000e+00 : f32
    %228 = vector.broadcast %cst_41 : f32 to vector<8x128xf32>
    %229 = arith.addf %228, %227 : vector<8x128xf32>
    %230 = arith.divf %228, %229 : vector<8x128xf32>
    %231 = vector.extract_strided_slice %224 {offsets = [0, 128], sizes = [8, 128], strides = [1, 1]} : vector<8x512xf32> to vector<8x128xf32>
    %232 = arith.negf %231 : vector<8x128xf32>
    %233 = math.exp %232 : vector<8x128xf32>
    %cst_42 = arith.constant 1.000000e+00 : f32
    %234 = vector.broadcast %cst_42 : f32 to vector<8x128xf32>
    %235 = arith.addf %234, %233 : vector<8x128xf32>
    %236 = arith.divf %234, %235 : vector<8x128xf32>
    %237 = vector.extract_strided_slice %224 {offsets = [0, 256], sizes = [8, 128], strides = [1, 1]} : vector<8x512xf32> to vector<8x128xf32>
    %238 = math.tanh %237 : vector<8x128xf32>
    %239 = vector.extract_strided_slice %224 {offsets = [0, 384], sizes = [8, 128], strides = [1, 1]} : vector<8x512xf32> to vector<8x128xf32>
    %240 = arith.negf %239 : vector<8x128xf32>
    %241 = math.exp %240 : vector<8x128xf32>
    %cst_43 = arith.constant 1.000000e+00 : f32
    %242 = vector.broadcast %cst_43 : f32 to vector<8x128xf32>
    %243 = arith.addf %242, %241 : vector<8x128xf32>
    %244 = arith.divf %242, %243 : vector<8x128xf32>
    %245 = arith.mulf %236, %218 : vector<8x128xf32>
    %246 = arith.mulf %230, %238 : vector<8x128xf32>
    %247 = arith.addf %245, %246 : vector<8x128xf32>
    %248 = math.tanh %247 : vector<8x128xf32>
    %249 = arith.mulf %244, %248 : vector<8x128xf32>
    %250 = tpu.concatenate %46, %75, %104, %133, %162, %191, %220, %249 in 0 : vector<8x128xf32>, vector<8x128xf32>, vector<8x128xf32>, vector<8x128xf32>, vector<8x128xf32>, vector<8x128xf32>, vector<8x128xf32>, vector<8x128xf32> -> vector<64x128xf32>
    %c0_44 = arith.constant 0 : index
    %c0_45 = arith.constant 0 : index
    %251 = vector.load %arg7[%c0_44, %c0_45] : memref<128x512xbf16, #tpu.memory_space<vmem>>, vector<128x512xbf16>
    %252 = arith.truncf %250 : vector<64x128xf32> to vector<64x128xbf16>
    %c0_46 = arith.constant 0 : index
    %c0_47 = arith.constant 0 : index
    %253 = vector.load %arg6[%c0_46, %c0_47] : memref<128x512xbf16, #tpu.memory_space<vmem>>, vector<128x512xbf16>
    %cst_48 = arith.constant dense<0.000000e+00> : vector<64x512xf32>
    %254 = tpu.matmul %252, %253, %cst_48 {dimension_numbers = #tpu.dot_dimension_numbers<[1], [0], [0], [1], [0, 0, 1, 1], [], []>} : vector<64x128xbf16>, vector<128x512xbf16>, vector<64x512xf32> -> vector<64x512xf32>
    %c0_49 = arith.constant 0 : index
    %c0_50 = arith.constant 0 : index
    %255 = vector.load %arg8[%c0_49, %c0_50] : memref<1x512xf32, #tpu.memory_space<vmem>>, vector<1x512xf32>
    %256 = vector.broadcast %255 : vector<1x512xf32> to vector<64x512xf32>
    %257 = arith.addf %254, %256 : vector<64x512xf32>
    %cst_51 = arith.constant 0.000000e+00 : f32
    %258 = vector.broadcast %cst_51 : f32 to vector<8x128xf32>
    %cst_52 = arith.constant 0.000000e+00 : f32
    %259 = vector.broadcast %cst_52 : f32 to vector<8x128xf32>
    %260 = vector.extract_strided_slice %257 {offsets = [0, 0], sizes = [8, 512], strides = [1, 1]} : vector<64x512xf32> to vector<8x512xf32>
    %261 = arith.truncf %258 : vector<8x128xf32> to vector<8x128xbf16>
    %cst_53 = arith.constant dense<0.000000e+00> : vector<8x512xf32>
    %262 = tpu.matmul %261, %251, %cst_53 {dimension_numbers = #tpu.dot_dimension_numbers<[1], [0], [0], [1], [0, 0, 1, 1], [], []>} : vector<8x128xbf16>, vector<128x512xbf16>, vector<8x512xf32> -> vector<8x512xf32>
    %263 = arith.addf %260, %262 : vector<8x512xf32>
    %264 = vector.extract_strided_slice %263 {offsets = [0, 0], sizes = [8, 128], strides = [1, 1]} : vector<8x512xf32> to vector<8x128xf32>
    %265 = arith.negf %264 : vector<8x128xf32>
    %266 = math.exp %265 : vector<8x128xf32>
    %cst_54 = arith.constant 1.000000e+00 : f32
    %267 = vector.broadcast %cst_54 : f32 to vector<8x128xf32>
    %268 = arith.addf %267, %266 : vector<8x128xf32>
    %269 = arith.divf %267, %268 : vector<8x128xf32>
    %270 = vector.extract_strided_slice %263 {offsets = [0, 128], sizes = [8, 128], strides = [1, 1]} : vector<8x512xf32> to vector<8x128xf32>
    %271 = arith.negf %270 : vector<8x128xf32>
    %272 = math.exp %271 : vector<8x128xf32>
    %cst_55 = arith.constant 1.000000e+00 : f32
    %273 = vector.broadcast %cst_55 : f32 to vector<8x128xf32>
    %274 = arith.addf %273, %272 : vector<8x128xf32>
    %275 = arith.divf %273, %274 : vector<8x128xf32>
    %276 = vector.extract_strided_slice %263 {offsets = [0, 256], sizes = [8, 128], strides = [1, 1]} : vector<8x512xf32> to vector<8x128xf32>
    %277 = math.tanh %276 : vector<8x128xf32>
    %278 = vector.extract_strided_slice %263 {offsets = [0, 384], sizes = [8, 128], strides = [1, 1]} : vector<8x512xf32> to vector<8x128xf32>
    %279 = arith.negf %278 : vector<8x128xf32>
    %280 = math.exp %279 : vector<8x128xf32>
    %cst_56 = arith.constant 1.000000e+00 : f32
    %281 = vector.broadcast %cst_56 : f32 to vector<8x128xf32>
    %282 = arith.addf %281, %280 : vector<8x128xf32>
    %283 = arith.divf %281, %282 : vector<8x128xf32>
    %284 = arith.mulf %275, %259 : vector<8x128xf32>
    %285 = arith.mulf %269, %277 : vector<8x128xf32>
    %286 = arith.addf %284, %285 : vector<8x128xf32>
    %287 = math.tanh %286 : vector<8x128xf32>
    %288 = arith.mulf %283, %287 : vector<8x128xf32>
    %289 = vector.extract_strided_slice %257 {offsets = [8, 0], sizes = [8, 512], strides = [1, 1]} : vector<64x512xf32> to vector<8x512xf32>
    %290 = arith.truncf %288 : vector<8x128xf32> to vector<8x128xbf16>
    %cst_57 = arith.constant dense<0.000000e+00> : vector<8x512xf32>
    %291 = tpu.matmul %290, %251, %cst_57 {dimension_numbers = #tpu.dot_dimension_numbers<[1], [0], [0], [1], [0, 0, 1, 1], [], []>} : vector<8x128xbf16>, vector<128x512xbf16>, vector<8x512xf32> -> vector<8x512xf32>
    %292 = arith.addf %289, %291 : vector<8x512xf32>
    %293 = vector.extract_strided_slice %292 {offsets = [0, 0], sizes = [8, 128], strides = [1, 1]} : vector<8x512xf32> to vector<8x128xf32>
    %294 = arith.negf %293 : vector<8x128xf32>
    %295 = math.exp %294 : vector<8x128xf32>
    %cst_58 = arith.constant 1.000000e+00 : f32
    %296 = vector.broadcast %cst_58 : f32 to vector<8x128xf32>
    %297 = arith.addf %296, %295 : vector<8x128xf32>
    %298 = arith.divf %296, %297 : vector<8x128xf32>
    %299 = vector.extract_strided_slice %292 {offsets = [0, 128], sizes = [8, 128], strides = [1, 1]} : vector<8x512xf32> to vector<8x128xf32>
    %300 = arith.negf %299 : vector<8x128xf32>
    %301 = math.exp %300 : vector<8x128xf32>
    %cst_59 = arith.constant 1.000000e+00 : f32
    %302 = vector.broadcast %cst_59 : f32 to vector<8x128xf32>
    %303 = arith.addf %302, %301 : vector<8x128xf32>
    %304 = arith.divf %302, %303 : vector<8x128xf32>
    %305 = vector.extract_strided_slice %292 {offsets = [0, 256], sizes = [8, 128], strides = [1, 1]} : vector<8x512xf32> to vector<8x128xf32>
    %306 = math.tanh %305 : vector<8x128xf32>
    %307 = vector.extract_strided_slice %292 {offsets = [0, 384], sizes = [8, 128], strides = [1, 1]} : vector<8x512xf32> to vector<8x128xf32>
    %308 = arith.negf %307 : vector<8x128xf32>
    %309 = math.exp %308 : vector<8x128xf32>
    %cst_60 = arith.constant 1.000000e+00 : f32
    %310 = vector.broadcast %cst_60 : f32 to vector<8x128xf32>
    %311 = arith.addf %310, %309 : vector<8x128xf32>
    %312 = arith.divf %310, %311 : vector<8x128xf32>
    %313 = arith.mulf %304, %286 : vector<8x128xf32>
    %314 = arith.mulf %298, %306 : vector<8x128xf32>
    %315 = arith.addf %313, %314 : vector<8x128xf32>
    %316 = math.tanh %315 : vector<8x128xf32>
    %317 = arith.mulf %312, %316 : vector<8x128xf32>
    %318 = vector.extract_strided_slice %257 {offsets = [16, 0], sizes = [8, 512], strides = [1, 1]} : vector<64x512xf32> to vector<8x512xf32>
    %319 = arith.truncf %317 : vector<8x128xf32> to vector<8x128xbf16>
    %cst_61 = arith.constant dense<0.000000e+00> : vector<8x512xf32>
    %320 = tpu.matmul %319, %251, %cst_61 {dimension_numbers = #tpu.dot_dimension_numbers<[1], [0], [0], [1], [0, 0, 1, 1], [], []>} : vector<8x128xbf16>, vector<128x512xbf16>, vector<8x512xf32> -> vector<8x512xf32>
    %321 = arith.addf %318, %320 : vector<8x512xf32>
    %322 = vector.extract_strided_slice %321 {offsets = [0, 0], sizes = [8, 128], strides = [1, 1]} : vector<8x512xf32> to vector<8x128xf32>
    %323 = arith.negf %322 : vector<8x128xf32>
    %324 = math.exp %323 : vector<8x128xf32>
    %cst_62 = arith.constant 1.000000e+00 : f32
    %325 = vector.broadcast %cst_62 : f32 to vector<8x128xf32>
    %326 = arith.addf %325, %324 : vector<8x128xf32>
    %327 = arith.divf %325, %326 : vector<8x128xf32>
    %328 = vector.extract_strided_slice %321 {offsets = [0, 128], sizes = [8, 128], strides = [1, 1]} : vector<8x512xf32> to vector<8x128xf32>
    %329 = arith.negf %328 : vector<8x128xf32>
    %330 = math.exp %329 : vector<8x128xf32>
    %cst_63 = arith.constant 1.000000e+00 : f32
    %331 = vector.broadcast %cst_63 : f32 to vector<8x128xf32>
    %332 = arith.addf %331, %330 : vector<8x128xf32>
    %333 = arith.divf %331, %332 : vector<8x128xf32>
    %334 = vector.extract_strided_slice %321 {offsets = [0, 256], sizes = [8, 128], strides = [1, 1]} : vector<8x512xf32> to vector<8x128xf32>
    %335 = math.tanh %334 : vector<8x128xf32>
    %336 = vector.extract_strided_slice %321 {offsets = [0, 384], sizes = [8, 128], strides = [1, 1]} : vector<8x512xf32> to vector<8x128xf32>
    %337 = arith.negf %336 : vector<8x128xf32>
    %338 = math.exp %337 : vector<8x128xf32>
    %cst_64 = arith.constant 1.000000e+00 : f32
    %339 = vector.broadcast %cst_64 : f32 to vector<8x128xf32>
    %340 = arith.addf %339, %338 : vector<8x128xf32>
    %341 = arith.divf %339, %340 : vector<8x128xf32>
    %342 = arith.mulf %333, %315 : vector<8x128xf32>
    %343 = arith.mulf %327, %335 : vector<8x128xf32>
    %344 = arith.addf %342, %343 : vector<8x128xf32>
    %345 = math.tanh %344 : vector<8x128xf32>
    %346 = arith.mulf %341, %345 : vector<8x128xf32>
    %347 = vector.extract_strided_slice %257 {offsets = [24, 0], sizes = [8, 512], strides = [1, 1]} : vector<64x512xf32> to vector<8x512xf32>
    %348 = arith.truncf %346 : vector<8x128xf32> to vector<8x128xbf16>
    %cst_65 = arith.constant dense<0.000000e+00> : vector<8x512xf32>
    %349 = tpu.matmul %348, %251, %cst_65 {dimension_numbers = #tpu.dot_dimension_numbers<[1], [0], [0], [1], [0, 0, 1, 1], [], []>} : vector<8x128xbf16>, vector<128x512xbf16>, vector<8x512xf32> -> vector<8x512xf32>
    %350 = arith.addf %347, %349 : vector<8x512xf32>
    %351 = vector.extract_strided_slice %350 {offsets = [0, 0], sizes = [8, 128], strides = [1, 1]} : vector<8x512xf32> to vector<8x128xf32>
    %352 = arith.negf %351 : vector<8x128xf32>
    %353 = math.exp %352 : vector<8x128xf32>
    %cst_66 = arith.constant 1.000000e+00 : f32
    %354 = vector.broadcast %cst_66 : f32 to vector<8x128xf32>
    %355 = arith.addf %354, %353 : vector<8x128xf32>
    %356 = arith.divf %354, %355 : vector<8x128xf32>
    %357 = vector.extract_strided_slice %350 {offsets = [0, 128], sizes = [8, 128], strides = [1, 1]} : vector<8x512xf32> to vector<8x128xf32>
    %358 = arith.negf %357 : vector<8x128xf32>
    %359 = math.exp %358 : vector<8x128xf32>
    %cst_67 = arith.constant 1.000000e+00 : f32
    %360 = vector.broadcast %cst_67 : f32 to vector<8x128xf32>
    %361 = arith.addf %360, %359 : vector<8x128xf32>
    %362 = arith.divf %360, %361 : vector<8x128xf32>
    %363 = vector.extract_strided_slice %350 {offsets = [0, 256], sizes = [8, 128], strides = [1, 1]} : vector<8x512xf32> to vector<8x128xf32>
    %364 = math.tanh %363 : vector<8x128xf32>
    %365 = vector.extract_strided_slice %350 {offsets = [0, 384], sizes = [8, 128], strides = [1, 1]} : vector<8x512xf32> to vector<8x128xf32>
    %366 = arith.negf %365 : vector<8x128xf32>
    %367 = math.exp %366 : vector<8x128xf32>
    %cst_68 = arith.constant 1.000000e+00 : f32
    %368 = vector.broadcast %cst_68 : f32 to vector<8x128xf32>
    %369 = arith.addf %368, %367 : vector<8x128xf32>
    %370 = arith.divf %368, %369 : vector<8x128xf32>
    %371 = arith.mulf %362, %344 : vector<8x128xf32>
    %372 = arith.mulf %356, %364 : vector<8x128xf32>
    %373 = arith.addf %371, %372 : vector<8x128xf32>
    %374 = math.tanh %373 : vector<8x128xf32>
    %375 = arith.mulf %370, %374 : vector<8x128xf32>
    %376 = vector.extract_strided_slice %257 {offsets = [32, 0], sizes = [8, 512], strides = [1, 1]} : vector<64x512xf32> to vector<8x512xf32>
    %377 = arith.truncf %375 : vector<8x128xf32> to vector<8x128xbf16>
    %cst_69 = arith.constant dense<0.000000e+00> : vector<8x512xf32>
    %378 = tpu.matmul %377, %251, %cst_69 {dimension_numbers = #tpu.dot_dimension_numbers<[1], [0], [0], [1], [0, 0, 1, 1], [], []>} : vector<8x128xbf16>, vector<128x512xbf16>, vector<8x512xf32> -> vector<8x512xf32>
    %379 = arith.addf %376, %378 : vector<8x512xf32>
    %380 = vector.extract_strided_slice %379 {offsets = [0, 0], sizes = [8, 128], strides = [1, 1]} : vector<8x512xf32> to vector<8x128xf32>
    %381 = arith.negf %380 : vector<8x128xf32>
    %382 = math.exp %381 : vector<8x128xf32>
    %cst_70 = arith.constant 1.000000e+00 : f32
    %383 = vector.broadcast %cst_70 : f32 to vector<8x128xf32>
    %384 = arith.addf %383, %382 : vector<8x128xf32>
    %385 = arith.divf %383, %384 : vector<8x128xf32>
    %386 = vector.extract_strided_slice %379 {offsets = [0, 128], sizes = [8, 128], strides = [1, 1]} : vector<8x512xf32> to vector<8x128xf32>
    %387 = arith.negf %386 : vector<8x128xf32>
    %388 = math.exp %387 : vector<8x128xf32>
    %cst_71 = arith.constant 1.000000e+00 : f32
    %389 = vector.broadcast %cst_71 : f32 to vector<8x128xf32>
    %390 = arith.addf %389, %388 : vector<8x128xf32>
    %391 = arith.divf %389, %390 : vector<8x128xf32>
    %392 = vector.extract_strided_slice %379 {offsets = [0, 256], sizes = [8, 128], strides = [1, 1]} : vector<8x512xf32> to vector<8x128xf32>
    %393 = math.tanh %392 : vector<8x128xf32>
    %394 = vector.extract_strided_slice %379 {offsets = [0, 384], sizes = [8, 128], strides = [1, 1]} : vector<8x512xf32> to vector<8x128xf32>
    %395 = arith.negf %394 : vector<8x128xf32>
    %396 = math.exp %395 : vector<8x128xf32>
    %cst_72 = arith.constant 1.000000e+00 : f32
    %397 = vector.broadcast %cst_72 : f32 to vector<8x128xf32>
    %398 = arith.addf %397, %396 : vector<8x128xf32>
    %399 = arith.divf %397, %398 : vector<8x128xf32>
    %400 = arith.mulf %391, %373 : vector<8x128xf32>
    %401 = arith.mulf %385, %393 : vector<8x128xf32>
    %402 = arith.addf %400, %401 : vector<8x128xf32>
    %403 = math.tanh %402 : vector<8x128xf32>
    %404 = arith.mulf %399, %403 : vector<8x128xf32>
    %405 = vector.extract_strided_slice %257 {offsets = [40, 0], sizes = [8, 512], strides = [1, 1]} : vector<64x512xf32> to vector<8x512xf32>
    %406 = arith.truncf %404 : vector<8x128xf32> to vector<8x128xbf16>
    %cst_73 = arith.constant dense<0.000000e+00> : vector<8x512xf32>
    %407 = tpu.matmul %406, %251, %cst_73 {dimension_numbers = #tpu.dot_dimension_numbers<[1], [0], [0], [1], [0, 0, 1, 1], [], []>} : vector<8x128xbf16>, vector<128x512xbf16>, vector<8x512xf32> -> vector<8x512xf32>
    %408 = arith.addf %405, %407 : vector<8x512xf32>
    %409 = vector.extract_strided_slice %408 {offsets = [0, 0], sizes = [8, 128], strides = [1, 1]} : vector<8x512xf32> to vector<8x128xf32>
    %410 = arith.negf %409 : vector<8x128xf32>
    %411 = math.exp %410 : vector<8x128xf32>
    %cst_74 = arith.constant 1.000000e+00 : f32
    %412 = vector.broadcast %cst_74 : f32 to vector<8x128xf32>
    %413 = arith.addf %412, %411 : vector<8x128xf32>
    %414 = arith.divf %412, %413 : vector<8x128xf32>
    %415 = vector.extract_strided_slice %408 {offsets = [0, 128], sizes = [8, 128], strides = [1, 1]} : vector<8x512xf32> to vector<8x128xf32>
    %416 = arith.negf %415 : vector<8x128xf32>
    %417 = math.exp %416 : vector<8x128xf32>
    %cst_75 = arith.constant 1.000000e+00 : f32
    %418 = vector.broadcast %cst_75 : f32 to vector<8x128xf32>
    %419 = arith.addf %418, %417 : vector<8x128xf32>
    %420 = arith.divf %418, %419 : vector<8x128xf32>
    %421 = vector.extract_strided_slice %408 {offsets = [0, 256], sizes = [8, 128], strides = [1, 1]} : vector<8x512xf32> to vector<8x128xf32>
    %422 = math.tanh %421 : vector<8x128xf32>
    %423 = vector.extract_strided_slice %408 {offsets = [0, 384], sizes = [8, 128], strides = [1, 1]} : vector<8x512xf32> to vector<8x128xf32>
    %424 = arith.negf %423 : vector<8x128xf32>
    %425 = math.exp %424 : vector<8x128xf32>
    %cst_76 = arith.constant 1.000000e+00 : f32
    %426 = vector.broadcast %cst_76 : f32 to vector<8x128xf32>
    %427 = arith.addf %426, %425 : vector<8x128xf32>
    %428 = arith.divf %426, %427 : vector<8x128xf32>
    %429 = arith.mulf %420, %402 : vector<8x128xf32>
    %430 = arith.mulf %414, %422 : vector<8x128xf32>
    %431 = arith.addf %429, %430 : vector<8x128xf32>
    %432 = math.tanh %431 : vector<8x128xf32>
    %433 = arith.mulf %428, %432 : vector<8x128xf32>
    %434 = vector.extract_strided_slice %257 {offsets = [48, 0], sizes = [8, 512], strides = [1, 1]} : vector<64x512xf32> to vector<8x512xf32>
    %435 = arith.truncf %433 : vector<8x128xf32> to vector<8x128xbf16>
    %cst_77 = arith.constant dense<0.000000e+00> : vector<8x512xf32>
    %436 = tpu.matmul %435, %251, %cst_77 {dimension_numbers = #tpu.dot_dimension_numbers<[1], [0], [0], [1], [0, 0, 1, 1], [], []>} : vector<8x128xbf16>, vector<128x512xbf16>, vector<8x512xf32> -> vector<8x512xf32>
    %437 = arith.addf %434, %436 : vector<8x512xf32>
    %438 = vector.extract_strided_slice %437 {offsets = [0, 0], sizes = [8, 128], strides = [1, 1]} : vector<8x512xf32> to vector<8x128xf32>
    %439 = arith.negf %438 : vector<8x128xf32>
    %440 = math.exp %439 : vector<8x128xf32>
    %cst_78 = arith.constant 1.000000e+00 : f32
    %441 = vector.broadcast %cst_78 : f32 to vector<8x128xf32>
    %442 = arith.addf %441, %440 : vector<8x128xf32>
    %443 = arith.divf %441, %442 : vector<8x128xf32>
    %444 = vector.extract_strided_slice %437 {offsets = [0, 128], sizes = [8, 128], strides = [1, 1]} : vector<8x512xf32> to vector<8x128xf32>
    %445 = arith.negf %444 : vector<8x128xf32>
    %446 = math.exp %445 : vector<8x128xf32>
    %cst_79 = arith.constant 1.000000e+00 : f32
    %447 = vector.broadcast %cst_79 : f32 to vector<8x128xf32>
    %448 = arith.addf %447, %446 : vector<8x128xf32>
    %449 = arith.divf %447, %448 : vector<8x128xf32>
    %450 = vector.extract_strided_slice %437 {offsets = [0, 256], sizes = [8, 128], strides = [1, 1]} : vector<8x512xf32> to vector<8x128xf32>
    %451 = math.tanh %450 : vector<8x128xf32>
    %452 = vector.extract_strided_slice %437 {offsets = [0, 384], sizes = [8, 128], strides = [1, 1]} : vector<8x512xf32> to vector<8x128xf32>
    %453 = arith.negf %452 : vector<8x128xf32>
    %454 = math.exp %453 : vector<8x128xf32>
    %cst_80 = arith.constant 1.000000e+00 : f32
    %455 = vector.broadcast %cst_80 : f32 to vector<8x128xf32>
    %456 = arith.addf %455, %454 : vector<8x128xf32>
    %457 = arith.divf %455, %456 : vector<8x128xf32>
    %458 = arith.mulf %449, %431 : vector<8x128xf32>
    %459 = arith.mulf %443, %451 : vector<8x128xf32>
    %460 = arith.addf %458, %459 : vector<8x128xf32>
    %461 = math.tanh %460 : vector<8x128xf32>
    %462 = arith.mulf %457, %461 : vector<8x128xf32>
    %463 = vector.extract_strided_slice %257 {offsets = [56, 0], sizes = [8, 512], strides = [1, 1]} : vector<64x512xf32> to vector<8x512xf32>
    %464 = arith.truncf %462 : vector<8x128xf32> to vector<8x128xbf16>
    %cst_81 = arith.constant dense<0.000000e+00> : vector<8x512xf32>
    %465 = tpu.matmul %464, %251, %cst_81 {dimension_numbers = #tpu.dot_dimension_numbers<[1], [0], [0], [1], [0, 0, 1, 1], [], []>} : vector<8x128xbf16>, vector<128x512xbf16>, vector<8x512xf32> -> vector<8x512xf32>
    %466 = arith.addf %463, %465 : vector<8x512xf32>
    %467 = vector.extract_strided_slice %466 {offsets = [0, 0], sizes = [8, 128], strides = [1, 1]} : vector<8x512xf32> to vector<8x128xf32>
    %468 = arith.negf %467 : vector<8x128xf32>
    %469 = math.exp %468 : vector<8x128xf32>
    %cst_82 = arith.constant 1.000000e+00 : f32
    %470 = vector.broadcast %cst_82 : f32 to vector<8x128xf32>
    %471 = arith.addf %470, %469 : vector<8x128xf32>
    %472 = arith.divf %470, %471 : vector<8x128xf32>
    %473 = vector.extract_strided_slice %466 {offsets = [0, 128], sizes = [8, 128], strides = [1, 1]} : vector<8x512xf32> to vector<8x128xf32>
    %474 = arith.negf %473 : vector<8x128xf32>
    %475 = math.exp %474 : vector<8x128xf32>
    %cst_83 = arith.constant 1.000000e+00 : f32
    %476 = vector.broadcast %cst_83 : f32 to vector<8x128xf32>
    %477 = arith.addf %476, %475 : vector<8x128xf32>
    %478 = arith.divf %476, %477 : vector<8x128xf32>
    %479 = vector.extract_strided_slice %466 {offsets = [0, 256], sizes = [8, 128], strides = [1, 1]} : vector<8x512xf32> to vector<8x128xf32>
    %480 = math.tanh %479 : vector<8x128xf32>
    %481 = vector.extract_strided_slice %466 {offsets = [0, 384], sizes = [8, 128], strides = [1, 1]} : vector<8x512xf32> to vector<8x128xf32>
    %482 = arith.negf %481 : vector<8x128xf32>
    %483 = math.exp %482 : vector<8x128xf32>
    %cst_84 = arith.constant 1.000000e+00 : f32
    %484 = vector.broadcast %cst_84 : f32 to vector<8x128xf32>
    %485 = arith.addf %484, %483 : vector<8x128xf32>
    %486 = arith.divf %484, %485 : vector<8x128xf32>
    %487 = arith.mulf %478, %460 : vector<8x128xf32>
    %488 = arith.mulf %472, %480 : vector<8x128xf32>
    %489 = arith.addf %487, %488 : vector<8x128xf32>
    %490 = math.tanh %489 : vector<8x128xf32>
    %491 = arith.mulf %486, %490 : vector<8x128xf32>
    %492 = arith.truncf %491 : vector<8x128xf32> to vector<8x128xbf16>
    %c0_85 = arith.constant 0 : index
    %c0_86 = arith.constant 0 : index
    %493 = vector.load %arg9[%c0_85, %c0_86] : memref<128x128xbf16, #tpu.memory_space<vmem>>, vector<128x128xbf16>
    %cst_87 = arith.constant dense<0.000000e+00> : vector<8x128xf32>
    %494 = tpu.matmul %492, %493, %cst_87 {dimension_numbers = #tpu.dot_dimension_numbers<[1], [0], [0], [1], [0, 0, 1, 1], [], []>} : vector<8x128xbf16>, vector<128x128xbf16>, vector<8x128xf32> -> vector<8x128xf32>
    %c0_88 = arith.constant 0 : index
    %c0_89 = arith.constant 0 : index
    %495 = vector.load %arg10[%c0_88, %c0_89] : memref<1x128xf32, #tpu.memory_space<vmem>>, vector<1x128xf32>
    %496 = vector.broadcast %495 : vector<1x128xf32> to vector<8x128xf32>
    %497 = arith.addf %494, %496 : vector<8x128xf32>
    %c0_90 = arith.constant 0 : index
    %c0_91 = arith.constant 0 : index
    %498 = vector.load %arg11[%c0_90, %c0_91] : memref<8x128xf32, #tpu.memory_space<vmem>>, vector<8x128xf32>
    tpu.vector_store %arg11[%c0_90, %c0_91], %497 {strides = array<i32>} : memref<8x128xf32, #tpu.memory_space<vmem>>, vector<8x128xf32>,
    return
  }
  func.func @transform_0(%arg0: i32) -> (i32, i32) {
    %c0_i32 = arith.constant 0 : i32
    %c0_i32_0 = arith.constant 0 : i32
    %c0_i32_1 = arith.constant 0 : i32
    return %c0_i32, %c0_i32_0 : i32, i32
  }
  func.func @transform_1(%arg0: i32) -> (i32, i32) {
    %c0_i32 = arith.constant 0 : i32
    %c0_i32_0 = arith.constant 0 : i32
    %c0_i32_1 = arith.constant 0 : i32
    return %c0_i32, %c0_i32_0 : i32, i32
  }
  func.func @transform_2(%arg0: i32) -> (i32, i32) {
    %c0_i32 = arith.constant 0 : i32
    %c0_i32_0 = arith.constant 0 : i32
    %c0_i32_1 = arith.constant 0 : i32
    return %c0_i32, %c0_i32_0 : i32, i32
  }
  func.func @transform_3(%arg0: i32) -> (i32, i32) {
    %c0_i32 = arith.constant 0 : i32
    %c0_i32_0 = arith.constant 0 : i32
    %c0_i32_1 = arith.constant 0 : i32
    return %c0_i32, %c0_i32_0 : i32, i32
  }
  func.func @transform_4(%arg0: i32) -> (i32, i32) {
    %c0_i32 = arith.constant 0 : i32
    %c0_i32_0 = arith.constant 0 : i32
    %c0_i32_1 = arith.constant 0 : i32
    return %c0_i32, %c0_i32_0 : i32, i32
  }
  func.func @transform_5(%arg0: i32) -> (i32, i32) {
    %c0_i32 = arith.constant 0 : i32
    %c0_i32_0 = arith.constant 0 : i32
    %c0_i32_1 = arith.constant 0 : i32
    return %c0_i32, %c0_i32_0 : i32, i32
  }
  func.func @transform_6(%arg0: i32) -> (i32, i32) {
    %c0_i32 = arith.constant 0 : i32
    %c0_i32_0 = arith.constant 0 : i32
    %c0_i32_1 = arith.constant 0 : i32
    return %c0_i32, %c0_i32_0 : i32, i32
  }
  func.func @transform_7(%arg0: i32) -> (i32, i32) {
    %c0_i32 = arith.constant 0 : i32
    %c0_i32_0 = arith.constant 0 : i32
    %c0_i32_1 = arith.constant 0 : i32
    return %c0_i32, %c0_i32_0 : i32, i32
  }
  func.func @transform_8(%arg0: i32) -> (i32, i32) {
    %c0_i32 = arith.constant 0 : i32
    %c0_i32_0 = arith.constant 0 : i32
    %c0_i32_1 = arith.constant 0 : i32
    return %c0_i32, %c0_i32_0 : i32, i32
  }
  func.func @transform_9(%arg0: i32) -> (i32, i32) {
    %c0_i32 = arith.constant 0 : i32
    %c0_i32_0 = arith.constant 0 : i32
    %c0_i32_1 = arith.constant 0 : i32
    return %c0_i32, %c0_i32_0 : i32, i32
  }
  func.func @transform_10(%arg0: i32) -> (i32, i32) {
    %c0_i32 = arith.constant 0 : i32
    %c0_i32_0 = arith.constant 0 : i32
    %c0_i32_1 = arith.constant 0 : i32
    return %c0_i32, %c0_i32_0 : i32, i32
  }
}

</mosaic_0001>

<llo_original>
// kernel: movie_review_forward.1
$region0: #{movie_review_forward.1}
  #allocation0 [shape = 'u32[]', space=smem, size = 0x4, offset = 0x4, fixed_abs, tag = 'smem constant byte address 0x4 - core index']
  #allocation1 [shape = 'u32[144,128]{1,0:T(1,128)}', space=vmem, size = 0x12000, scoped, tag = 'internal scratch']
  %s0 = inlined_call_operand.vmem [shape: s32[64,1], index: 0, kind: input, shape index: {}]
  %s1 = inlined_call_operand.vmem [shape: bf16[56,128], index: 1, kind: input, shape index: {}]
  %s2 = inlined_call_operand.hbm [shape: bf16[128,512], index: 2, kind: input, shape index: {}]
  %s3 = inlined_call_operand.hbm [shape: bf16[128,512], index: 3, kind: input, shape index: {}]
  %s4 = inlined_call_operand.vmem [shape: f32[1,512], index: 4, kind: input, shape index: {}]
  %s5 = inlined_call_operand.hbm [shape: bf16[128,512], index: 5, kind: input, shape index: {}]
  %s6 = inlined_call_operand.hbm [shape: bf16[128,512], index: 6, kind: input, shape index: {}]
  %s7 = inlined_call_operand.vmem [shape: f32[1,512], index: 7, kind: input, shape index: {}]
  %s8 = inlined_call_operand.vmem [shape: bf16[128,128], index: 8, kind: input, shape index: {}]
  %s9 = inlined_call_operand.vmem [shape: f32[1,128], index: 9, kind: input, shape index: {}]
  %s10 = inlined_call_operand.vmem [shape: f32[8,128], index: 10, kind: output, shape index: {}]
  %s11 = sld [smem:[#allocation0]]
  $region66: #{movie_review_forward.1} parent=0
    _
  %s13 = ssub.s32 1, %s11
  %s14 = scalar_select 0, %s13, %s11
  $region1: #{movie_review_forward.1} parent=0
    #allocation2 [shape = 'u8[131072]{0}', space=vmem, size = 0x20000, scoped, tag = 'input window, operand 2, single buffered']
    #allocation3 [shape = 's32[1]{0}', space=sflag, size = 0x4, scoped, tag = 'scoped memory for movie_review_forward.1']
    #allocation4 [shape = 'u8[131072]{0}', space=vmem, size = 0x20000, scoped, tag = 'input window, operand 3, single buffered']
    #allocation5 [shape = 's32[1]{0}', space=sflag, size = 0x4, scoped, tag = 'scoped memory for movie_review_forward.1']
    #allocation6 [shape = 'u8[131072]{0}', space=vmem, size = 0x20000, scoped, tag = 'input window, operand 5, single buffered']
    #allocation7 [shape = 'u8[131072]{0}', space=vmem, size = 0x20000, scoped, tag = 'input window, operand 6, single buffered']
    #allocation8 [shape = 's32[1]{0}', space=sflag, size = 0x4, scoped, tag = 'scoped memory for movie_review_forward.1']
    %15 = vsyncpa [#allocation3], 0
    %16 = vsyncpa [#allocation5], 0
    %17 = vsyncpa [#allocation8], 0
    // Predicated region
    $region2: #{movie_review_forward.1} parent=1 // pred_check
      _
    $region3: #{movie_review_forward.1} parent=1 // pred_check_branch
      %19 = sbr.rel (0) target = $region5
    $region4: #{movie_review_forward.1} parent=1 // pred_region
      _
    $region5: #{movie_review_forward.1} parent=1 // pred_fallthru
      _
    // Predicated region
    $region6: #{movie_review_forward.1} parent=1 // pred_check
      _
    $region7: #{movie_review_forward.1} parent=1 // pred_check_branch
      %21 = sbr.rel (0) target = $region9
    $region8: #{movie_review_forward.1} parent=1 // pred_region
      _
    $region9: #{movie_review_forward.1} parent=1 // pred_fallthru
      _
    // Predicated region
    $region10: #{movie_review_forward.1} parent=1 // pred_check
      _
    $region11: #{movie_review_forward.1} parent=1 // pred_check_branch
      %23 = sbr.rel (0) target = $region13
    $region12: #{movie_review_forward.1} parent=1 // pred_region
      %s25 = ssub.s32 4096, 4096
      %26 = vsyncadd [#allocation3], %s25
      %s27 = sshll.u32 [#allocation2], 4
      %s28 = int_to_ptr.vmem [resolvable:$true] %s27
      %33 = dma.hbm_to_vmem [thread:$0]  %s2, 4096, %s28, [#allocation3], 256, 256, 16
    $region13: #{movie_review_forward.1} parent=1 // pred_fallthru
      _
    // Predicated region
    $region14: #{movie_review_forward.1} parent=1 // pred_check
      _
    $region15: #{movie_review_forward.1} parent=1 // pred_check_branch
      %35 = sbr.rel (0) target = $region17
    $region16: #{movie_review_forward.1} parent=1 // pred_region
      %s37 = ssub.s32 4096, 4096
      %38 = vsyncadd [#allocation5], %s37
      %s39 = sshll.u32 [#allocation4], 4
      %s40 = int_to_ptr.vmem [resolvable:$true] %s39
      %45 = dma.hbm_to_vmem [thread:$0]  %s3, 4096, %s40, [#allocation5], 256, 256, 16
    $region17: #{movie_review_forward.1} parent=1 // pred_fallthru
      _
    // Predicated region
    $region18: #{movie_review_forward.1} parent=1 // pred_check
      _
    $region19: #{movie_review_forward.1} parent=1 // pred_check_branch
      %47 = sbr.rel (0) target = $region21
    $region20: #{movie_review_forward.1} parent=1 // pred_region
      _
    $region21: #{movie_review_forward.1} parent=1 // pred_fallthru
      _
    // Predicated region
    $region22: #{movie_review_forward.1} parent=1 // pred_check
      _
    $region23: #{movie_review_forward.1} parent=1 // pred_check_branch
      %49 = sbr.rel (0) target = $region25
    $region24: #{movie_review_forward.1} parent=1 // pred_region
      %s51 = ssub.s32 4096, 4096
      %52 = vsyncadd [#allocation5], %s51
      %s53 = sshll.u32 [#allocation6], 4
      %s54 = int_to_ptr.vmem [resolvable:$true] %s53
      %59 = dma.hbm_to_vmem [thread:$0]  %s5, 4096, %s54, [#allocation5], 256, 256, 16
    $region25: #{movie_review_forward.1} parent=1 // pred_fallthru
      _
    // Predicated region
    $region26: #{movie_review_forward.1} parent=1 // pred_check
      _
    $region27: #{movie_review_forward.1} parent=1 // pred_check_branch
      %61 = sbr.rel (0) target = $region29
    $region28: #{movie_review_forward.1} parent=1 // pred_region
      %s63 = ssub.s32 4096, 4096
      %64 = vsyncadd [#allocation8], %s63
      %s65 = sshll.u32 [#allocation7], 4
      %s66 = int_to_ptr.vmem [resolvable:$true] %s65
      %71 = dma.hbm_to_vmem [thread:$0]  %s6, 4096, %s66, [#allocation8], 256, 256, 16
    $region29: #{movie_review_forward.1} parent=1 // pred_fallthru
      _
    // Predicated region
    $region30: #{movie_review_forward.1} parent=1 // pred_check
      _
    $region31: #{movie_review_forward.1} parent=1 // pred_check_branch
      %73 = sbr.rel (0) target = $region33
    $region32: #{movie_review_forward.1} parent=1 // pred_region
      _
    $region33: #{movie_review_forward.1} parent=1 // pred_fallthru
      _
    // Predicated region
    $region34: #{movie_review_forward.1} parent=1 // pred_check
      _
    $region35: #{movie_review_forward.1} parent=1 // pred_check_branch
      %75 = sbr.rel (0) target = $region37
    $region36: #{movie_review_forward.1} parent=1 // pred_region
      _
    $region37: #{movie_review_forward.1} parent=1 // pred_fallthru
      _
    // Predicated region
    $region38: #{movie_review_forward.1} parent=1 // pred_check
      _
    $region39: #{movie_review_forward.1} parent=1 // pred_check_branch
      %77 = sbr.rel (0) target = $region41
    $region40: #{movie_review_forward.1} parent=1 // pred_region
      _
    $region41: #{movie_review_forward.1} parent=1 // pred_fallthru
      _
    // Predicated region
    $region42: #{movie_review_forward.1} parent=1 // pred_check
      _
    $region43: #{movie_review_forward.1} parent=1 // pred_check_branch
      %79 = sbr.rel (0) target = $region45
    $region44: #{movie_review_forward.1} parent=1 // pred_region
      %80 = dma.done [#allocation3], 4096
    $region45: #{movie_review_forward.1} parent=1 // pred_fallthru
      _
    // Predicated region
    $region46: #{movie_review_forward.1} parent=1 // pred_check
      _
    $region47: #{movie_review_forward.1} parent=1 // pred_check_branch
      %82 = sbr.rel (0) target = $region49
    $region48: #{movie_review_forward.1} parent=1 // pred_region
      %83 = dma.done [#allocation5], 4096
    $region49: #{movie_review_forward.1} parent=1 // pred_fallthru
      _
    // Predicated region
    $region50: #{movie_review_forward.1} parent=1 // pred_check
      _
    $region51: #{movie_review_forward.1} parent=1 // pred_check_branch
      %85 = sbr.rel (0) target = $region53
    $region52: #{movie_review_forward.1} parent=1 // pred_region
      %86 = dma.done [#allocation5], 4096
    $region53: #{movie_review_forward.1} parent=1 // pred_fallthru
      _
    // Predicated region
    $region54: #{movie_review_forward.1} parent=1 // pred_check
      _
    $region55: #{movie_review_forward.1} parent=1 // pred_check_branch
      %88 = sbr.rel (0) target = $region57
    $region56: #{movie_review_forward.1} parent=1 // pred_region
      %89 = dma.done [#allocation8], 4096
    $region57: #{movie_review_forward.1} parent=1 // pred_fallthru
      _
    %v91 = vld [vmem:[%s0] sm:$0xff]
    %v92 = vld [vmem:[%s0 + $0x8] sm:$0xff]
    %v93 = vld [vmem:[%s0 + $0x10] sm:$0xff]
    %v94 = vld [vmem:[%s0 + $0x18] sm:$0xff]
    %v95 = vld [vmem:[%s0 + $0x20] sm:$0xff]
    %v96 = vld [vmem:[%s0 + $0x28] sm:$0xff]
    %v97 = vld [vmem:[%s0 + $0x30] sm:$0xff]
    %v98 = vld [vmem:[%s0 + $0x38] sm:$0xff]
    %v99 = vlaneseq
    %v100 = vand.u32 %v99, 127
    %101 = vset.pattern.permute.xlu0 0
    %102 = vperm.xlu0 %101, %v91
    %v103 = vpop.permute.xlu0 %102
    %104 = vset.pattern.permute.xlu0 0
    %105 = vperm.xlu0 %104, %v92
    %v106 = vpop.permute.xlu0 %105
    %107 = vset.pattern.permute.xlu0 0
    %108 = vperm.xlu0 %107, %v93
    %v109 = vpop.permute.xlu0 %108
    %110 = vset.pattern.permute.xlu0 0
    %111 = vperm.xlu0 %110, %v94
    %v112 = vpop.permute.xlu0 %111
    %113 = vset.pattern.permute.xlu0 0
    %114 = vperm.xlu0 %113, %v95
    %v115 = vpop.permute.xlu0 %114
    %116 = vset.pattern.permute.xlu0 0
    %117 = vperm.xlu0 %116, %v96
    %v118 = vpop.permute.xlu0 %117
    %119 = vset.pattern.permute.xlu0 0
    %120 = vperm.xlu0 %119, %v97
    %v121 = vpop.permute.xlu0 %120
    %122 = vset.pattern.permute.xlu0 0
    %123 = vperm.xlu0 %122, %v98
    %v124 = vpop.permute.xlu0 %123
    %vm125 = vcmp.eq.s32.totalorder %v103, %v100
    %vm126 = vcmp.eq.s32.totalorder %v106, %v100
    %vm127 = vcmp.eq.s32.totalorder %v109, %v100
    %vm128 = vcmp.eq.s32.totalorder %v112, %v100
    %vm129 = vcmp.eq.s32.totalorder %v115, %v100
    %vm130 = vcmp.eq.s32.totalorder %v118, %v100
    %vm131 = vcmp.eq.s32.totalorder %v121, %v100
    %vm132 = vcmp.eq.s32.totalorder %v124, %v100
    %v133 = vsel %vm125, 1, 0
    %v134 = vsel %vm126, 1, 0
    %v135 = vsel %vm127, 1, 0
    %v136 = vsel %vm128, 1, 0
    %v137 = vsel %vm129, 1, 0
    %v138 = vsel %vm130, 1, 0
    %v139 = vsel %vm131, 1, 0
    %v140 = vsel %vm132, 1, 0
    %v141 = vcvt.s32.f32 %v133
    %v142 = vcvt.s32.f32 %v134
    %v143 = vcvt.s32.f32 %v135
    %v144 = vcvt.s32.f32 %v136
    %v145 = vcvt.s32.f32 %v137
    %v146 = vcvt.s32.f32 %v138
    %v147 = vcvt.s32.f32 %v139
    %v148 = vcvt.s32.f32 %v140
    %v149 = vpack.c.bf16 %v142, %v141
    %v150 = vpack.c.bf16 %v144, %v143
    %v151 = vpack.c.bf16 %v146, %v145
    %v152 = vpack.c.bf16 %v148, %v147
    %v153 = vld [vmem:[%s1] sm:$0xf]
    %v154 = vld [vmem:[%s1 + $0x4] sm:$0xf]
    %v155 = vld [vmem:[%s1 + $0x8] sm:$0xf]
    %v156 = vld [vmem:[%s1 + $0xc] sm:$0xf]
    %v157 = vld [vmem:[%s1 + $0x10] sm:$0xf]
    %v158 = vld [vmem:[%s1 + $0x14] sm:$0xf]
    %v159 = vld [vmem:[%s1 + $0x18] sm:$0xf]
    %v167 = vunpack.c.l.b16 %v153
    %v168 = vunpack.c.l.b16 %v154
    %v169 = vunpack.c.l.b16 %v155
    %v170 = vunpack.c.l.b16 %v156
    %v171 = vunpack.c.l.b16 %v157
    %v172 = vunpack.c.l.b16 %v158
    %v173 = vunpack.c.l.b16 %v159
    %v174 = vpack.c.b16 %v168, %v167
    %v175 = vpack.c.b16 %v170, %v169
    %v176 = vpack.c.b16 %v172, %v171
    %v177 = vpack.c.b16 %v173, %v173
    %vm181 = vcmask 457728
    %v183 = vsel %vm181, %v149, 0
    %v186 = vsel %vm181, %v150, 0
    %v189 = vsel %vm181, %v151, 0
    %v192 = vsel %vm181, %v152, 0
    %vm194 = vcmask 1043456
    %v196 = vsel %vm194, %v177, 0
    %198 = vmatprep.subr.bf16.mxu0 0
    %199 = vmatpush1.bf16.msra.mxu0 0
    %200 = vmatprep.subr.bf16.mxu0 0
    %201 = vmatpush1.bf16.msra.mxu0 0
    %202 = vmatprep.subr.bf16.mxu0 0
    %203 = vmatpush1.bf16.msra.mxu0 0
    %204 = vmatprep.subr.bf16.mxu0 0
    %205 = vmatpush1.bf16.msra.mxu0 0
    %206 = vmatprep.subr.bf16.mxu0 0
    %207 = vmatpush1.bf16.msra.mxu0 %v196
    %208 = vmatprep.subr.bf16.mxu0 0
    %209 = vmatpush1.bf16.msra.mxu0 %v176
    %210 = vmatprep.subr.bf16.mxu0 0
    %211 = vmatpush1.bf16.msra.mxu0 %v175
    %212 = vmatprep.subr.bf16.mxu0 0
    %213 = vmatpush1.bf16.msra.mxu0 %v174
    %214 = vmatprep.subr.bf16.mxu0 0
    %215 = vmatpush2.bf16.msra.mxu0 0
    %216 = vmatprep.subr.bf16.mxu0 0
    %217 = vmatpush2.bf16.msra.mxu0 0
    %218 = vmatprep.subr.bf16.mxu0 0
    %219 = vmatpush2.bf16.msra.mxu0 0
    %220 = vmatprep.subr.bf16.mxu0 0
    %221 = vmatpush2.bf16.msra.mxu0 0
    %222 = vmatprep.subr.bf16.mxu0 0
    %223 = vmatpush2.bf16.msra.mxu0 0
    %224 = vmatprep.subr.bf16.mxu0 0
    %225 = vmatpush2.bf16.msra.mxu0 0
    %226 = vmatprep.subr.bf16.mxu0 0
    %227 = vmatpush2.bf16.msra.mxu0 0
    %228 = vmatprep.subr.bf16.mxu0 0
    %229 = vmatpush2.bf16.msra.mxu0 0
    %230 = vmatprep.mubr.bf16.mxu0 0
    %231 = vmatmul.mubr.bf16.gmra.mxu0 %v183
    %v232 = vpop.f32.mrf.mxu0
    %v233 = vadd.f32 0.0, %v232
    %v234 = vpop.f32.mrf.mxu0
    %v235 = vpop.f32.mrf.mxu0
    %v236 = vadd.f32 0.0, %v235
    %v237 = vpop.f32.mrf.mxu0
    %238 = vmatprep.mubr.bf16.mxu0 0
    %239 = vmatmul.mubr.bf16.gmra.mxu0 %v186
    %v240 = vpop.f32.mrf.mxu0
    %v241 = vadd.f32 0.0, %v240
    %v242 = vpop.f32.mrf.mxu0
    %v243 = vpop.f32.mrf.mxu0
    %v244 = vadd.f32 0.0, %v243
    %v245 = vpop.f32.mrf.mxu0
    %246 = vmatprep.mubr.bf16.mxu0 0
    %247 = vmatmul.mubr.bf16.gmra.mxu0 %v189
    %v248 = vpop.f32.mrf.mxu0
    %v249 = vadd.f32 0.0, %v248
    %v250 = vpop.f32.mrf.mxu0
    %v251 = vpop.f32.mrf.mxu0
    %v252 = vadd.f32 0.0, %v251
    %v253 = vpop.f32.mrf.mxu0
    %254 = vmatprep.mubr.bf16.mxu0 0
    %255 = vmatmul.mubr.bf16.gmra.mxu0 %v192
    %v256 = vpop.f32.mrf.mxu0
    %v257 = vadd.f32 0.0, %v256
    %v258 = vpop.f32.mrf.mxu0
    %v259 = vpop.f32.mrf.mxu0
    %v260 = vadd.f32 0.0, %v259
    %v261 = vpop.f32.mrf.mxu0
    %262 = vdwg.mxu0
    %v263 = vld [vmem:[#allocation4] sm:$0xff]
    %v264 = vld [vmem:[#allocation4 + $0x8] sm:$0xff]
    %v265 = vld [vmem:[#allocation4 + $0x10] sm:$0xff]
    %v266 = vld [vmem:[#allocation4 + $0x18] sm:$0xff]
    %v267 = vld [vmem:[#allocation4 + $0x20] sm:$0xff]
    %v268 = vld [vmem:[#allocation4 + $0x28] sm:$0xff]
    %v269 = vld [vmem:[#allocation4 + $0x30] sm:$0xff]
    %v270 = vld [vmem:[#allocation4 + $0x38] sm:$0xff]
    %v271 = vld [vmem:[#allocation4 + $0x40] sm:$0xff]
    %v272 = vld [vmem:[#allocation4 + $0x48] sm:$0xff]
    %v273 = vld [vmem:[#allocation4 + $0x50] sm:$0xff]
    %v274 = vld [vmem:[#allocation4 + $0x58] sm:$0xff]
    %v275 = vld [vmem:[#allocation4 + $0x60] sm:$0xff]
    %v276 = vld [vmem:[#allocation4 + $0x68] sm:$0xff]
    %v277 = vld [vmem:[#allocation4 + $0x70] sm:$0xff]
    %v278 = vld [vmem:[#allocation4 + $0x78] sm:$0xff]
    %v279 = vld [vmem:[#allocation4 + $0x80] sm:$0xff]
    %v280 = vld [vmem:[#allocation4 + $0x88] sm:$0xff]
    %v281 = vld [vmem:[#allocation4 + $0x90] sm:$0xff]
    %v282 = vld [vmem:[#allocation4 + $0x98] sm:$0xff]
    %v283 = vld [vmem:[#allocation4 + $0xa0] sm:$0xff]
    %v284 = vld [vmem:[#allocation4 + $0xa8] sm:$0xff]
    %v285 = vld [vmem:[#allocation4 + $0xb0] sm:$0xff]
    %v286 = vld [vmem:[#allocation4 + $0xb8] sm:$0xff]
    %v287 = vld [vmem:[#allocation4 + $0xc0] sm:$0xff]
    %v288 = vld [vmem:[#allocation4 + $0xc8] sm:$0xff]
    %v289 = vld [vmem:[#allocation4 + $0xd0] sm:$0xff]
    %v290 = vld [vmem:[#allocation4 + $0xd8] sm:$0xff]
    %v291 = vld [vmem:[#allocation4 + $0xe0] sm:$0xff]
    %v292 = vld [vmem:[#allocation4 + $0xe8] sm:$0xff]
    %v293 = vld [vmem:[#allocation4 + $0xf0] sm:$0xff]
    %v294 = vld [vmem:[#allocation4 + $0xf8] sm:$0xff]
    %v295 = vpack.c.bf16 %v236, %v233
    %v296 = vpack.c.bf16 %v244, %v241
    %v297 = vpack.c.bf16 %v252, %v249
    %v298 = vpack.c.bf16 %v260, %v257
    %v299 = vld [vmem:[#allocation2] sm:$0xff]
    %v300 = vld [vmem:[#allocation2 + $0x8] sm:$0xff]
    %v301 = vld [vmem:[#allocation2 + $0x10] sm:$0xff]
    %v302 = vld [vmem:[#allocation2 + $0x18] sm:$0xff]
    %v303 = vld [vmem:[#allocation2 + $0x20] sm:$0xff]
    %v304 = vld [vmem:[#allocation2 + $0x28] sm:$0xff]
    %v305 = vld [vmem:[#allocation2 + $0x30] sm:$0xff]
    %v306 = vld [vmem:[#allocation2 + $0x38] sm:$0xff]
    %v307 = vld [vmem:[#allocation2 + $0x40] sm:$0xff]
    %v308 = vld [vmem:[#allocation2 + $0x48] sm:$0xff]
    %v309 = vld [vmem:[#allocation2 + $0x50] sm:$0xff]
    %v310 = vld [vmem:[#allocation2 + $0x58] sm:$0xff]
    %v311 = vld [vmem:[#allocation2 + $0x60] sm:$0xff]
    %v312 = vld [vmem:[#allocation2 + $0x68] sm:$0xff]
    %v313 = vld [vmem:[#allocation2 + $0x70] sm:$0xff]
    %v314 = vld [vmem:[#allocation2 + $0x78] sm:$0xff]
    %v315 = vld [vmem:[#allocation2 + $0x80] sm:$0xff]
    %v316 = vld [vmem:[#allocation2 + $0x88] sm:$0xff]
    %v317 = vld [vmem:[#allocation2 + $0x90] sm:$0xff]
    %v318 = vld [vmem:[#allocation2 + $0x98] sm:$0xff]
    %v319 = vld [vmem:[#allocation2 + $0xa0] sm:$0xff]
    %v320 = vld [vmem:[#allocation2 + $0xa8] sm:$0xff]
    %v321 = vld [vmem:[#allocation2 + $0xb0] sm:$0xff]
    %v322 = vld [vmem:[#allocation2 + $0xb8] sm:$0xff]
    %v323 = vld [vmem:[#allocation2 + $0xc0] sm:$0xff]
    %v324 = vld [vmem:[#allocation2 + $0xc8] sm:$0xff]
    %v325 = vld [vmem:[#allocation2 + $0xd0] sm:$0xff]
    %v326 = vld [vmem:[#allocation2 + $0xd8] sm:$0xff]
    %v327 = vld [vmem:[#allocation2 + $0xe0] sm:$0xff]
    %v328 = vld [vmem:[#allocation2 + $0xe8] sm:$0xff]
    %v329 = vld [vmem:[#allocation2 + $0xf0] sm:$0xff]
    %v330 = vld [vmem:[#allocation2 + $0xf8] sm:$0xff]
    %v331 = vld [vmem:[%s4] sm:$0xf]
    %v333 = vlaneseq
    %v334 = vshrl.u32 %v333, 7
    %v335 = vsub.s32 0, %v334
    %v336 = vrot.slane %v331, %v335
    %v337 = vlaneseq
    %v338 = vshrl.u32 %v337, 7
    %v339 = vsub.s32 1, %v338
    %v340 = vrot.slane %v331, %v339
    %v341 = vlaneseq
    %v342 = vshrl.u32 %v341, 7
    %v343 = vsub.s32 2, %v342
    %v344 = vrot.slane %v331, %v343
    %v345 = vlaneseq
    %v346 = vshrl.u32 %v345, 7
    %v347 = vsub.s32 3, %v346
    %v348 = vrot.slane %v331, %v347
    %v385 = vunpack.c.l.b16 %v299
    %v386 = vunpack.c.h.b16 %v299
    %v387 = vunpack.c.l.b16 %v300
    %v388 = vunpack.c.h.b16 %v300
    %v389 = vunpack.c.l.b16 %v301
    %v390 = vunpack.c.h.b16 %v301
    %v391 = vunpack.c.l.b16 %v302
    %v392 = vunpack.c.h.b16 %v302
    %v393 = vunpack.c.l.b16 %v303
    %v394 = vunpack.c.h.b16 %v303
    %v395 = vunpack.c.l.b16 %v304
    %v396 = vunpack.c.h.b16 %v304
    %v397 = vunpack.c.l.b16 %v305
    %v398 = vunpack.c.h.b16 %v305
    %v399 = vunpack.c.l.b16 %v306
    %v400 = vunpack.c.h.b16 %v306
    %v401 = vunpack.c.l.b16 %v307
    %v402 = vunpack.c.h.b16 %v307
    %v403 = vunpack.c.l.b16 %v308
    %v404 = vunpack.c.h.b16 %v308
    %v405 = vunpack.c.l.b16 %v309
    %v406 = vunpack.c.h.b16 %v309
    %v407 = vunpack.c.l.b16 %v310
    %v408 = vunpack.c.h.b16 %v310
    %v409 = vunpack.c.l.b16 %v311
    %v410 = vunpack.c.h.b16 %v311
    %v411 = vunpack.c.l.b16 %v312
    %v412 = vunpack.c.h.b16 %v312
    %v413 = vunpack.c.l.b16 %v313
    %v414 = vunpack.c.h.b16 %v313
    %v415 = vunpack.c.l.b16 %v314
    %v416 = vunpack.c.h.b16 %v314
    %v417 = vunpack.c.l.b16 %v315
    %v418 = vunpack.c.h.b16 %v315
    %v419 = vunpack.c.l.b16 %v316
    %v420 = vunpack.c.h.b16 %v316
    %v421 = vunpack.c.l.b16 %v317
    %v422 = vunpack.c.h.b16 %v317
    %v423 = vunpack.c.l.b16 %v318
    %v424 = vunpack.c.h.b16 %v318
    %v425 = vunpack.c.l.b16 %v319
    %v426 = vunpack.c.h.b16 %v319
    %v427 = vunpack.c.l.b16 %v320
    %v428 = vunpack.c.h.b16 %v320
    %v429 = vunpack.c.l.b16 %v321
    %v430 = vunpack.c.h.b16 %v321
    %v431 = vunpack.c.l.b16 %v322
    %v432 = vunpack.c.h.b16 %v322
    %v433 = vunpack.c.l.b16 %v323
    %v434 = vunpack.c.h.b16 %v323
    %v435 = vunpack.c.l.b16 %v324
    %v436 = vunpack.c.h.b16 %v324
    %v437 = vunpack.c.l.b16 %v325
    %v438 = vunpack.c.h.b16 %v325
    %v439 = vunpack.c.l.b16 %v326
    %v440 = vunpack.c.h.b16 %v326
    %v441 = vunpack.c.l.b16 %v327
    %v442 = vunpack.c.h.b16 %v327
    %v443 = vunpack.c.l.b16 %v328
    %v444 = vunpack.c.h.b16 %v328
    %v445 = vunpack.c.l.b16 %v329
    %v446 = vunpack.c.h.b16 %v329
    %v447 = vunpack.c.l.b16 %v330
    %v448 = vunpack.c.h.b16 %v330
    %v449 = vpack.c.b16 %v389, %v385
    %v450 = vpack.c.b16 %v390, %v386
    %v451 = vpack.c.b16 %v391, %v387
    %v452 = vpack.c.b16 %v392, %v388
    %v453 = vpack.c.b16 %v397, %v393
    %v454 = vpack.c.b16 %v398, %v394
    %v455 = vpack.c.b16 %v399, %v395
    %v456 = vpack.c.b16 %v400, %v396
    %v457 = vpack.c.b16 %v405, %v401
    %v458 = vpack.c.b16 %v406, %v402
    %v459 = vpack.c.b16 %v407, %v403
    %v460 = vpack.c.b16 %v408, %v404
    %v461 = vpack.c.b16 %v413, %v409
    %v462 = vpack.c.b16 %v414, %v410
    %v463 = vpack.c.b16 %v415, %v411
    %v464 = vpack.c.b16 %v416, %v412
    %v465 = vpack.c.b16 %v421, %v417
    %v466 = vpack.c.b16 %v422, %v418
    %v467 = vpack.c.b16 %v423, %v419
    %v468 = vpack.c.b16 %v424, %v420
    %v469 = vpack.c.b16 %v429, %v425
    %v470 = vpack.c.b16 %v430, %v426
    %v471 = vpack.c.b16 %v431, %v427
    %v472 = vpack.c.b16 %v432, %v428
    %v473 = vpack.c.b16 %v437, %v433
    %v474 = vpack.c.b16 %v438, %v434
    %v475 = vpack.c.b16 %v439, %v435
    %v476 = vpack.c.b16 %v440, %v436
    %v477 = vpack.c.b16 %v445, %v441
    %v478 = vpack.c.b16 %v446, %v442
    %v479 = vpack.c.b16 %v447, %v443
    %v480 = vpack.c.b16 %v448, %v444
    %513 = vmatprep.subr.bf16.mxu0 %v478
    %514 = vmatpush1.bf16.msra.mxu0 %v477
    %515 = vmatprep.subr.bf16.mxu0 %v474
    %516 = vmatpush1.bf16.msra.mxu0 %v473
    %517 = vmatprep.subr.bf16.mxu0 %v470
    %518 = vmatpush1.bf16.msra.mxu0 %v469
    %519 = vmatprep.subr.bf16.mxu0 %v466
    %520 = vmatpush1.bf16.msra.mxu0 %v465
    %521 = vmatprep.subr.bf16.mxu0 %v462
    %522 = vmatpush1.bf16.msra.mxu0 %v461
    %523 = vmatprep.subr.bf16.mxu0 %v458
    %524 = vmatpush1.bf16.msra.mxu0 %v457
    %525 = vmatprep.subr.bf16.mxu0 %v454
    %526 = vmatpush1.bf16.msra.mxu0 %v453
    %527 = vmatprep.subr.bf16.mxu0 %v450
    %528 = vmatpush1.bf16.msra.mxu0 %v449
    %529 = vmatprep.subr.bf16.mxu0 0
    %530 = vmatpush2.bf16.msra.mxu0 0
    %531 = vmatprep.subr.bf16.mxu0 0
    %532 = vmatpush2.bf16.msra.mxu0 0
    %533 = vmatprep.subr.bf16.mxu0 0
    %534 = vmatpush2.bf16.msra.mxu0 0
    %535 = vmatprep.subr.bf16.mxu0 0
    %536 = vmatpush2.bf16.msra.mxu0 0
    %537 = vmatprep.subr.bf16.mxu0 0
    %538 = vmatpush2.bf16.msra.mxu0 0
    %539 = vmatprep.subr.bf16.mxu0 0
    %540 = vmatpush2.bf16.msra.mxu0 0
    %541 = vmatprep.subr.bf16.mxu0 0
    %542 = vmatpush2.bf16.msra.mxu0 0
    %543 = vmatprep.subr.bf16.mxu0 0
    %544 = vmatpush2.bf16.msra.mxu0 0
    %545 = vmatprep.mubr.bf16.mxu0 0
    %546 = vmatmul.mubr.bf16.gmra.mxu0 %v295
    %v547 = vpop.f32.mrf.mxu0
    %v548 = vadd.f32 %v336, %v547
    %v549 = vpop.f32.mrf.mxu0
    %v550 = vadd.f32 %v340, %v549
    %v551 = vpop.f32.mrf.mxu0
    %v552 = vadd.f32 %v336, %v551
    %v553 = vpop.f32.mrf.mxu0
    %v554 = vadd.f32 %v340, %v553
    %555 = vmatprep.mubr.bf16.mxu0 0
    %556 = vmatmul.mubr.bf16.gmra.mxu0 %v296
    %v557 = vpop.f32.mrf.mxu0
    %v558 = vadd.f32 %v336, %v557
    %v559 = vpop.f32.mrf.mxu0
    %v560 = vadd.f32 %v340, %v559
    %v561 = vpop.f32.mrf.mxu0
    %v562 = vadd.f32 %v336, %v561
    %v563 = vpop.f32.mrf.mxu0
    %v564 = vadd.f32 %v340, %v563
    %565 = vmatprep.mubr.bf16.mxu0 0
    %566 = vmatmul.mubr.bf16.gmra.mxu0 %v297
    %v567 = vpop.f32.mrf.mxu0
    %v568 = vadd.f32 %v336, %v567
    %v569 = vpop.f32.mrf.mxu0
    %v570 = vadd.f32 %v340, %v569
    %v571 = vpop.f32.mrf.mxu0
    %v572 = vadd.f32 %v336, %v571
    %v573 = vpop.f32.mrf.mxu0
    %v574 = vadd.f32 %v340, %v573
    %575 = vmatprep.mubr.bf16.mxu0 0
    %576 = vmatmul.mubr.bf16.gmra.mxu0 %v298
    %v577 = vpop.f32.mrf.mxu0
    %v578 = vadd.f32 %v336, %v577
    %v579 = vpop.f32.mrf.mxu0
    %v580 = vadd.f32 %v340, %v579
    %v581 = vpop.f32.mrf.mxu0
    %v582 = vadd.f32 %v336, %v581
    %v583 = vpop.f32.mrf.mxu0
    %v584 = vadd.f32 %v340, %v583
    %585 = vdwg.mxu0
    %586 = vmatprep.subr.bf16.mxu0 %v480
    %587 = vmatpush1.bf16.msra.mxu0 %v479
    %588 = vmatprep.subr.bf16.mxu0 %v476
    %589 = vmatpush1.bf16.msra.mxu0 %v475
    %590 = vmatprep.subr.bf16.mxu0 %v472
    %591 = vmatpush1.bf16.msra.mxu0 %v471
    %592 = vmatprep.subr.bf16.mxu0 %v468
    %593 = vmatpush1.bf16.msra.mxu0 %v467
    %594 = vmatprep.subr.bf16.mxu0 %v464
    %595 = vmatpush1.bf16.msra.mxu0 %v463
    %596 = vmatprep.subr.bf16.mxu0 %v460
    %597 = vmatpush1.bf16.msra.mxu0 %v459
    %598 = vmatprep.subr.bf16.mxu0 %v456
    %599 = vmatpush1.bf16.msra.mxu0 %v455
    %600 = vmatprep.subr.bf16.mxu0 %v452
    %601 = vmatpush1.bf16.msra.mxu0 %v451
    %602 = vmatprep.subr.bf16.mxu0 0
    %603 = vmatpush2.bf16.msra.mxu0 0
    %604 = vmatprep.subr.bf16.mxu0 0
    %605 = vmatpush2.bf16.msra.mxu0 0
    %606 = vmatprep.subr.bf16.mxu0 0
    %607 = vmatpush2.bf16.msra.mxu0 0
    %608 = vmatprep.subr.bf16.mxu0 0
    %609 = vmatpush2.bf16.msra.mxu0 0
    %610 = vmatprep.subr.bf16.mxu0 0
    %611 = vmatpush2.bf16.msra.mxu0 0
    %612 = vmatprep.subr.bf16.mxu0 0
    %613 = vmatpush2.bf16.msra.mxu0 0
    %614 = vmatprep.subr.bf16.mxu0 0
    %615 = vmatpush2.bf16.msra.mxu0 0
    %616 = vmatprep.subr.bf16.mxu0 0
    %617 = vmatpush2.bf16.msra.mxu0 0
    %618 = vmatprep.mubr.bf16.mxu0 0
    %619 = vmatmul.mubr.bf16.gmra.mxu0 %v295
    %v620 = vpop.f32.mrf.mxu0
    %v621 = vadd.f32 %v344, %v620
    %v622 = vpop.f32.mrf.mxu0
    %v623 = vadd.f32 %v348, %v622
    %v624 = vpop.f32.mrf.mxu0
    %v625 = vadd.f32 %v344, %v624
    %v626 = vpop.f32.mrf.mxu0
    %v627 = vadd.f32 %v348, %v626
    %628 = vmatprep.mubr.bf16.mxu0 0
    %629 = vmatmul.mubr.bf16.gmra.mxu0 %v296
    %v630 = vpop.f32.mrf.mxu0
    %v631 = vadd.f32 %v344, %v630
    %v632 = vpop.f32.mrf.mxu0
    %v633 = vadd.f32 %v348, %v632
    %v634 = vpop.f32.mrf.mxu0
    %v635 = vadd.f32 %v344, %v634
    %v636 = vpop.f32.mrf.mxu0
    %v637 = vadd.f32 %v348, %v636
    %638 = vmatprep.mubr.bf16.mxu0 0
    %639 = vmatmul.mubr.bf16.gmra.mxu0 %v297
    %v640 = vpop.f32.mrf.mxu0
    %v641 = vadd.f32 %v344, %v640
    %v642 = vpop.f32.mrf.mxu0
    %v643 = vadd.f32 %v348, %v642
    %v644 = vpop.f32.mrf.mxu0
    %v645 = vadd.f32 %v344, %v644
    %v646 = vpop.f32.mrf.mxu0
    %v647 = vadd.f32 %v348, %v646
    %648 = vmatprep.mubr.bf16.mxu0 0
    %649 = vmatmul.mubr.bf16.gmra.mxu0 %v298
    %v650 = vpop.f32.mrf.mxu0
    %v651 = vadd.f32 %v344, %v650
    %v652 = vpop.f32.mrf.mxu0
    %v653 = vadd.f32 %v348, %v652
    %v654 = vpop.f32.mrf.mxu0
    %v655 = vadd.f32 %v344, %v654
    %v656 = vpop.f32.mrf.mxu0
    %v657 = vadd.f32 %v348, %v656
    %658 = vdwg.mxu0
    %v691 = vunpack.c.l.b16 %v263
    %v692 = vunpack.c.h.b16 %v263
    %v693 = vunpack.c.l.b16 %v264
    %v694 = vunpack.c.h.b16 %v264
    %v695 = vunpack.c.l.b16 %v265
    %v696 = vunpack.c.h.b16 %v265
    %v697 = vunpack.c.l.b16 %v266
    %v698 = vunpack.c.h.b16 %v266
    %v699 = vunpack.c.l.b16 %v267
    %v700 = vunpack.c.h.b16 %v267
    %v701 = vunpack.c.l.b16 %v268
    %v702 = vunpack.c.h.b16 %v268
    %v703 = vunpack.c.l.b16 %v269
    %v704 = vunpack.c.h.b16 %v269
    %v705 = vunpack.c.l.b16 %v270
    %v706 = vunpack.c.h.b16 %v270
    %v707 = vunpack.c.l.b16 %v271
    %v708 = vunpack.c.h.b16 %v271
    %v709 = vunpack.c.l.b16 %v272
    %v710 = vunpack.c.h.b16 %v272
    %v711 = vunpack.c.l.b16 %v273
    %v712 = vunpack.c.h.b16 %v273
    %v713 = vunpack.c.l.b16 %v274
    %v714 = vunpack.c.h.b16 %v274
    %v715 = vunpack.c.l.b16 %v275
    %v716 = vunpack.c.h.b16 %v275
    %v717 = vunpack.c.l.b16 %v276
    %v718 = vunpack.c.h.b16 %v276
    %v719 = vunpack.c.l.b16 %v277
    %v720 = vunpack.c.h.b16 %v277
    %v721 = vunpack.c.l.b16 %v278
    %v722 = vunpack.c.h.b16 %v278
    %v723 = vunpack.c.l.b16 %v279
    %v724 = vunpack.c.h.b16 %v279
    %v725 = vunpack.c.l.b16 %v280
    %v726 = vunpack.c.h.b16 %v280
    %v727 = vunpack.c.l.b16 %v281
    %v728 = vunpack.c.h.b16 %v281
    %v729 = vunpack.c.l.b16 %v282
    %v730 = vunpack.c.h.b16 %v282
    %v731 = vunpack.c.l.b16 %v283
    %v732 = vunpack.c.h.b16 %v283
    %v733 = vunpack.c.l.b16 %v284
    %v734 = vunpack.c.h.b16 %v284
    %v735 = vunpack.c.l.b16 %v285
    %v736 = vunpack.c.h.b16 %v285
    %v737 = vunpack.c.l.b16 %v286
    %v738 = vunpack.c.h.b16 %v286
    %v739 = vunpack.c.l.b16 %v287
    %v740 = vunpack.c.h.b16 %v287
    %v741 = vunpack.c.l.b16 %v288
    %v742 = vunpack.c.h.b16 %v288
    %v743 = vunpack.c.l.b16 %v289
    %v744 = vunpack.c.h.b16 %v289
    %v745 = vunpack.c.l.b16 %v290
    %v746 = vunpack.c.h.b16 %v290
    %v747 = vunpack.c.l.b16 %v291
    %v748 = vunpack.c.h.b16 %v291
    %v749 = vunpack.c.l.b16 %v292
    %v750 = vunpack.c.h.b16 %v292
    %v751 = vunpack.c.l.b16 %v293
    %v752 = vunpack.c.h.b16 %v293
    %v753 = vunpack.c.l.b16 %v294
    %v754 = vunpack.c.h.b16 %v294
    %v755 = vpack.c.b16 %v695, %v691
    %v756 = vpack.c.b16 %v696, %v692
    %v757 = vpack.c.b16 %v697, %v693
    %v758 = vpack.c.b16 %v698, %v694
    %v759 = vpack.c.b16 %v703, %v699
    %v760 = vpack.c.b16 %v704, %v700
    %v761 = vpack.c.b16 %v705, %v701
    %v762 = vpack.c.b16 %v706, %v702
    %v763 = vpack.c.b16 %v711, %v707
    %v764 = vpack.c.b16 %v712, %v708
    %v765 = vpack.c.b16 %v713, %v709
    %v766 = vpack.c.b16 %v714, %v710
    %v767 = vpack.c.b16 %v719, %v715
    %v768 = vpack.c.b16 %v720, %v716
    %v769 = vpack.c.b16 %v721, %v717
    %v770 = vpack.c.b16 %v722, %v718
    %v771 = vpack.c.b16 %v727, %v723
    %v772 = vpack.c.b16 %v728, %v724
    %v773 = vpack.c.b16 %v729, %v725
    %v774 = vpack.c.b16 %v730, %v726
    %v775 = vpack.c.b16 %v735, %v731
    %v776 = vpack.c.b16 %v736, %v732
    %v777 = vpack.c.b16 %v737, %v733
    %v778 = vpack.c.b16 %v738, %v734
    %v779 = vpack.c.b16 %v743, %v739
    %v780 = vpack.c.b16 %v744, %v740
    %v781 = vpack.c.b16 %v745, %v741
    %v782 = vpack.c.b16 %v746, %v742
    %v783 = vpack.c.b16 %v751, %v747
    %v784 = vpack.c.b16 %v752, %v748
    %v785 = vpack.c.b16 %v753, %v749
    %v786 = vpack.c.b16 %v754, %v750
    %819 = vmatprep.subr.bf16.mxu0 %v784
    %820 = vmatpush1.bf16.msra.mxu0 %v783
    %821 = vmatprep.subr.bf16.mxu0 %v780
    %822 = vmatpush1.bf16.msra.mxu0 %v779
    %823 = vmatprep.subr.bf16.mxu0 %v776
    %824 = vmatpush1.bf16.msra.mxu0 %v775
    %825 = vmatprep.subr.bf16.mxu0 %v772
    %826 = vmatpush1.bf16.msra.mxu0 %v771
    %827 = vmatprep.subr.bf16.mxu0 %v768
    %828 = vmatpush1.bf16.msra.mxu0 %v767
    %829 = vmatprep.subr.bf16.mxu0 %v764
    %830 = vmatpush1.bf16.msra.mxu0 %v763
    %831 = vmatprep.subr.bf16.mxu0 %v760
    %832 = vmatpush1.bf16.msra.mxu0 %v759
    %833 = vmatprep.subr.bf16.mxu0 %v756
    %834 = vmatpush1.bf16.msra.mxu0 %v755
    %835 = vmatprep.subr.bf16.mxu0 0
    %836 = vmatpush2.bf16.msra.mxu0 0
    %837 = vmatprep.subr.bf16.mxu0 0
    %838 = vmatpush2.bf16.msra.mxu0 0
    %839 = vmatprep.subr.bf16.mxu0 0
    %840 = vmatpush2.bf16.msra.mxu0 0
    %841 = vmatprep.subr.bf16.mxu0 0
    %842 = vmatpush2.bf16.msra.mxu0 0
    %843 = vmatprep.subr.bf16.mxu0 0
    %844 = vmatpush2.bf16.msra.mxu0 0
    %845 = vmatprep.subr.bf16.mxu0 0
    %846 = vmatpush2.bf16.msra.mxu0 0
    %847 = vmatprep.subr.bf16.mxu0 0
    %848 = vmatpush2.bf16.msra.mxu0 0
    %849 = vmatprep.subr.bf16.mxu0 0
    %850 = vmatpush2.bf16.msra.mxu0 0
    %851 = vmatprep.mubr.bf16.mxu0 0
    %852 = vmatmul.mubr.bf16.gmra.mxu0 0
    %v853 = vpop.f32.mrf.mxu0
    %v854 = vadd.f32 0.0, %v853
    %v855 = vpop.f32.mrf.mxu0
    %v856 = vadd.f32 0.0, %v855
    %v857 = vpop.f32.mrf.mxu0
    %v858 = vpop.f32.mrf.mxu0
    %859 = vdwg.mxu0
    %860 = vmatprep.subr.bf16.mxu0 %v786
    %861 = vmatpush1.bf16.msra.mxu0 %v785
    %862 = vmatprep.subr.bf16.mxu0 %v782
    %863 = vmatpush1.bf16.msra.mxu0 %v781
    %864 = vmatprep.subr.bf16.mxu0 %v778
    %865 = vmatpush1.bf16.msra.mxu0 %v777
    %866 = vmatprep.subr.bf16.mxu0 %v774
    %867 = vmatpush1.bf16.msra.mxu0 %v773
    %868 = vmatprep.subr.bf16.mxu0 %v770
    %869 = vmatpush1.bf16.msra.mxu0 %v769
    %870 = vmatprep.subr.bf16.mxu0 %v766
    %871 = vmatpush1.bf16.msra.mxu0 %v765
    %872 = vmatprep.subr.bf16.mxu0 %v762
    %873 = vmatpush1.bf16.msra.mxu0 %v761
    %874 = vmatprep.subr.bf16.mxu0 %v758
    %875 = vmatpush1.bf16.msra.mxu0 %v757
    %876 = vmatprep.subr.bf16.mxu0 0
    %877 = vmatpush2.bf16.msra.mxu0 0
    %878 = vmatprep.subr.bf16.mxu0 0
    %879 = vmatpush2.bf16.msra.mxu0 0
    %880 = vmatprep.subr.bf16.mxu0 0
    %881 = vmatpush2.bf16.msra.mxu0 0
    %882 = vmatprep.subr.bf16.mxu0 0
    %883 = vmatpush2.bf16.msra.mxu0 0
    %884 = vmatprep.subr.bf16.mxu0 0
    %885 = vmatpush2.bf16.msra.mxu0 0
    %886 = vmatprep.subr.bf16.mxu0 0
    %887 = vmatpush2.bf16.msra.mxu0 0
    %888 = vmatprep.subr.bf16.mxu0 0
    %889 = vmatpush2.bf16.msra.mxu0 0
    %890 = vmatprep.subr.bf16.mxu0 0
    %891 = vmatpush2.bf16.msra.mxu0 0
    %892 = vmatprep.mubr.bf16.mxu0 0
    %893 = vmatmul.mubr.bf16.gmra.mxu0 0
    %v894 = vpop.f32.mrf.mxu0
    %v895 = vadd.f32 0.0, %v894
    %v896 = vpop.f32.mrf.mxu0
    %v897 = vadd.f32 0.0, %v896
    %v898 = vpop.f32.mrf.mxu0
    %v899 = vpop.f32.mrf.mxu0
    %900 = vdwg.mxu0
    %v901 = vadd.f32 %v548, %v854
    %v902 = vadd.f32 %v550, %v856
    %v903 = vadd.f32 %v621, %v895
    %v904 = vadd.f32 %v623, %v897
    %v905 = vxor.u32 %v901, 2147483648
    %v906 = vmul.f32 %v905, 1.442695
    %v907 = vpow.pop %v906
    %v908 = vadd.f32 %v907, 1.0
    %v909 = vrcp.pop %v908
    %v910 = vmul.f32 1.0, %v909
    %v911 = vxor.u32 %v902, 2147483648
    %v912 = vmul.f32 %v911, 1.442695
    %v913 = vpow.pop %v912
    %v914 = vadd.f32 %v913, 1.0
    %v915 = vrcp.pop %v914
    %v916 = vmul.f32 1.0, %v915
    %v917 = vtanh.pop %v903
    %v918 = vxor.u32 %v904, 2147483648
    %v919 = vmul.f32 %v918, 1.442695
    %v920 = vpow.pop %v919
    %v921 = vadd.f32 %v920, 1.0
    %v922 = vrcp.pop %v921
    %v923 = vmul.f32 1.0, %v922
    %v924 = vmul.f32 %v916, 0.0
    %v925 = vmul.f32 %v910, %v917
    %v926 = vadd.f32 %v924, %v925
    %v927 = vtanh.pop %v926
    %v928 = vmul.f32 %v923, %v927
    %v929 = vpack.c.bf16 %v928, %v928
    %930 = vmatprep.subr.bf16.mxu0 %v784
    %931 = vmatpush1.bf16.msra.mxu0 %v783
    %932 = vmatprep.subr.bf16.mxu0 %v780
    %933 = vmatpush1.bf16.msra.mxu0 %v779
    %934 = vmatprep.subr.bf16.mxu0 %v776
    %935 = vmatpush1.bf16.msra.mxu0 %v775
    %936 = vmatprep.subr.bf16.mxu0 %v772
    %937 = vmatpush1.bf16.msra.mxu0 %v771
    %938 = vmatprep.subr.bf16.mxu0 %v768
    %939 = vmatpush1.bf16.msra.mxu0 %v767
    %940 = vmatprep.subr.bf16.mxu0 %v764
    %941 = vmatpush1.bf16.msra.mxu0 %v763
    %942 = vmatprep.subr.bf16.mxu0 %v760
    %943 = vmatpush1.bf16.msra.mxu0 %v759
    %944 = vmatprep.subr.bf16.mxu0 %v756
    %945 = vmatpush1.bf16.msra.mxu0 %v755
    %946 = vmatprep.subr.bf16.mxu0 0
    %947 = vmatpush2.bf16.msra.mxu0 0
    %948 = vmatprep.subr.bf16.mxu0 0
    %949 = vmatpush2.bf16.msra.mxu0 0
    %950 = vmatprep.subr.bf16.mxu0 0
    %951 = vmatpush2.bf16.msra.mxu0 0
    %952 = vmatprep.subr.bf16.mxu0 0
    %953 = vmatpush2.bf16.msra.mxu0 0
    %954 = vmatprep.subr.bf16.mxu0 0
    %955 = vmatpush2.bf16.msra.mxu0 0
    %956 = vmatprep.subr.bf16.mxu0 0
    %957 = vmatpush2.bf16.msra.mxu0 0
    %958 = vmatprep.subr.bf16.mxu0 0
    %959 = vmatpush2.bf16.msra.mxu0 0
    %960 = vmatprep.subr.bf16.mxu0 0
    %961 = vmatpush2.bf16.msra.mxu0 0
    %962 = vmatprep.mubr.bf16.mxu0 0
    %963 = vmatmul.mubr.bf16.gmra.mxu0 %v929
    %v964 = vpop.f32.mrf.mxu0
    %v965 = vadd.f32 0.0, %v964
    %v966 = vpop.f32.mrf.mxu0
    %v967 = vadd.f32 0.0, %v966
    %v968 = vpop.f32.mrf.mxu0
    %v969 = vpop.f32.mrf.mxu0
    %970 = vdwg.mxu0
    %971 = vmatprep.subr.bf16.mxu0 %v786
    %972 = vmatpush1.bf16.msra.mxu0 %v785
    %973 = vmatprep.subr.bf16.mxu0 %v782
    %974 = vmatpush1.bf16.msra.mxu0 %v781
    %975 = vmatprep.subr.bf16.mxu0 %v778
    %976 = vmatpush1.bf16.msra.mxu0 %v777
    %977 = vmatprep.subr.bf16.mxu0 %v774
    %978 = vmatpush1.bf16.msra.mxu0 %v773
    %979 = vmatprep.subr.bf16.mxu0 %v770
    %980 = vmatpush1.bf16.msra.mxu0 %v769
    %981 = vmatprep.subr.bf16.mxu0 %v766
    %982 = vmatpush1.bf16.msra.mxu0 %v765
    %983 = vmatprep.subr.bf16.mxu0 %v762
    %984 = vmatpush1.bf16.msra.mxu0 %v761
    %985 = vmatprep.subr.bf16.mxu0 %v758
    %986 = vmatpush1.bf16.msra.mxu0 %v757
    %987 = vmatprep.subr.bf16.mxu0 0
    %988 = vmatpush2.bf16.msra.mxu0 0
    %989 = vmatprep.subr.bf16.mxu0 0
    %990 = vmatpush2.bf16.msra.mxu0 0
    %991 = vmatprep.subr.bf16.mxu0 0
    %992 = vmatpush2.bf16.msra.mxu0 0
    %993 = vmatprep.subr.bf16.mxu0 0
    %994 = vmatpush2.bf16.msra.mxu0 0
    %995 = vmatprep.subr.bf16.mxu0 0
    %996 = vmatpush2.bf16.msra.mxu0 0
    %997 = vmatprep.subr.bf16.mxu0 0
    %998 = vmatpush2.bf16.msra.mxu0 0
    %999 = vmatprep.subr.bf16.mxu0 0
    %1000 = vmatpush2.bf16.msra.mxu0 0
    %1001 = vmatprep.subr.bf16.mxu0 0
    %1002 = vmatpush2.bf16.msra.mxu0 0
    %1003 = vmatprep.mubr.bf16.mxu0 0
    %1004 = vmatmul.mubr.bf16.gmra.mxu0 %v929
    %v1005 = vpop.f32.mrf.mxu0
    %v1006 = vadd.f32 0.0, %v1005
    %v1007 = vpop.f32.mrf.mxu0
    %v1008 = vadd.f32 0.0, %v1007
    %v1009 = vpop.f32.mrf.mxu0
    %v1010 = vpop.f32.mrf.mxu0
    %1011 = vdwg.mxu0
    %v1012 = vadd.f32 %v552, %v965
    %v1013 = vadd.f32 %v554, %v967
    %v1014 = vadd.f32 %v625, %v1006
    %v1015 = vadd.f32 %v627, %v1008
    %v1016 = vxor.u32 %v1012, 2147483648
    %v1017 = vmul.f32 %v1016, 1.442695
    %v1018 = vpow.pop %v1017
    %v1019 = vadd.f32 %v1018, 1.0
    %v1020 = vrcp.pop %v1019
    %v1021 = vmul.f32 1.0, %v1020
    %v1022 = vxor.u32 %v1013, 2147483648
    %v1023 = vmul.f32 %v1022, 1.442695
    %v1024 = vpow.pop %v1023
    %v1025 = vadd.f32 %v1024, 1.0
    %v1026 = vrcp.pop %v1025
    %v1027 = vmul.f32 1.0, %v1026
    %v1028 = vtanh.pop %v1014
    %v1029 = vxor.u32 %v1015, 2147483648
    %v1030 = vmul.f32 %v1029, 1.442695
    %v1031 = vpow.pop %v1030
    %v1032 = vadd.f32 %v1031, 1.0
    %v1033 = vrcp.pop %v1032
    %v1034 = vmul.f32 1.0, %v1033
    %v1035 = vmul.f32 %v1027, %v926
    %v1036 = vmul.f32 %v1021, %v1028
    %v1037 = vadd.f32 %v1035, %v1036
    %v1038 = vtanh.pop %v1037
    %v1039 = vmul.f32 %v1034, %v1038
    %v1040 = vpack.c.bf16 %v1039, %v1039
    %1041 = vmatprep.subr.bf16.mxu0 %v784
    %1042 = vmatpush1.bf16.msra.mxu0 %v783
    %1043 = vmatprep.subr.bf16.mxu0 %v780
    %1044 = vmatpush1.bf16.msra.mxu0 %v779
    %1045 = vmatprep.subr.bf16.mxu0 %v776
    %1046 = vmatpush1.bf16.msra.mxu0 %v775
    %1047 = vmatprep.subr.bf16.mxu0 %v772
    %1048 = vmatpush1.bf16.msra.mxu0 %v771
    %1049 = vmatprep.subr.bf16.mxu0 %v768
    %1050 = vmatpush1.bf16.msra.mxu0 %v767
    %1051 = vmatprep.subr.bf16.mxu0 %v764
    %1052 = vmatpush1.bf16.msra.mxu0 %v763
    %1053 = vmatprep.subr.bf16.mxu0 %v760
    %1054 = vmatpush1.bf16.msra.mxu0 %v759
    %1055 = vmatprep.subr.bf16.mxu0 %v756
    %1056 = vmatpush1.bf16.msra.mxu0 %v755
    %1057 = vmatprep.subr.bf16.mxu0 0
    %1058 = vmatpush2.bf16.msra.mxu0 0
    %1059 = vmatprep.subr.bf16.mxu0 0
    %1060 = vmatpush2.bf16.msra.mxu0 0
    %1061 = vmatprep.subr.bf16.mxu0 0
    %1062 = vmatpush2.bf16.msra.mxu0 0
    %1063 = vmatprep.subr.bf16.mxu0 0
    %1064 = vmatpush2.bf16.msra.mxu0 0
    %1065 = vmatprep.subr.bf16.mxu0 0
    %1066 = vmatpush2.bf16.msra.mxu0 0
    %1067 = vmatprep.subr.bf16.mxu0 0
    %1068 = vmatpush2.bf16.msra.mxu0 0
    %1069 = vmatprep.subr.bf16.mxu0 0
    %1070 = vmatpush2.bf16.msra.mxu0 0
    %1071 = vmatprep.subr.bf16.mxu0 0
    %1072 = vmatpush2.bf16.msra.mxu0 0
    %1073 = vmatprep.mubr.bf16.mxu0 0
    %1074 = vmatmul.mubr.bf16.gmra.mxu0 %v1040
    %v1075 = vpop.f32.mrf.mxu0
    %v1076 = vadd.f32 0.0, %v1075
    %v1077 = vpop.f32.mrf.mxu0
    %v1078 = vadd.f32 0.0, %v1077
    %v1079 = vpop.f32.mrf.mxu0
    %v1080 = vpop.f32.mrf.mxu0
    %1081 = vdwg.mxu0
    %1082 = vmatprep.subr.bf16.mxu0 %v786
    %1083 = vmatpush1.bf16.msra.mxu0 %v785
    %1084 = vmatprep.subr.bf16.mxu0 %v782
    %1085 = vmatpush1.bf16.msra.mxu0 %v781
    %1086 = vmatprep.subr.bf16.mxu0 %v778
    %1087 = vmatpush1.bf16.msra.mxu0 %v777
    %1088 = vmatprep.subr.bf16.mxu0 %v774
    %1089 = vmatpush1.bf16.msra.mxu0 %v773
    %1090 = vmatprep.subr.bf16.mxu0 %v770
    %1091 = vmatpush1.bf16.msra.mxu0 %v769
    %1092 = vmatprep.subr.bf16.mxu0 %v766
    %1093 = vmatpush1.bf16.msra.mxu0 %v765
    %1094 = vmatprep.subr.bf16.mxu0 %v762
    %1095 = vmatpush1.bf16.msra.mxu0 %v761
    %1096 = vmatprep.subr.bf16.mxu0 %v758
    %1097 = vmatpush1.bf16.msra.mxu0 %v757
    %1098 = vmatprep.subr.bf16.mxu0 0
    %1099 = vmatpush2.bf16.msra.mxu0 0
    %1100 = vmatprep.subr.bf16.mxu0 0
    %1101 = vmatpush2.bf16.msra.mxu0 0
    %1102 = vmatprep.subr.bf16.mxu0 0
    %1103 = vmatpush2.bf16.msra.mxu0 0
    %1104 = vmatprep.subr.bf16.mxu0 0
    %1105 = vmatpush2.bf16.msra.mxu0 0
    %1106 = vmatprep.subr.bf16.mxu0 0
    %1107 = vmatpush2.bf16.msra.mxu0 0
    %1108 = vmatprep.subr.bf16.mxu0 0
    %1109 = vmatpush2.bf16.msra.mxu0 0
    %1110 = vmatprep.subr.bf16.mxu0 0
    %1111 = vmatpush2.bf16.msra.mxu0 0
    %1112 = vmatprep.subr.bf16.mxu0 0
    %1113 = vmatpush2.bf16.msra.mxu0 0
    %1114 = vmatprep.mubr.bf16.mxu0 0
    %1115 = vmatmul.mubr.bf16.gmra.mxu0 %v1040
    %v1116 = vpop.f32.mrf.mxu0
    %v1117 = vadd.f32 0.0, %v1116
    %v1118 = vpop.f32.mrf.mxu0
    %v1119 = vadd.f32 0.0, %v1118
    %v1120 = vpop.f32.mrf.mxu0
    %v1121 = vpop.f32.mrf.mxu0
    %1122 = vdwg.mxu0
    %v1123 = vadd.f32 %v558, %v1076
    %v1124 = vadd.f32 %v560, %v1078
    %v1125 = vadd.f32 %v631, %v1117
    %v1126 = vadd.f32 %v633, %v1119
    %v1127 = vxor.u32 %v1123, 2147483648
    %v1128 = vmul.f32 %v1127, 1.442695
    %v1129 = vpow.pop %v1128
    %v1130 = vadd.f32 %v1129, 1.0
    %v1131 = vrcp.pop %v1130
    %v1132 = vmul.f32 1.0, %v1131
    %v1133 = vxor.u32 %v1124, 2147483648
    %v1134 = vmul.f32 %v1133, 1.442695
    %v1135 = vpow.pop %v1134
    %v1136 = vadd.f32 %v1135, 1.0
    %v1137 = vrcp.pop %v1136
    %v1138 = vmul.f32 1.0, %v1137
    %v1139 = vtanh.pop %v1125
    %v1140 = vxor.u32 %v1126, 2147483648
    %v1141 = vmul.f32 %v1140, 1.442695
    %v1142 = vpow.pop %v1141
    %v1143 = vadd.f32 %v1142, 1.0
    %v1144 = vrcp.pop %v1143
    %v1145 = vmul.f32 1.0, %v1144
    %v1146 = vmul.f32 %v1138, %v1037
    %v1147 = vmul.f32 %v1132, %v1139
    %v1148 = vadd.f32 %v1146, %v1147
    %v1149 = vtanh.pop %v1148
    %v1150 = vmul.f32 %v1145, %v1149
    %v1151 = vpack.c.bf16 %v1150, %v1150
    %1152 = vmatprep.subr.bf16.mxu0 %v784
    %1153 = vmatpush1.bf16.msra.mxu0 %v783
    %1154 = vmatprep.subr.bf16.mxu0 %v780
    %1155 = vmatpush1.bf16.msra.mxu0 %v779
    %1156 = vmatprep.subr.bf16.mxu0 %v776
    %1157 = vmatpush1.bf16.msra.mxu0 %v775
    %1158 = vmatprep.subr.bf16.mxu0 %v772
    %1159 = vmatpush1.bf16.msra.mxu0 %v771
    %1160 = vmatprep.subr.bf16.mxu0 %v768
    %1161 = vmatpush1.bf16.msra.mxu0 %v767
    %1162 = vmatprep.subr.bf16.mxu0 %v764
    %1163 = vmatpush1.bf16.msra.mxu0 %v763
    %1164 = vmatprep.subr.bf16.mxu0 %v760
    %1165 = vmatpush1.bf16.msra.mxu0 %v759
    %1166 = vmatprep.subr.bf16.mxu0 %v756
    %1167 = vmatpush1.bf16.msra.mxu0 %v755
    %1168 = vmatprep.subr.bf16.mxu0 0
    %1169 = vmatpush2.bf16.msra.mxu0 0
    %1170 = vmatprep.subr.bf16.mxu0 0
    %1171 = vmatpush2.bf16.msra.mxu0 0
    %1172 = vmatprep.subr.bf16.mxu0 0
    %1173 = vmatpush2.bf16.msra.mxu0 0
    %1174 = vmatprep.subr.bf16.mxu0 0
    %1175 = vmatpush2.bf16.msra.mxu0 0
    %1176 = vmatprep.subr.bf16.mxu0 0
    %1177 = vmatpush2.bf16.msra.mxu0 0
    %1178 = vmatprep.subr.bf16.mxu0 0
    %1179 = vmatpush2.bf16.msra.mxu0 0
    %1180 = vmatprep.subr.bf16.mxu0 0
    %1181 = vmatpush2.bf16.msra.mxu0 0
    %1182 = vmatprep.subr.bf16.mxu0 0
    %1183 = vmatpush2.bf16.msra.mxu0 0
    %1184 = vmatprep.mubr.bf16.mxu0 0
    %1185 = vmatmul.mubr.bf16.gmra.mxu0 %v1151
    %v1186 = vpop.f32.mrf.mxu0
    %v1187 = vadd.f32 0.0, %v1186
    %v1188 = vpop.f32.mrf.mxu0
    %v1189 = vadd.f32 0.0, %v1188
    %v1190 = vpop.f32.mrf.mxu0
    %v1191 = vpop.f32.mrf.mxu0
    %1192 = vdwg.mxu0
    %1193 = vmatprep.subr.bf16.mxu0 %v786
    %1194 = vmatpush1.bf16.msra.mxu0 %v785
    %1195 = vmatprep.subr.bf16.mxu0 %v782
    %1196 = vmatpush1.bf16.msra.mxu0 %v781
    %1197 = vmatprep.subr.bf16.mxu0 %v778
    %1198 = vmatpush1.bf16.msra.mxu0 %v777
    %1199 = vmatprep.subr.bf16.mxu0 %v774
    %1200 = vmatpush1.bf16.msra.mxu0 %v773
    %1201 = vmatprep.subr.bf16.mxu0 %v770
    %1202 = vmatpush1.bf16.msra.mxu0 %v769
    %1203 = vmatprep.subr.bf16.mxu0 %v766
    %1204 = vmatpush1.bf16.msra.mxu0 %v765
    %1205 = vmatprep.subr.bf16.mxu0 %v762
    %1206 = vmatpush1.bf16.msra.mxu0 %v761
    %1207 = vmatprep.subr.bf16.mxu0 %v758
    %1208 = vmatpush1.bf16.msra.mxu0 %v757
    %1209 = vmatprep.subr.bf16.mxu0 0
    %1210 = vmatpush2.bf16.msra.mxu0 0
    %1211 = vmatprep.subr.bf16.mxu0 0
    %1212 = vmatpush2.bf16.msra.mxu0 0
    %1213 = vmatprep.subr.bf16.mxu0 0
    %1214 = vmatpush2.bf16.msra.mxu0 0
    %1215 = vmatprep.subr.bf16.mxu0 0
    %1216 = vmatpush2.bf16.msra.mxu0 0
    %1217 = vmatprep.subr.bf16.mxu0 0
    %1218 = vmatpush2.bf16.msra.mxu0 0
    %1219 = vmatprep.subr.bf16.mxu0 0
    %1220 = vmatpush2.bf16.msra.mxu0 0
    %1221 = vmatprep.subr.bf16.mxu0 0
    %1222 = vmatpush2.bf16.msra.mxu0 0
    %1223 = vmatprep.subr.bf16.mxu0 0
    %1224 = vmatpush2.bf16.msra.mxu0 0
    %1225 = vmatprep.mubr.bf16.mxu0 0
    %1226 = vmatmul.mubr.bf16.gmra.mxu0 %v1151
    %v1227 = vpop.f32.mrf.mxu0
    %v1228 = vadd.f32 0.0, %v1227
    %v1229 = vpop.f32.mrf.mxu0
    %v1230 = vadd.f32 0.0, %v1229
    %v1231 = vpop.f32.mrf.mxu0
    %v1232 = vpop.f32.mrf.mxu0
    %1233 = vdwg.mxu0
    %v1234 = vadd.f32 %v562, %v1187
    %v1235 = vadd.f32 %v564, %v1189
    %v1236 = vadd.f32 %v635, %v1228
    %v1237 = vadd.f32 %v637, %v1230
    %v1238 = vxor.u32 %v1234, 2147483648
    %v1239 = vmul.f32 %v1238, 1.442695
    %v1240 = vpow.pop %v1239
    %v1241 = vadd.f32 %v1240, 1.0
    %v1242 = vrcp.pop %v1241
    %v1243 = vmul.f32 1.0, %v1242
    %v1244 = vxor.u32 %v1235, 2147483648
    %v1245 = vmul.f32 %v1244, 1.442695
    %v1246 = vpow.pop %v1245
    %v1247 = vadd.f32 %v1246, 1.0
    %v1248 = vrcp.pop %v1247
    %v1249 = vmul.f32 1.0, %v1248
    %v1250 = vtanh.pop %v1236
    %v1251 = vxor.u32 %v1237, 2147483648
    %v1252 = vmul.f32 %v1251, 1.442695
    %v1253 = vpow.pop %v1252
    %v1254 = vadd.f32 %v1253, 1.0
    %v1255 = vrcp.pop %v1254
    %v1256 = vmul.f32 1.0, %v1255
    %v1257 = vmul.f32 %v1249, %v1148
    %v1258 = vmul.f32 %v1243, %v1250
    %v1259 = vadd.f32 %v1257, %v1258
    %v1260 = vtanh.pop %v1259
    %v1261 = vmul.f32 %v1256, %v1260
    %v1262 = vpack.c.bf16 %v1261, %v1261
    %1263 = vmatprep.subr.bf16.mxu0 %v784
    %1264 = vmatpush1.bf16.msra.mxu0 %v783
    %1265 = vmatprep.subr.bf16.mxu0 %v780
    %1266 = vmatpush1.bf16.msra.mxu0 %v779
    %1267 = vmatprep.subr.bf16.mxu0 %v776
    %1268 = vmatpush1.bf16.msra.mxu0 %v775
    %1269 = vmatprep.subr.bf16.mxu0 %v772
    %1270 = vmatpush1.bf16.msra.mxu0 %v771
    %1271 = vmatprep.subr.bf16.mxu0 %v768
    %1272 = vmatpush1.bf16.msra.mxu0 %v767
    %1273 = vmatprep.subr.bf16.mxu0 %v764
    %1274 = vmatpush1.bf16.msra.mxu0 %v763
    %1275 = vmatprep.subr.bf16.mxu0 %v760
    %1276 = vmatpush1.bf16.msra.mxu0 %v759
    %1277 = vmatprep.subr.bf16.mxu0 %v756
    %1278 = vmatpush1.bf16.msra.mxu0 %v755
    %1279 = vmatprep.subr.bf16.mxu0 0
    %1280 = vmatpush2.bf16.msra.mxu0 0
    %1281 = vmatprep.subr.bf16.mxu0 0
    %1282 = vmatpush2.bf16.msra.mxu0 0
    %1283 = vmatprep.subr.bf16.mxu0 0
    %1284 = vmatpush2.bf16.msra.mxu0 0
    %1285 = vmatprep.subr.bf16.mxu0 0
    %1286 = vmatpush2.bf16.msra.mxu0 0
    %1287 = vmatprep.subr.bf16.mxu0 0
    %1288 = vmatpush2.bf16.msra.mxu0 0
    %1289 = vmatprep.subr.bf16.mxu0 0
    %1290 = vmatpush2.bf16.msra.mxu0 0
    %1291 = vmatprep.subr.bf16.mxu0 0
    %1292 = vmatpush2.bf16.msra.mxu0 0
    %1293 = vmatprep.subr.bf16.mxu0 0
    %1294 = vmatpush2.bf16.msra.mxu0 0
    %1295 = vmatprep.mubr.bf16.mxu0 0
    %1296 = vmatmul.mubr.bf16.gmra.mxu0 %v1262
    %v1297 = vpop.f32.mrf.mxu0
    %v1298 = vadd.f32 0.0, %v1297
    %v1299 = vpop.f32.mrf.mxu0
    %v1300 = vadd.f32 0.0, %v1299
    %v1301 = vpop.f32.mrf.mxu0
    %v1302 = vpop.f32.mrf.mxu0
    %1303 = vdwg.mxu0
    %1304 = vmatprep.subr.bf16.mxu0 %v786
    %1305 = vmatpush1.bf16.msra.mxu0 %v785
    %1306 = vmatprep.subr.bf16.mxu0 %v782
    %1307 = vmatpush1.bf16.msra.mxu0 %v781
    %1308 = vmatprep.subr.bf16.mxu0 %v778
    %1309 = vmatpush1.bf16.msra.mxu0 %v777
    %1310 = vmatprep.subr.bf16.mxu0 %v774
    %1311 = vmatpush1.bf16.msra.mxu0 %v773
    %1312 = vmatprep.subr.bf16.mxu0 %v770
    %1313 = vmatpush1.bf16.msra.mxu0 %v769
    %1314 = vmatprep.subr.bf16.mxu0 %v766
    %1315 = vmatpush1.bf16.msra.mxu0 %v765
    %1316 = vmatprep.subr.bf16.mxu0 %v762
    %1317 = vmatpush1.bf16.msra.mxu0 %v761
    %1318 = vmatprep.subr.bf16.mxu0 %v758
    %1319 = vmatpush1.bf16.msra.mxu0 %v757
    %1320 = vmatprep.subr.bf16.mxu0 0
    %1321 = vmatpush2.bf16.msra.mxu0 0
    %1322 = vmatprep.subr.bf16.mxu0 0
    %1323 = vmatpush2.bf16.msra.mxu0 0
    %1324 = vmatprep.subr.bf16.mxu0 0
    %1325 = vmatpush2.bf16.msra.mxu0 0
    %1326 = vmatprep.subr.bf16.mxu0 0
    %1327 = vmatpush2.bf16.msra.mxu0 0
    %1328 = vmatprep.subr.bf16.mxu0 0
    %1329 = vmatpush2.bf16.msra.mxu0 0
    %1330 = vmatprep.subr.bf16.mxu0 0
    %1331 = vmatpush2.bf16.msra.mxu0 0
    %1332 = vmatprep.subr.bf16.mxu0 0
    %1333 = vmatpush2.bf16.msra.mxu0 0
    %1334 = vmatprep.subr.bf16.mxu0 0
    %1335 = vmatpush2.bf16.msra.mxu0 0
    %1336 = vmatprep.mubr.bf16.mxu0 0
    %1337 = vmatmul.mubr.bf16.gmra.mxu0 %v1262
    %v1338 = vpop.f32.mrf.mxu0
    %v1339 = vadd.f32 0.0, %v1338
    %v1340 = vpop.f32.mrf.mxu0
    %v1341 = vadd.f32 0.0, %v1340
    %v1342 = vpop.f32.mrf.mxu0
    %v1343 = vpop.f32.mrf.mxu0
    %1344 = vdwg.mxu0
    %v1345 = vadd.f32 %v568, %v1298
    %v1346 = vadd.f32 %v570, %v1300
    %v1347 = vadd.f32 %v641, %v1339
    %v1348 = vadd.f32 %v643, %v1341
    %v1349 = vxor.u32 %v1345, 2147483648
    %v1350 = vmul.f32 %v1349, 1.442695
    %v1351 = vpow.pop %v1350
    %v1352 = vadd.f32 %v1351, 1.0
    %v1353 = vrcp.pop %v1352
    %v1354 = vmul.f32 1.0, %v1353
    %v1355 = vxor.u32 %v1346, 2147483648
    %v1356 = vmul.f32 %v1355, 1.442695
    %v1357 = vpow.pop %v1356
    %v1358 = vadd.f32 %v1357, 1.0
    %v1359 = vrcp.pop %v1358
    %v1360 = vmul.f32 1.0, %v1359
    %v1361 = vtanh.pop %v1347
    %v1362 = vxor.u32 %v1348, 2147483648
    %v1363 = vmul.f32 %v1362, 1.442695
    %v1364 = vpow.pop %v1363
    %v1365 = vadd.f32 %v1364, 1.0
    %v1366 = vrcp.pop %v1365
    %v1367 = vmul.f32 1.0, %v1366
    %v1368 = vmul.f32 %v1360, %v1259
    %v1369 = vmul.f32 %v1354, %v1361
    %v1370 = vadd.f32 %v1368, %v1369
    %v1371 = vtanh.pop %v1370
    %v1372 = vmul.f32 %v1367, %v1371
    %v1373 = vpack.c.bf16 %v1372, %v1372
    %1374 = vmatprep.subr.bf16.mxu0 %v784
    %1375 = vmatpush1.bf16.msra.mxu0 %v783
    %1376 = vmatprep.subr.bf16.mxu0 %v780
    %1377 = vmatpush1.bf16.msra.mxu0 %v779
    %1378 = vmatprep.subr.bf16.mxu0 %v776
    %1379 = vmatpush1.bf16.msra.mxu0 %v775
    %1380 = vmatprep.subr.bf16.mxu0 %v772
    %1381 = vmatpush1.bf16.msra.mxu0 %v771
    %1382 = vmatprep.subr.bf16.mxu0 %v768
    %1383 = vmatpush1.bf16.msra.mxu0 %v767
    %1384 = vmatprep.subr.bf16.mxu0 %v764
    %1385 = vmatpush1.bf16.msra.mxu0 %v763
    %1386 = vmatprep.subr.bf16.mxu0 %v760
    %1387 = vmatpush1.bf16.msra.mxu0 %v759
    %1388 = vmatprep.subr.bf16.mxu0 %v756
    %1389 = vmatpush1.bf16.msra.mxu0 %v755
    %1390 = vmatprep.subr.bf16.mxu0 0
    %1391 = vmatpush2.bf16.msra.mxu0 0
    %1392 = vmatprep.subr.bf16.mxu0 0
    %1393 = vmatpush2.bf16.msra.mxu0 0
    %1394 = vmatprep.subr.bf16.mxu0 0
    %1395 = vmatpush2.bf16.msra.mxu0 0
    %1396 = vmatprep.subr.bf16.mxu0 0
    %1397 = vmatpush2.bf16.msra.mxu0 0
    %1398 = vmatprep.subr.bf16.mxu0 0
    %1399 = vmatpush2.bf16.msra.mxu0 0
    %1400 = vmatprep.subr.bf16.mxu0 0
    %1401 = vmatpush2.bf16.msra.mxu0 0
    %1402 = vmatprep.subr.bf16.mxu0 0
    %1403 = vmatpush2.bf16.msra.mxu0 0
    %1404 = vmatprep.subr.bf16.mxu0 0
    %1405 = vmatpush2.bf16.msra.mxu0 0
    %1406 = vmatprep.mubr.bf16.mxu0 0
    %1407 = vmatmul.mubr.bf16.gmra.mxu0 %v1373
    %v1408 = vpop.f32.mrf.mxu0
    %v1409 = vadd.f32 0.0, %v1408
    %v1410 = vpop.f32.mrf.mxu0
    %v1411 = vadd.f32 0.0, %v1410
    %v1412 = vpop.f32.mrf.mxu0
    %v1413 = vpop.f32.mrf.mxu0
    %1414 = vdwg.mxu0
    %1415 = vmatprep.subr.bf16.mxu0 %v786
    %1416 = vmatpush1.bf16.msra.mxu0 %v785
    %1417 = vmatprep.subr.bf16.mxu0 %v782
    %1418 = vmatpush1.bf16.msra.mxu0 %v781
    %1419 = vmatprep.subr.bf16.mxu0 %v778
    %1420 = vmatpush1.bf16.msra.mxu0 %v777
    %1421 = vmatprep.subr.bf16.mxu0 %v774
    %1422 = vmatpush1.bf16.msra.mxu0 %v773
    %1423 = vmatprep.subr.bf16.mxu0 %v770
    %1424 = vmatpush1.bf16.msra.mxu0 %v769
    %1425 = vmatprep.subr.bf16.mxu0 %v766
    %1426 = vmatpush1.bf16.msra.mxu0 %v765
    %1427 = vmatprep.subr.bf16.mxu0 %v762
    %1428 = vmatpush1.bf16.msra.mxu0 %v761
    %1429 = vmatprep.subr.bf16.mxu0 %v758
    %1430 = vmatpush1.bf16.msra.mxu0 %v757
    %1431 = vmatprep.subr.bf16.mxu0 0
    %1432 = vmatpush2.bf16.msra.mxu0 0
    %1433 = vmatprep.subr.bf16.mxu0 0
    %1434 = vmatpush2.bf16.msra.mxu0 0
    %1435 = vmatprep.subr.bf16.mxu0 0
    %1436 = vmatpush2.bf16.msra.mxu0 0
    %1437 = vmatprep.subr.bf16.mxu0 0
    %1438 = vmatpush2.bf16.msra.mxu0 0
    %1439 = vmatprep.subr.bf16.mxu0 0
    %1440 = vmatpush2.bf16.msra.mxu0 0
    %1441 = vmatprep.subr.bf16.mxu0 0
    %1442 = vmatpush2.bf16.msra.mxu0 0
    %1443 = vmatprep.subr.bf16.mxu0 0
    %1444 = vmatpush2.bf16.msra.mxu0 0
    %1445 = vmatprep.subr.bf16.mxu0 0
    %1446 = vmatpush2.bf16.msra.mxu0 0
    %1447 = vmatprep.mubr.bf16.mxu0 0
    %1448 = vmatmul.mubr.bf16.gmra.mxu0 %v1373
    %v1449 = vpop.f32.mrf.mxu0
    %v1450 = vadd.f32 0.0, %v1449
    %v1451 = vpop.f32.mrf.mxu0
    %v1452 = vadd.f32 0.0, %v1451
    %v1453 = vpop.f32.mrf.mxu0
    %v1454 = vpop.f32.mrf.mxu0
    %1455 = vdwg.mxu0
    %v1456 = vadd.f32 %v572, %v1409
    %v1457 = vadd.f32 %v574, %v1411
    %v1458 = vadd.f32 %v645, %v1450
    %v1459 = vadd.f32 %v647, %v1452
    %v1460 = vxor.u32 %v1456, 2147483648
    %v1461 = vmul.f32 %v1460, 1.442695
    %v1462 = vpow.pop %v1461
    %v1463 = vadd.f32 %v1462, 1.0
    %v1464 = vrcp.pop %v1463
    %v1465 = vmul.f32 1.0, %v1464
    %v1466 = vxor.u32 %v1457, 2147483648
    %v1467 = vmul.f32 %v1466, 1.442695
    %v1468 = vpow.pop %v1467
    %v1469 = vadd.f32 %v1468, 1.0
    %v1470 = vrcp.pop %v1469
    %v1471 = vmul.f32 1.0, %v1470
    %v1472 = vtanh.pop %v1458
    %v1473 = vxor.u32 %v1459, 2147483648
    %v1474 = vmul.f32 %v1473, 1.442695
    %v1475 = vpow.pop %v1474
    %v1476 = vadd.f32 %v1475, 1.0
    %v1477 = vrcp.pop %v1476
    %v1478 = vmul.f32 1.0, %v1477
    %v1479 = vmul.f32 %v1471, %v1370
    %v1480 = vmul.f32 %v1465, %v1472
    %v1481 = vadd.f32 %v1479, %v1480
    %v1482 = vtanh.pop %v1481
    %v1483 = vmul.f32 %v1478, %v1482
    %v1484 = vpack.c.bf16 %v1483, %v1483
    %1485 = vmatprep.subr.bf16.mxu0 %v784
    %1486 = vmatpush1.bf16.msra.mxu0 %v783
    %1487 = vmatprep.subr.bf16.mxu0 %v780
    %1488 = vmatpush1.bf16.msra.mxu0 %v779
    %1489 = vmatprep.subr.bf16.mxu0 %v776
    %1490 = vmatpush1.bf16.msra.mxu0 %v775
    %1491 = vmatprep.subr.bf16.mxu0 %v772
    %1492 = vmatpush1.bf16.msra.mxu0 %v771
    %1493 = vmatprep.subr.bf16.mxu0 %v768
    %1494 = vmatpush1.bf16.msra.mxu0 %v767
    %1495 = vmatprep.subr.bf16.mxu0 %v764
    %1496 = vmatpush1.bf16.msra.mxu0 %v763
    %1497 = vmatprep.subr.bf16.mxu0 %v760
    %1498 = vmatpush1.bf16.msra.mxu0 %v759
    %1499 = vmatprep.subr.bf16.mxu0 %v756
    %1500 = vmatpush1.bf16.msra.mxu0 %v755
    %1501 = vmatprep.subr.bf16.mxu0 0
    %1502 = vmatpush2.bf16.msra.mxu0 0
    %1503 = vmatprep.subr.bf16.mxu0 0
    %1504 = vmatpush2.bf16.msra.mxu0 0
    %1505 = vmatprep.subr.bf16.mxu0 0
    %1506 = vmatpush2.bf16.msra.mxu0 0
    %1507 = vmatprep.subr.bf16.mxu0 0
    %1508 = vmatpush2.bf16.msra.mxu0 0
    %1509 = vmatprep.subr.bf16.mxu0 0
    %1510 = vmatpush2.bf16.msra.mxu0 0
    %1511 = vmatprep.subr.bf16.mxu0 0
    %1512 = vmatpush2.bf16.msra.mxu0 0
    %1513 = vmatprep.subr.bf16.mxu0 0
    %1514 = vmatpush2.bf16.msra.mxu0 0
    %1515 = vmatprep.subr.bf16.mxu0 0
    %1516 = vmatpush2.bf16.msra.mxu0 0
    %1517 = vmatprep.mubr.bf16.mxu0 0
    %1518 = vmatmul.mubr.bf16.gmra.mxu0 %v1484
    %v1519 = vpop.f32.mrf.mxu0
    %v1520 = vadd.f32 0.0, %v1519
    %v1521 = vpop.f32.mrf.mxu0
    %v1522 = vadd.f32 0.0, %v1521
    %v1523 = vpop.f32.mrf.mxu0
    %v1524 = vpop.f32.mrf.mxu0
    %1525 = vdwg.mxu0
    %1526 = vmatprep.subr.bf16.mxu0 %v786
    %1527 = vmatpush1.bf16.msra.mxu0 %v785
    %1528 = vmatprep.subr.bf16.mxu0 %v782
    %1529 = vmatpush1.bf16.msra.mxu0 %v781
    %1530 = vmatprep.subr.bf16.mxu0 %v778
    %1531 = vmatpush1.bf16.msra.mxu0 %v777
    %1532 = vmatprep.subr.bf16.mxu0 %v774
    %1533 = vmatpush1.bf16.msra.mxu0 %v773
    %1534 = vmatprep.subr.bf16.mxu0 %v770
    %1535 = vmatpush1.bf16.msra.mxu0 %v769
    %1536 = vmatprep.subr.bf16.mxu0 %v766
    %1537 = vmatpush1.bf16.msra.mxu0 %v765
    %1538 = vmatprep.subr.bf16.mxu0 %v762
    %1539 = vmatpush1.bf16.msra.mxu0 %v761
    %1540 = vmatprep.subr.bf16.mxu0 %v758
    %1541 = vmatpush1.bf16.msra.mxu0 %v757
    %1542 = vmatprep.subr.bf16.mxu0 0
    %1543 = vmatpush2.bf16.msra.mxu0 0
    %1544 = vmatprep.subr.bf16.mxu0 0
    %1545 = vmatpush2.bf16.msra.mxu0 0
    %1546 = vmatprep.subr.bf16.mxu0 0
    %1547 = vmatpush2.bf16.msra.mxu0 0
    %1548 = vmatprep.subr.bf16.mxu0 0
    %1549 = vmatpush2.bf16.msra.mxu0 0
    %1550 = vmatprep.subr.bf16.mxu0 0
    %1551 = vmatpush2.bf16.msra.mxu0 0
    %1552 = vmatprep.subr.bf16.mxu0 0
    %1553 = vmatpush2.bf16.msra.mxu0 0
    %1554 = vmatprep.subr.bf16.mxu0 0
    %1555 = vmatpush2.bf16.msra.mxu0 0
    %1556 = vmatprep.subr.bf16.mxu0 0
    %1557 = vmatpush2.bf16.msra.mxu0 0
    %1558 = vmatprep.mubr.bf16.mxu0 0
    %1559 = vmatmul.mubr.bf16.gmra.mxu0 %v1484
    %v1560 = vpop.f32.mrf.mxu0
    %v1561 = vadd.f32 0.0, %v1560
    %v1562 = vpop.f32.mrf.mxu0
    %v1563 = vadd.f32 0.0, %v1562
    %v1564 = vpop.f32.mrf.mxu0
    %v1565 = vpop.f32.mrf.mxu0
    %1566 = vdwg.mxu0
    %v1567 = vadd.f32 %v578, %v1520
    %v1568 = vadd.f32 %v580, %v1522
    %v1569 = vadd.f32 %v651, %v1561
    %v1570 = vadd.f32 %v653, %v1563
    %v1571 = vxor.u32 %v1567, 2147483648
    %v1572 = vmul.f32 %v1571, 1.442695
    %v1573 = vpow.pop %v1572
    %v1574 = vadd.f32 %v1573, 1.0
    %v1575 = vrcp.pop %v1574
    %v1576 = vmul.f32 1.0, %v1575
    %v1577 = vxor.u32 %v1568, 2147483648
    %v1578 = vmul.f32 %v1577, 1.442695
    %v1579 = vpow.pop %v1578
    %v1580 = vadd.f32 %v1579, 1.0
    %v1581 = vrcp.pop %v1580
    %v1582 = vmul.f32 1.0, %v1581
    %v1583 = vtanh.pop %v1569
    %v1584 = vxor.u32 %v1570, 2147483648
    %v1585 = vmul.f32 %v1584, 1.442695
    %v1586 = vpow.pop %v1585
    %v1587 = vadd.f32 %v1586, 1.0
    %v1588 = vrcp.pop %v1587
    %v1589 = vmul.f32 1.0, %v1588
    %v1590 = vmul.f32 %v1582, %v1481
    %v1591 = vmul.f32 %v1576, %v1583
    %v1592 = vadd.f32 %v1590, %v1591
    %v1593 = vtanh.pop %v1592
    %v1594 = vmul.f32 %v1589, %v1593
    %v1595 = vpack.c.bf16 %v1594, %v1594
    %1596 = vmatprep.subr.bf16.mxu0 %v784
    %1597 = vmatpush1.bf16.msra.mxu0 %v783
    %1598 = vmatprep.subr.bf16.mxu0 %v780
    %1599 = vmatpush1.bf16.msra.mxu0 %v779
    %1600 = vmatprep.subr.bf16.mxu0 %v776
    %1601 = vmatpush1.bf16.msra.mxu0 %v775
    %1602 = vmatprep.subr.bf16.mxu0 %v772
    %1603 = vmatpush1.bf16.msra.mxu0 %v771
    %1604 = vmatprep.subr.bf16.mxu0 %v768
    %1605 = vmatpush1.bf16.msra.mxu0 %v767
    %1606 = vmatprep.subr.bf16.mxu0 %v764
    %1607 = vmatpush1.bf16.msra.mxu0 %v763
    %1608 = vmatprep.subr.bf16.mxu0 %v760
    %1609 = vmatpush1.bf16.msra.mxu0 %v759
    %1610 = vmatprep.subr.bf16.mxu0 %v756
    %1611 = vmatpush1.bf16.msra.mxu0 %v755
    %1612 = vmatprep.subr.bf16.mxu0 0
    %1613 = vmatpush2.bf16.msra.mxu0 0
    %1614 = vmatprep.subr.bf16.mxu0 0
    %1615 = vmatpush2.bf16.msra.mxu0 0
    %1616 = vmatprep.subr.bf16.mxu0 0
    %1617 = vmatpush2.bf16.msra.mxu0 0
    %1618 = vmatprep.subr.bf16.mxu0 0
    %1619 = vmatpush2.bf16.msra.mxu0 0
    %1620 = vmatprep.subr.bf16.mxu0 0
    %1621 = vmatpush2.bf16.msra.mxu0 0
    %1622 = vmatprep.subr.bf16.mxu0 0
    %1623 = vmatpush2.bf16.msra.mxu0 0
    %1624 = vmatprep.subr.bf16.mxu0 0
    %1625 = vmatpush2.bf16.msra.mxu0 0
    %1626 = vmatprep.subr.bf16.mxu0 0
    %1627 = vmatpush2.bf16.msra.mxu0 0
    %1628 = vmatprep.mubr.bf16.mxu0 0
    %1629 = vmatmul.mubr.bf16.gmra.mxu0 %v1595
    %v1630 = vpop.f32.mrf.mxu0
    %v1631 = vadd.f32 0.0, %v1630
    %v1632 = vpop.f32.mrf.mxu0
    %v1633 = vadd.f32 0.0, %v1632
    %v1634 = vpop.f32.mrf.mxu0
    %v1635 = vpop.f32.mrf.mxu0
    %1636 = vdwg.mxu0
    %1637 = vmatprep.subr.bf16.mxu0 %v786
    %1638 = vmatpush1.bf16.msra.mxu0 %v785
    %1639 = vmatprep.subr.bf16.mxu0 %v782
    %1640 = vmatpush1.bf16.msra.mxu0 %v781
    %1641 = vmatprep.subr.bf16.mxu0 %v778
    %1642 = vmatpush1.bf16.msra.mxu0 %v777
    %1643 = vmatprep.subr.bf16.mxu0 %v774
    %1644 = vmatpush1.bf16.msra.mxu0 %v773
    %1645 = vmatprep.subr.bf16.mxu0 %v770
    %1646 = vmatpush1.bf16.msra.mxu0 %v769
    %1647 = vmatprep.subr.bf16.mxu0 %v766
    %1648 = vmatpush1.bf16.msra.mxu0 %v765
    %1649 = vmatprep.subr.bf16.mxu0 %v762
    %1650 = vmatpush1.bf16.msra.mxu0 %v761
    %1651 = vmatprep.subr.bf16.mxu0 %v758
    %1652 = vmatpush1.bf16.msra.mxu0 %v757
    %1653 = vmatprep.subr.bf16.mxu0 0
    %1654 = vmatpush2.bf16.msra.mxu0 0
    %1655 = vmatprep.subr.bf16.mxu0 0
    %1656 = vmatpush2.bf16.msra.mxu0 0
    %1657 = vmatprep.subr.bf16.mxu0 0
    %1658 = vmatpush2.bf16.msra.mxu0 0
    %1659 = vmatprep.subr.bf16.mxu0 0
    %1660 = vmatpush2.bf16.msra.mxu0 0
    %1661 = vmatprep.subr.bf16.mxu0 0
    %1662 = vmatpush2.bf16.msra.mxu0 0
    %1663 = vmatprep.subr.bf16.mxu0 0
    %1664 = vmatpush2.bf16.msra.mxu0 0
    %1665 = vmatprep.subr.bf16.mxu0 0
    %1666 = vmatpush2.bf16.msra.mxu0 0
    %1667 = vmatprep.subr.bf16.mxu0 0
    %1668 = vmatpush2.bf16.msra.mxu0 0
    %1669 = vmatprep.mubr.bf16.mxu0 0
    %1670 = vmatmul.mubr.bf16.gmra.mxu0 %v1595
    %v1671 = vpop.f32.mrf.mxu0
    %v1672 = vadd.f32 0.0, %v1671
    %v1673 = vpop.f32.mrf.mxu0
    %v1674 = vadd.f32 0.0, %v1673
    %v1675 = vpop.f32.mrf.mxu0
    %v1676 = vpop.f32.mrf.mxu0
    %1677 = vdwg.mxu0
    %v1678 = vadd.f32 %v582, %v1631
    %v1679 = vadd.f32 %v584, %v1633
    %v1680 = vadd.f32 %v655, %v1672
    %v1681 = vadd.f32 %v657, %v1674
    %v1682 = vxor.u32 %v1678, 2147483648
    %v1683 = vmul.f32 %v1682, 1.442695
    %v1684 = vpow.pop %v1683
    %v1685 = vadd.f32 %v1684, 1.0
    %v1686 = vrcp.pop %v1685
    %v1687 = vmul.f32 1.0, %v1686
    %v1688 = vxor.u32 %v1679, 2147483648
    %v1689 = vmul.f32 %v1688, 1.442695
    %v1690 = vpow.pop %v1689
    %v1691 = vadd.f32 %v1690, 1.0
    %v1692 = vrcp.pop %v1691
    %v1693 = vmul.f32 1.0, %v1692
    %v1694 = vtanh.pop %v1680
    %v1695 = vxor.u32 %v1681, 2147483648
    %v1696 = vmul.f32 %v1695, 1.442695
    %v1697 = vpow.pop %v1696
    %v1698 = vadd.f32 %v1697, 1.0
    %v1699 = vrcp.pop %v1698
    %v1700 = vmul.f32 1.0, %v1699
    %v1701 = vmul.f32 %v1693, %v1592
    %v1702 = vmul.f32 %v1687, %v1694
    %v1703 = vadd.f32 %v1701, %v1702
    %v1704 = vtanh.pop %v1703
    %v1705 = vmul.f32 %v1700, %v1704
    %v1706 = vld [vmem:[#allocation7] sm:$0xff]
    %v1707 = vld [vmem:[#allocation7 + $0x8] sm:$0xff]
    %v1708 = vld [vmem:[#allocation7 + $0x10] sm:$0xff]
    %v1709 = vld [vmem:[#allocation7 + $0x18] sm:$0xff]
    %v1710 = vld [vmem:[#allocation7 + $0x20] sm:$0xff]
    %v1711 = vld [vmem:[#allocation7 + $0x28] sm:$0xff]
    %v1712 = vld [vmem:[#allocation7 + $0x30] sm:$0xff]
    %v1713 = vld [vmem:[#allocation7 + $0x38] sm:$0xff]
    %v1714 = vld [vmem:[#allocation7 + $0x40] sm:$0xff]
    %v1715 = vld [vmem:[#allocation7 + $0x48] sm:$0xff]
    %v1716 = vld [vmem:[#allocation7 + $0x50] sm:$0xff]
    %v1717 = vld [vmem:[#allocation7 + $0x58] sm:$0xff]
    %v1718 = vld [vmem:[#allocation7 + $0x60] sm:$0xff]
    %v1719 = vld [vmem:[#allocation7 + $0x68] sm:$0xff]
    %v1720 = vld [vmem:[#allocation7 + $0x70] sm:$0xff]
    %v1721 = vld [vmem:[#allocation7 + $0x78] sm:$0xff]
    %v1722 = vld [vmem:[#allocation7 + $0x80] sm:$0xff]
    %v1723 = vld [vmem:[#allocation7 + $0x88] sm:$0xff]
    %v1724 = vld [vmem:[#allocation7 + $0x90] sm:$0xff]
    %v1725 = vld [vmem:[#allocation7 + $0x98] sm:$0xff]
    %v1726 = vld [vmem:[#allocation7 + $0xa0] sm:$0xff]
    %v1727 = vld [vmem:[#allocation7 + $0xa8] sm:$0xff]
    %v1728 = vld [vmem:[#allocation7 + $0xb0] sm:$0xff]
    %v1729 = vld [vmem:[#allocation7 + $0xb8] sm:$0xff]
    %v1730 = vld [vmem:[#allocation7 + $0xc0] sm:$0xff]
    %v1731 = vld [vmem:[#allocation7 + $0xc8] sm:$0xff]
    %v1732 = vld [vmem:[#allocation7 + $0xd0] sm:$0xff]
    %v1733 = vld [vmem:[#allocation7 + $0xd8] sm:$0xff]
    %v1734 = vld [vmem:[#allocation7 + $0xe0] sm:$0xff]
    %v1735 = vld [vmem:[#allocation7 + $0xe8] sm:$0xff]
    %v1736 = vld [vmem:[#allocation7 + $0xf0] sm:$0xff]
    %v1737 = vld [vmem:[#allocation7 + $0xf8] sm:$0xff]
    %v1738 = vpack.c.bf16 %v1039, %v928
    %v1739 = vpack.c.bf16 %v1261, %v1150
    %v1740 = vpack.c.bf16 %v1483, %v1372
    %v1741 = vpack.c.bf16 %v1705, %v1594
    %v1742 = vld [vmem:[#allocation6] sm:$0xff]
    %v1743 = vld [vmem:[#allocation6 + $0x8] sm:$0xff]
    %v1744 = vld [vmem:[#allocation6 + $0x10] sm:$0xff]
    %v1745 = vld [vmem:[#allocation6 + $0x18] sm:$0xff]
    %v1746 = vld [vmem:[#allocation6 + $0x20] sm:$0xff]
    %v1747 = vld [vmem:[#allocation6 + $0x28] sm:$0xff]
    %v1748 = vld [vmem:[#allocation6 + $0x30] sm:$0xff]
    %v1749 = vld [vmem:[#allocation6 + $0x38] sm:$0xff]
    %v1750 = vld [vmem:[#allocation6 + $0x40] sm:$0xff]
    %v1751 = vld [vmem:[#allocation6 + $0x48] sm:$0xff]
    %v1752 = vld [vmem:[#allocation6 + $0x50] sm:$0xff]
    %v1753 = vld [vmem:[#allocation6 + $0x58] sm:$0xff]
    %v1754 = vld [vmem:[#allocation6 + $0x60] sm:$0xff]
    %v1755 = vld [vmem:[#allocation6 + $0x68] sm:$0xff]
    %v1756 = vld [vmem:[#allocation6 + $0x70] sm:$0xff]
    %v1757 = vld [vmem:[#allocation6 + $0x78] sm:$0xff]
    %v1758 = vld [vmem:[#allocation6 + $0x80] sm:$0xff]
    %v1759 = vld [vmem:[#allocation6 + $0x88] sm:$0xff]
    %v1760 = vld [vmem:[#allocation6 + $0x90] sm:$0xff]
    %v1761 = vld [vmem:[#allocation6 + $0x98] sm:$0xff]
    %v1762 = vld [vmem:[#allocation6 + $0xa0] sm:$0xff]
    %v1763 = vld [vmem:[#allocation6 + $0xa8] sm:$0xff]
    %v1764 = vld [vmem:[#allocation6 + $0xb0] sm:$0xff]
    %v1765 = vld [vmem:[#allocation6 + $0xb8] sm:$0xff]
    %v1766 = vld [vmem:[#allocation6 + $0xc0] sm:$0xff]
    %v1767 = vld [vmem:[#allocation6 + $0xc8] sm:$0xff]
    %v1768 = vld [vmem:[#allocation6 + $0xd0] sm:$0xff]
    %v1769 = vld [vmem:[#allocation6 + $0xd8] sm:$0xff]
    %v1770 = vld [vmem:[#allocation6 + $0xe0] sm:$0xff]
    %v1771 = vld [vmem:[#allocation6 + $0xe8] sm:$0xff]
    %v1772 = vld [vmem:[#allocation6 + $0xf0] sm:$0xff]
    %v1773 = vld [vmem:[#allocation6 + $0xf8] sm:$0xff]
    %v1774 = vld [vmem:[%s7] sm:$0xf]
    %v1776 = vlaneseq
    %v1777 = vshrl.u32 %v1776, 7
    %v1778 = vsub.s32 0, %v1777
    %v1779 = vrot.slane %v1774, %v1778
    %v1780 = vlaneseq
    %v1781 = vshrl.u32 %v1780, 7
    %v1782 = vsub.s32 1, %v1781
    %v1783 = vrot.slane %v1774, %v1782
    %v1784 = vlaneseq
    %v1785 = vshrl.u32 %v1784, 7
    %v1786 = vsub.s32 2, %v1785
    %v1787 = vrot.slane %v1774, %v1786
    %v1788 = vlaneseq
    %v1789 = vshrl.u32 %v1788, 7
    %v1790 = vsub.s32 3, %v1789
    %v1791 = vrot.slane %v1774, %v1790
    %v1828 = vunpack.c.l.b16 %v1742
    %v1829 = vunpack.c.h.b16 %v1742
    %v1830 = vunpack.c.l.b16 %v1743
    %v1831 = vunpack.c.h.b16 %v1743
    %v1832 = vunpack.c.l.b16 %v1744
    %v1833 = vunpack.c.h.b16 %v1744
    %v1834 = vunpack.c.l.b16 %v1745
    %v1835 = vunpack.c.h.b16 %v1745
    %v1836 = vunpack.c.l.b16 %v1746
    %v1837 = vunpack.c.h.b16 %v1746
    %v1838 = vunpack.c.l.b16 %v1747
    %v1839 = vunpack.c.h.b16 %v1747
    %v1840 = vunpack.c.l.b16 %v1748
    %v1841 = vunpack.c.h.b16 %v1748
    %v1842 = vunpack.c.l.b16 %v1749
    %v1843 = vunpack.c.h.b16 %v1749
    %v1844 = vunpack.c.l.b16 %v1750
    %v1845 = vunpack.c.h.b16 %v1750
    %v1846 = vunpack.c.l.b16 %v1751
    %v1847 = vunpack.c.h.b16 %v1751
    %v1848 = vunpack.c.l.b16 %v1752
    %v1849 = vunpack.c.h.b16 %v1752
    %v1850 = vunpack.c.l.b16 %v1753
    %v1851 = vunpack.c.h.b16 %v1753
    %v1852 = vunpack.c.l.b16 %v1754
    %v1853 = vunpack.c.h.b16 %v1754
    %v1854 = vunpack.c.l.b16 %v1755
    %v1855 = vunpack.c.h.b16 %v1755
    %v1856 = vunpack.c.l.b16 %v1756
    %v1857 = vunpack.c.h.b16 %v1756
    %v1858 = vunpack.c.l.b16 %v1757
    %v1859 = vunpack.c.h.b16 %v1757
    %v1860 = vunpack.c.l.b16 %v1758
    %v1861 = vunpack.c.h.b16 %v1758
    %v1862 = vunpack.c.l.b16 %v1759
    %v1863 = vunpack.c.h.b16 %v1759
    %v1864 = vunpack.c.l.b16 %v1760
    %v1865 = vunpack.c.h.b16 %v1760
    %v1866 = vunpack.c.l.b16 %v1761
    %v1867 = vunpack.c.h.b16 %v1761
    %v1868 = vunpack.c.l.b16 %v1762
    %v1869 = vunpack.c.h.b16 %v1762
    %v1870 = vunpack.c.l.b16 %v1763
    %v1871 = vunpack.c.h.b16 %v1763
    %v1872 = vunpack.c.l.b16 %v1764
    %v1873 = vunpack.c.h.b16 %v1764
    %v1874 = vunpack.c.l.b16 %v1765
    %v1875 = vunpack.c.h.b16 %v1765
    %v1876 = vunpack.c.l.b16 %v1766
    %v1877 = vunpack.c.h.b16 %v1766
    %v1878 = vunpack.c.l.b16 %v1767
    %v1879 = vunpack.c.h.b16 %v1767
    %v1880 = vunpack.c.l.b16 %v1768
    %v1881 = vunpack.c.h.b16 %v1768
    %v1882 = vunpack.c.l.b16 %v1769
    %v1883 = vunpack.c.h.b16 %v1769
    %v1884 = vunpack.c.l.b16 %v1770
    %v1885 = vunpack.c.h.b16 %v1770
    %v1886 = vunpack.c.l.b16 %v1771
    %v1887 = vunpack.c.h.b16 %v1771
    %v1888 = vunpack.c.l.b16 %v1772
    %v1889 = vunpack.c.h.b16 %v1772
    %v1890 = vunpack.c.l.b16 %v1773
    %v1891 = vunpack.c.h.b16 %v1773
    %v1892 = vpack.c.b16 %v1832, %v1828
    %v1893 = vpack.c.b16 %v1833, %v1829
    %v1894 = vpack.c.b16 %v1834, %v1830
    %v1895 = vpack.c.b16 %v1835, %v1831
    %v1896 = vpack.c.b16 %v1840, %v1836
    %v1897 = vpack.c.b16 %v1841, %v1837
    %v1898 = vpack.c.b16 %v1842, %v1838
    %v1899 = vpack.c.b16 %v1843, %v1839
    %v1900 = vpack.c.b16 %v1848, %v1844
    %v1901 = vpack.c.b16 %v1849, %v1845
    %v1902 = vpack.c.b16 %v1850, %v1846
    %v1903 = vpack.c.b16 %v1851, %v1847
    %v1904 = vpack.c.b16 %v1856, %v1852
    %v1905 = vpack.c.b16 %v1857, %v1853
    %v1906 = vpack.c.b16 %v1858, %v1854
    %v1907 = vpack.c.b16 %v1859, %v1855
    %v1908 = vpack.c.b16 %v1864, %v1860
    %v1909 = vpack.c.b16 %v1865, %v1861
    %v1910 = vpack.c.b16 %v1866, %v1862
    %v1911 = vpack.c.b16 %v1867, %v1863
    %v1912 = vpack.c.b16 %v1872, %v1868
    %v1913 = vpack.c.b16 %v1873, %v1869
    %v1914 = vpack.c.b16 %v1874, %v1870
    %v1915 = vpack.c.b16 %v1875, %v1871
    %v1916 = vpack.c.b16 %v1880, %v1876
    %v1917 = vpack.c.b16 %v1881, %v1877
    %v1918 = vpack.c.b16 %v1882, %v1878
    %v1919 = vpack.c.b16 %v1883, %v1879
    %v1920 = vpack.c.b16 %v1888, %v1884
    %v1921 = vpack.c.b16 %v1889, %v1885
    %v1922 = vpack.c.b16 %v1890, %v1886
    %v1923 = vpack.c.b16 %v1891, %v1887
    %1956 = vmatprep.subr.bf16.mxu0 %v1921
    %1957 = vmatpush1.bf16.msra.mxu0 %v1920
    %1958 = vmatprep.subr.bf16.mxu0 %v1917
    %1959 = vmatpush1.bf16.msra.mxu0 %v1916
    %1960 = vmatprep.subr.bf16.mxu0 %v1913
    %1961 = vmatpush1.bf16.msra.mxu0 %v1912
    %1962 = vmatprep.subr.bf16.mxu0 %v1909
    %1963 = vmatpush1.bf16.msra.mxu0 %v1908
    %1964 = vmatprep.subr.bf16.mxu0 %v1905
    %1965 = vmatpush1.bf16.msra.mxu0 %v1904
    %1966 = vmatprep.subr.bf16.mxu0 %v1901
    %1967 = vmatpush1.bf16.msra.mxu0 %v1900
    %1968 = vmatprep.subr.bf16.mxu0 %v1897
    %1969 = vmatpush1.bf16.msra.mxu0 %v1896
    %1970 = vmatprep.subr.bf16.mxu0 %v1893
    %1971 = vmatpush1.bf16.msra.mxu0 %v1892
    %1972 = vmatprep.subr.bf16.mxu0 0
    %1973 = vmatpush2.bf16.msra.mxu0 0
    %1974 = vmatprep.subr.bf16.mxu0 0
    %1975 = vmatpush2.bf16.msra.mxu0 0
    %1976 = vmatprep.subr.bf16.mxu0 0
    %1977 = vmatpush2.bf16.msra.mxu0 0
    %1978 = vmatprep.subr.bf16.mxu0 0
    %1979 = vmatpush2.bf16.msra.mxu0 0
    %1980 = vmatprep.subr.bf16.mxu0 0
    %1981 = vmatpush2.bf16.msra.mxu0 0
    %1982 = vmatprep.subr.bf16.mxu0 0
    %1983 = vmatpush2.bf16.msra.mxu0 0
    %1984 = vmatprep.subr.bf16.mxu0 0
    %1985 = vmatpush2.bf16.msra.mxu0 0
    %1986 = vmatprep.subr.bf16.mxu0 0
    %1987 = vmatpush2.bf16.msra.mxu0 0
    %1988 = vmatprep.mubr.bf16.mxu0 0
    %1989 = vmatmul.mubr.bf16.gmra.mxu0 %v1738
    %v1990 = vpop.f32.mrf.mxu0
    %v1991 = vadd.f32 %v1779, %v1990
    %v1992 = vpop.f32.mrf.mxu0
    %v1993 = vadd.f32 %v1783, %v1992
    %v1994 = vpop.f32.mrf.mxu0
    %v1995 = vadd.f32 %v1779, %v1994
    %v1996 = vpop.f32.mrf.mxu0
    %v1997 = vadd.f32 %v1783, %v1996
    %1998 = vmatprep.mubr.bf16.mxu0 0
    %1999 = vmatmul.mubr.bf16.gmra.mxu0 %v1739
    %v2000 = vpop.f32.mrf.mxu0
    %v2001 = vadd.f32 %v1779, %v2000
    %v2002 = vpop.f32.mrf.mxu0
    %v2003 = vadd.f32 %v1783, %v2002
    %v2004 = vpop.f32.mrf.mxu0
    %v2005 = vadd.f32 %v1779, %v2004
    %v2006 = vpop.f32.mrf.mxu0
    %v2007 = vadd.f32 %v1783, %v2006
    %2008 = vmatprep.mubr.bf16.mxu0 0
    %2009 = vmatmul.mubr.bf16.gmra.mxu0 %v1740
    %v2010 = vpop.f32.mrf.mxu0
    %v2011 = vadd.f32 %v1779, %v2010
    %v2012 = vpop.f32.mrf.mxu0
    %v2013 = vadd.f32 %v1783, %v2012
    %v2014 = vpop.f32.mrf.mxu0
    %v2015 = vadd.f32 %v1779, %v2014
    %v2016 = vpop.f32.mrf.mxu0
    %v2017 = vadd.f32 %v1783, %v2016
    %2018 = vmatprep.mubr.bf16.mxu0 0
    %2019 = vmatmul.mubr.bf16.gmra.mxu0 %v1741
    %v2020 = vpop.f32.mrf.mxu0
    %v2021 = vadd.f32 %v1779, %v2020
    %v2022 = vpop.f32.mrf.mxu0
    %v2023 = vadd.f32 %v1783, %v2022
    %v2024 = vpop.f32.mrf.mxu0
    %v2025 = vadd.f32 %v1779, %v2024
    %v2026 = vpop.f32.mrf.mxu0
    %v2027 = vadd.f32 %v1783, %v2026
    %2028 = vdwg.mxu0
    %2029 = vmatprep.subr.bf16.mxu0 %v1923
    %2030 = vmatpush1.bf16.msra.mxu0 %v1922
    %2031 = vmatprep.subr.bf16.mxu0 %v1919
    %2032 = vmatpush1.bf16.msra.mxu0 %v1918
    %2033 = vmatprep.subr.bf16.mxu0 %v1915
    %2034 = vmatpush1.bf16.msra.mxu0 %v1914
    %2035 = vmatprep.subr.bf16.mxu0 %v1911
    %2036 = vmatpush1.bf16.msra.mxu0 %v1910
    %2037 = vmatprep.subr.bf16.mxu0 %v1907
    %2038 = vmatpush1.bf16.msra.mxu0 %v1906
    %2039 = vmatprep.subr.bf16.mxu0 %v1903
    %2040 = vmatpush1.bf16.msra.mxu0 %v1902
    %2041 = vmatprep.subr.bf16.mxu0 %v1899
    %2042 = vmatpush1.bf16.msra.mxu0 %v1898
    %2043 = vmatprep.subr.bf16.mxu0 %v1895
    %2044 = vmatpush1.bf16.msra.mxu0 %v1894
    %2045 = vmatprep.subr.bf16.mxu0 0
    %2046 = vmatpush2.bf16.msra.mxu0 0
    %2047 = vmatprep.subr.bf16.mxu0 0
    %2048 = vmatpush2.bf16.msra.mxu0 0
    %2049 = vmatprep.subr.bf16.mxu0 0
    %2050 = vmatpush2.bf16.msra.mxu0 0
    %2051 = vmatprep.subr.bf16.mxu0 0
    %2052 = vmatpush2.bf16.msra.mxu0 0
    %2053 = vmatprep.subr.bf16.mxu0 0
    %2054 = vmatpush2.bf16.msra.mxu0 0
    %2055 = vmatprep.subr.bf16.mxu0 0
    %2056 = vmatpush2.bf16.msra.mxu0 0
    %2057 = vmatprep.subr.bf16.mxu0 0
    %2058 = vmatpush2.bf16.msra.mxu0 0
    %2059 = vmatprep.subr.bf16.mxu0 0
    %2060 = vmatpush2.bf16.msra.mxu0 0
    %2061 = vmatprep.mubr.bf16.mxu0 0
    %2062 = vmatmul.mubr.bf16.gmra.mxu0 %v1738
    %v2063 = vpop.f32.mrf.mxu0
    %v2064 = vadd.f32 %v1787, %v2063
    %v2065 = vpop.f32.mrf.mxu0
    %v2066 = vadd.f32 %v1791, %v2065
    %v2067 = vpop.f32.mrf.mxu0
    %v2068 = vadd.f32 %v1787, %v2067
    %v2069 = vpop.f32.mrf.mxu0
    %v2070 = vadd.f32 %v1791, %v2069
    %2071 = vmatprep.mubr.bf16.mxu0 0
    %2072 = vmatmul.mubr.bf16.gmra.mxu0 %v1739
    %v2073 = vpop.f32.mrf.mxu0
    %v2074 = vadd.f32 %v1787, %v2073
    %v2075 = vpop.f32.mrf.mxu0
    %v2076 = vadd.f32 %v1791, %v2075
    %v2077 = vpop.f32.mrf.mxu0
    %v2078 = vadd.f32 %v1787, %v2077
    %v2079 = vpop.f32.mrf.mxu0
    %v2080 = vadd.f32 %v1791, %v2079
    %2081 = vmatprep.mubr.bf16.mxu0 0
    %2082 = vmatmul.mubr.bf16.gmra.mxu0 %v1740
    %v2083 = vpop.f32.mrf.mxu0
    %v2084 = vadd.f32 %v1787, %v2083
    %v2085 = vpop.f32.mrf.mxu0
    %v2086 = vadd.f32 %v1791, %v2085
    %v2087 = vpop.f32.mrf.mxu0
    %v2088 = vadd.f32 %v1787, %v2087
    %v2089 = vpop.f32.mrf.mxu0
    %v2090 = vadd.f32 %v1791, %v2089
    %2091 = vmatprep.mubr.bf16.mxu0 0
    %2092 = vmatmul.mubr.bf16.gmra.mxu0 %v1741
    %v2093 = vpop.f32.mrf.mxu0
    %v2094 = vadd.f32 %v1787, %v2093
    %v2095 = vpop.f32.mrf.mxu0
    %v2096 = vadd.f32 %v1791, %v2095
    %v2097 = vpop.f32.mrf.mxu0
    %v2098 = vadd.f32 %v1787, %v2097
    %v2099 = vpop.f32.mrf.mxu0
    %v2100 = vadd.f32 %v1791, %v2099
    %2101 = vdwg.mxu0
    %v2134 = vunpack.c.l.b16 %v1706
    %v2135 = vunpack.c.h.b16 %v1706
    %v2136 = vunpack.c.l.b16 %v1707
    %v2137 = vunpack.c.h.b16 %v1707
    %v2138 = vunpack.c.l.b16 %v1708
    %v2139 = vunpack.c.h.b16 %v1708
    %v2140 = vunpack.c.l.b16 %v1709
    %v2141 = vunpack.c.h.b16 %v1709
    %v2142 = vunpack.c.l.b16 %v1710
    %v2143 = vunpack.c.h.b16 %v1710
    %v2144 = vunpack.c.l.b16 %v1711
    %v2145 = vunpack.c.h.b16 %v1711
    %v2146 = vunpack.c.l.b16 %v1712
    %v2147 = vunpack.c.h.b16 %v1712
    %v2148 = vunpack.c.l.b16 %v1713
    %v2149 = vunpack.c.h.b16 %v1713
    %v2150 = vunpack.c.l.b16 %v1714
    %v2151 = vunpack.c.h.b16 %v1714
    %v2152 = vunpack.c.l.b16 %v1715
    %v2153 = vunpack.c.h.b16 %v1715
    %v2154 = vunpack.c.l.b16 %v1716
    %v2155 = vunpack.c.h.b16 %v1716
    %v2156 = vunpack.c.l.b16 %v1717
    %v2157 = vunpack.c.h.b16 %v1717
    %v2158 = vunpack.c.l.b16 %v1718
    %v2159 = vunpack.c.h.b16 %v1718
    %v2160 = vunpack.c.l.b16 %v1719
    %v2161 = vunpack.c.h.b16 %v1719
    %v2162 = vunpack.c.l.b16 %v1720
    %v2163 = vunpack.c.h.b16 %v1720
    %v2164 = vunpack.c.l.b16 %v1721
    %v2165 = vunpack.c.h.b16 %v1721
    %v2166 = vunpack.c.l.b16 %v1722
    %v2167 = vunpack.c.h.b16 %v1722
    %v2168 = vunpack.c.l.b16 %v1723
    %v2169 = vunpack.c.h.b16 %v1723
    %v2170 = vunpack.c.l.b16 %v1724
    %v2171 = vunpack.c.h.b16 %v1724
    %v2172 = vunpack.c.l.b16 %v1725
    %v2173 = vunpack.c.h.b16 %v1725
    %v2174 = vunpack.c.l.b16 %v1726
    %v2175 = vunpack.c.h.b16 %v1726
    %v2176 = vunpack.c.l.b16 %v1727
    %v2177 = vunpack.c.h.b16 %v1727
    %v2178 = vunpack.c.l.b16 %v1728
    %v2179 = vunpack.c.h.b16 %v1728
    %v2180 = vunpack.c.l.b16 %v1729
    %v2181 = vunpack.c.h.b16 %v1729
    %v2182 = vunpack.c.l.b16 %v1730
    %v2183 = vunpack.c.h.b16 %v1730
    %v2184 = vunpack.c.l.b16 %v1731
    %v2185 = vunpack.c.h.b16 %v1731
    %v2186 = vunpack.c.l.b16 %v1732
    %v2187 = vunpack.c.h.b16 %v1732
    %v2188 = vunpack.c.l.b16 %v1733
    %v2189 = vunpack.c.h.b16 %v1733
    %v2190 = vunpack.c.l.b16 %v1734
    %v2191 = vunpack.c.h.b16 %v1734
    %v2192 = vunpack.c.l.b16 %v1735
    %v2193 = vunpack.c.h.b16 %v1735
    %v2194 = vunpack.c.l.b16 %v1736
    %v2195 = vunpack.c.h.b16 %v1736
    %v2196 = vunpack.c.l.b16 %v1737
    %v2197 = vunpack.c.h.b16 %v1737
    %v2198 = vpack.c.b16 %v2138, %v2134
    %v2199 = vpack.c.b16 %v2139, %v2135
    %v2200 = vpack.c.b16 %v2140, %v2136
    %v2201 = vpack.c.b16 %v2141, %v2137
    %v2202 = vpack.c.b16 %v2146, %v2142
    %v2203 = vpack.c.b16 %v2147, %v2143
    %v2204 = vpack.c.b16 %v2148, %v2144
    %v2205 = vpack.c.b16 %v2149, %v2145
    %v2206 = vpack.c.b16 %v2154, %v2150
    %v2207 = vpack.c.b16 %v2155, %v2151
    %v2208 = vpack.c.b16 %v2156, %v2152
    %v2209 = vpack.c.b16 %v2157, %v2153
    %v2210 = vpack.c.b16 %v2162, %v2158
    %v2211 = vpack.c.b16 %v2163, %v2159
    %v2212 = vpack.c.b16 %v2164, %v2160
    %v2213 = vpack.c.b16 %v2165, %v2161
    %v2214 = vpack.c.b16 %v2170, %v2166
    %v2215 = vpack.c.b16 %v2171, %v2167
    %v2216 = vpack.c.b16 %v2172, %v2168
    %v2217 = vpack.c.b16 %v2173, %v2169
    %v2218 = vpack.c.b16 %v2178, %v2174
    %v2219 = vpack.c.b16 %v2179, %v2175
    %v2220 = vpack.c.b16 %v2180, %v2176
    %v2221 = vpack.c.b16 %v2181, %v2177
    %v2222 = vpack.c.b16 %v2186, %v2182
    %v2223 = vpack.c.b16 %v2187, %v2183
    %v2224 = vpack.c.b16 %v2188, %v2184
    %v2225 = vpack.c.b16 %v2189, %v2185
    %v2226 = vpack.c.b16 %v2194, %v2190
    %v2227 = vpack.c.b16 %v2195, %v2191
    %v2228 = vpack.c.b16 %v2196, %v2192
    %v2229 = vpack.c.b16 %v2197, %v2193
    %2262 = vmatprep.subr.bf16.mxu0 %v2227
    %2263 = vmatpush1.bf16.msra.mxu0 %v2226
    %2264 = vmatprep.subr.bf16.mxu0 %v2223
    %2265 = vmatpush1.bf16.msra.mxu0 %v2222
    %2266 = vmatprep.subr.bf16.mxu0 %v2219
    %2267 = vmatpush1.bf16.msra.mxu0 %v2218
    %2268 = vmatprep.subr.bf16.mxu0 %v2215
    %2269 = vmatpush1.bf16.msra.mxu0 %v2214
    %2270 = vmatprep.subr.bf16.mxu0 %v2211
    %2271 = vmatpush1.bf16.msra.mxu0 %v2210
    %2272 = vmatprep.subr.bf16.mxu0 %v2207
    %2273 = vmatpush1.bf16.msra.mxu0 %v2206
    %2274 = vmatprep.subr.bf16.mxu0 %v2203
    %2275 = vmatpush1.bf16.msra.mxu0 %v2202
    %2276 = vmatprep.subr.bf16.mxu0 %v2199
    %2277 = vmatpush1.bf16.msra.mxu0 %v2198
    %2278 = vmatprep.subr.bf16.mxu0 0
    %2279 = vmatpush2.bf16.msra.mxu0 0
    %2280 = vmatprep.subr.bf16.mxu0 0
    %2281 = vmatpush2.bf16.msra.mxu0 0
    %2282 = vmatprep.subr.bf16.mxu0 0
    %2283 = vmatpush2.bf16.msra.mxu0 0
    %2284 = vmatprep.subr.bf16.mxu0 0
    %2285 = vmatpush2.bf16.msra.mxu0 0
    %2286 = vmatprep.subr.bf16.mxu0 0
    %2287 = vmatpush2.bf16.msra.mxu0 0
    %2288 = vmatprep.subr.bf16.mxu0 0
    %2289 = vmatpush2.bf16.msra.mxu0 0
    %2290 = vmatprep.subr.bf16.mxu0 0
    %2291 = vmatpush2.bf16.msra.mxu0 0
    %2292 = vmatprep.subr.bf16.mxu0 0
    %2293 = vmatpush2.bf16.msra.mxu0 0
    %2294 = vmatprep.mubr.bf16.mxu0 0
    %2295 = vmatmul.mubr.bf16.gmra.mxu0 0
    %v2296 = vpop.f32.mrf.mxu0
    %v2297 = vadd.f32 0.0, %v2296
    %v2298 = vpop.f32.mrf.mxu0
    %v2299 = vadd.f32 0.0, %v2298
    %v2300 = vpop.f32.mrf.mxu0
    %v2301 = vpop.f32.mrf.mxu0
    %2302 = vdwg.mxu0
    %2303 = vmatprep.subr.bf16.mxu0 %v2229
    %2304 = vmatpush1.bf16.msra.mxu0 %v2228
    %2305 = vmatprep.subr.bf16.mxu0 %v2225
    %2306 = vmatpush1.bf16.msra.mxu0 %v2224
    %2307 = vmatprep.subr.bf16.mxu0 %v2221
    %2308 = vmatpush1.bf16.msra.mxu0 %v2220
    %2309 = vmatprep.subr.bf16.mxu0 %v2217
    %2310 = vmatpush1.bf16.msra.mxu0 %v2216
    %2311 = vmatprep.subr.bf16.mxu0 %v2213
    %2312 = vmatpush1.bf16.msra.mxu0 %v2212
    %2313 = vmatprep.subr.bf16.mxu0 %v2209
    %2314 = vmatpush1.bf16.msra.mxu0 %v2208
    %2315 = vmatprep.subr.bf16.mxu0 %v2205
    %2316 = vmatpush1.bf16.msra.mxu0 %v2204
    %2317 = vmatprep.subr.bf16.mxu0 %v2201
    %2318 = vmatpush1.bf16.msra.mxu0 %v2200
    %2319 = vmatprep.subr.bf16.mxu0 0
    %2320 = vmatpush2.bf16.msra.mxu0 0
    %2321 = vmatprep.subr.bf16.mxu0 0
    %2322 = vmatpush2.bf16.msra.mxu0 0
    %2323 = vmatprep.subr.bf16.mxu0 0
    %2324 = vmatpush2.bf16.msra.mxu0 0
    %2325 = vmatprep.subr.bf16.mxu0 0
    %2326 = vmatpush2.bf16.msra.mxu0 0
    %2327 = vmatprep.subr.bf16.mxu0 0
    %2328 = vmatpush2.bf16.msra.mxu0 0
    %2329 = vmatprep.subr.bf16.mxu0 0
    %2330 = vmatpush2.bf16.msra.mxu0 0
    %2331 = vmatprep.subr.bf16.mxu0 0
    %2332 = vmatpush2.bf16.msra.mxu0 0
    %2333 = vmatprep.subr.bf16.mxu0 0
    %2334 = vmatpush2.bf16.msra.mxu0 0
    %2335 = vmatprep.mubr.bf16.mxu0 0
    %2336 = vmatmul.mubr.bf16.gmra.mxu0 0
    %v2337 = vpop.f32.mrf.mxu0
    %v2338 = vadd.f32 0.0, %v2337
    %v2339 = vpop.f32.mrf.mxu0
    %v2340 = vadd.f32 0.0, %v2339
    %v2341 = vpop.f32.mrf.mxu0
    %v2342 = vpop.f32.mrf.mxu0
    %2343 = vdwg.mxu0
    %v2344 = vadd.f32 %v1991, %v2297
    %v2345 = vadd.f32 %v1993, %v2299
    %v2346 = vadd.f32 %v2064, %v2338
    %v2347 = vadd.f32 %v2066, %v2340
    %v2348 = vxor.u32 %v2344, 2147483648
    %v2349 = vmul.f32 %v2348, 1.442695
    %v2350 = vpow.pop %v2349
    %v2351 = vadd.f32 %v2350, 1.0
    %v2352 = vrcp.pop %v2351
    %v2353 = vmul.f32 1.0, %v2352
    %v2354 = vxor.u32 %v2345, 2147483648
    %v2355 = vmul.f32 %v2354, 1.442695
    %v2356 = vpow.pop %v2355
    %v2357 = vadd.f32 %v2356, 1.0
    %v2358 = vrcp.pop %v2357
    %v2359 = vmul.f32 1.0, %v2358
    %v2360 = vtanh.pop %v2346
    %v2361 = vxor.u32 %v2347, 2147483648
    %v2362 = vmul.f32 %v2361, 1.442695
    %v2363 = vpow.pop %v2362
    %v2364 = vadd.f32 %v2363, 1.0
    %v2365 = vrcp.pop %v2364
    %v2366 = vmul.f32 1.0, %v2365
    %v2367 = vmul.f32 %v2359, 0.0
    %v2368 = vmul.f32 %v2353, %v2360
    %v2369 = vadd.f32 %v2367, %v2368
    %v2370 = vtanh.pop %v2369
    %v2371 = vmul.f32 %v2366, %v2370
    %v2372 = vpack.c.bf16 %v2371, %v2371
    %2373 = vmatprep.subr.bf16.mxu0 %v2227
    %2374 = vmatpush1.bf16.msra.mxu0 %v2226
    %2375 = vmatprep.subr.bf16.mxu0 %v2223
    %2376 = vmatpush1.bf16.msra.mxu0 %v2222
    %2377 = vmatprep.subr.bf16.mxu0 %v2219
    %2378 = vmatpush1.bf16.msra.mxu0 %v2218
    %2379 = vmatprep.subr.bf16.mxu0 %v2215
    %2380 = vmatpush1.bf16.msra.mxu0 %v2214
    %2381 = vmatprep.subr.bf16.mxu0 %v2211
    %2382 = vmatpush1.bf16.msra.mxu0 %v2210
    %2383 = vmatprep.subr.bf16.mxu0 %v2207
    %2384 = vmatpush1.bf16.msra.mxu0 %v2206
    %2385 = vmatprep.subr.bf16.mxu0 %v2203
    %2386 = vmatpush1.bf16.msra.mxu0 %v2202
    %2387 = vmatprep.subr.bf16.mxu0 %v2199
    %2388 = vmatpush1.bf16.msra.mxu0 %v2198
    %2389 = vmatprep.subr.bf16.mxu0 0
    %2390 = vmatpush2.bf16.msra.mxu0 0
    %2391 = vmatprep.subr.bf16.mxu0 0
    %2392 = vmatpush2.bf16.msra.mxu0 0
    %2393 = vmatprep.subr.bf16.mxu0 0
    %2394 = vmatpush2.bf16.msra.mxu0 0
    %2395 = vmatprep.subr.bf16.mxu0 0
    %2396 = vmatpush2.bf16.msra.mxu0 0
    %2397 = vmatprep.subr.bf16.mxu0 0
    %2398 = vmatpush2.bf16.msra.mxu0 0
    %2399 = vmatprep.subr.bf16.mxu0 0
    %2400 = vmatpush2.bf16.msra.mxu0 0
    %2401 = vmatprep.subr.bf16.mxu0 0
    %2402 = vmatpush2.bf16.msra.mxu0 0
    %2403 = vmatprep.subr.bf16.mxu0 0
    %2404 = vmatpush2.bf16.msra.mxu0 0
    %2405 = vmatprep.mubr.bf16.mxu0 0
    %2406 = vmatmul.mubr.bf16.gmra.mxu0 %v2372
    %v2407 = vpop.f32.mrf.mxu0
    %v2408 = vadd.f32 0.0, %v2407
    %v2409 = vpop.f32.mrf.mxu0
    %v2410 = vadd.f32 0.0, %v2409
    %v2411 = vpop.f32.mrf.mxu0
    %v2412 = vpop.f32.mrf.mxu0
    %2413 = vdwg.mxu0
    %2414 = vmatprep.subr.bf16.mxu0 %v2229
    %2415 = vmatpush1.bf16.msra.mxu0 %v2228
    %2416 = vmatprep.subr.bf16.mxu0 %v2225
    %2417 = vmatpush1.bf16.msra.mxu0 %v2224
    %2418 = vmatprep.subr.bf16.mxu0 %v2221
    %2419 = vmatpush1.bf16.msra.mxu0 %v2220
    %2420 = vmatprep.subr.bf16.mxu0 %v2217
    %2421 = vmatpush1.bf16.msra.mxu0 %v2216
    %2422 = vmatprep.subr.bf16.mxu0 %v2213
    %2423 = vmatpush1.bf16.msra.mxu0 %v2212
    %2424 = vmatprep.subr.bf16.mxu0 %v2209
    %2425 = vmatpush1.bf16.msra.mxu0 %v2208
    %2426 = vmatprep.subr.bf16.mxu0 %v2205
    %2427 = vmatpush1.bf16.msra.mxu0 %v2204
    %2428 = vmatprep.subr.bf16.mxu0 %v2201
    %2429 = vmatpush1.bf16.msra.mxu0 %v2200
    %2430 = vmatprep.subr.bf16.mxu0 0
    %2431 = vmatpush2.bf16.msra.mxu0 0
    %2432 = vmatprep.subr.bf16.mxu0 0
    %2433 = vmatpush2.bf16.msra.mxu0 0
    %2434 = vmatprep.subr.bf16.mxu0 0
    %2435 = vmatpush2.bf16.msra.mxu0 0
    %2436 = vmatprep.subr.bf16.mxu0 0
    %2437 = vmatpush2.bf16.msra.mxu0 0
    %2438 = vmatprep.subr.bf16.mxu0 0
    %2439 = vmatpush2.bf16.msra.mxu0 0
    %2440 = vmatprep.subr.bf16.mxu0 0
    %2441 = vmatpush2.bf16.msra.mxu0 0
    %2442 = vmatprep.subr.bf16.mxu0 0
    %2443 = vmatpush2.bf16.msra.mxu0 0
    %2444 = vmatprep.subr.bf16.mxu0 0
    %2445 = vmatpush2.bf16.msra.mxu0 0
    %2446 = vmatprep.mubr.bf16.mxu0 0
    %2447 = vmatmul.mubr.bf16.gmra.mxu0 %v2372
    %v2448 = vpop.f32.mrf.mxu0
    %v2449 = vadd.f32 0.0, %v2448
    %v2450 = vpop.f32.mrf.mxu0
    %v2451 = vadd.f32 0.0, %v2450
    %v2452 = vpop.f32.mrf.mxu0
    %v2453 = vpop.f32.mrf.mxu0
    %2454 = vdwg.mxu0
    %v2455 = vadd.f32 %v1995, %v2408
    %v2456 = vadd.f32 %v1997, %v2410
    %v2457 = vadd.f32 %v2068, %v2449
    %v2458 = vadd.f32 %v2070, %v2451
    %v2459 = vxor.u32 %v2455, 2147483648
    %v2460 = vmul.f32 %v2459, 1.442695
    %v2461 = vpow.pop %v2460
    %v2462 = vadd.f32 %v2461, 1.0
    %v2463 = vrcp.pop %v2462
    %v2464 = vmul.f32 1.0, %v2463
    %v2465 = vxor.u32 %v2456, 2147483648
    %v2466 = vmul.f32 %v2465, 1.442695
    %v2467 = vpow.pop %v2466
    %v2468 = vadd.f32 %v2467, 1.0
    %v2469 = vrcp.pop %v2468
    %v2470 = vmul.f32 1.0, %v2469
    %v2471 = vtanh.pop %v2457
    %v2472 = vxor.u32 %v2458, 2147483648
    %v2473 = vmul.f32 %v2472, 1.442695
    %v2474 = vpow.pop %v2473
    %v2475 = vadd.f32 %v2474, 1.0
    %v2476 = vrcp.pop %v2475
    %v2477 = vmul.f32 1.0, %v2476
    %v2478 = vmul.f32 %v2470, %v2369
    %v2479 = vmul.f32 %v2464, %v2471
    %v2480 = vadd.f32 %v2478, %v2479
    %v2481 = vtanh.pop %v2480
    %v2482 = vmul.f32 %v2477, %v2481
    %v2483 = vpack.c.bf16 %v2482, %v2482
    %2484 = vmatprep.subr.bf16.mxu0 %v2227
    %2485 = vmatpush1.bf16.msra.mxu0 %v2226
    %2486 = vmatprep.subr.bf16.mxu0 %v2223
    %2487 = vmatpush1.bf16.msra.mxu0 %v2222
    %2488 = vmatprep.subr.bf16.mxu0 %v2219
    %2489 = vmatpush1.bf16.msra.mxu0 %v2218
    %2490 = vmatprep.subr.bf16.mxu0 %v2215
    %2491 = vmatpush1.bf16.msra.mxu0 %v2214
    %2492 = vmatprep.subr.bf16.mxu0 %v2211
    %2493 = vmatpush1.bf16.msra.mxu0 %v2210
    %2494 = vmatprep.subr.bf16.mxu0 %v2207
    %2495 = vmatpush1.bf16.msra.mxu0 %v2206
    %2496 = vmatprep.subr.bf16.mxu0 %v2203
    %2497 = vmatpush1.bf16.msra.mxu0 %v2202
    %2498 = vmatprep.subr.bf16.mxu0 %v2199
    %2499 = vmatpush1.bf16.msra.mxu0 %v2198
    %2500 = vmatprep.subr.bf16.mxu0 0
    %2501 = vmatpush2.bf16.msra.mxu0 0
    %2502 = vmatprep.subr.bf16.mxu0 0
    %2503 = vmatpush2.bf16.msra.mxu0 0
    %2504 = vmatprep.subr.bf16.mxu0 0
    %2505 = vmatpush2.bf16.msra.mxu0 0
    %2506 = vmatprep.subr.bf16.mxu0 0
    %2507 = vmatpush2.bf16.msra.mxu0 0
    %2508 = vmatprep.subr.bf16.mxu0 0
    %2509 = vmatpush2.bf16.msra.mxu0 0
    %2510 = vmatprep.subr.bf16.mxu0 0
    %2511 = vmatpush2.bf16.msra.mxu0 0
    %2512 = vmatprep.subr.bf16.mxu0 0
    %2513 = vmatpush2.bf16.msra.mxu0 0
    %2514 = vmatprep.subr.bf16.mxu0 0
    %2515 = vmatpush2.bf16.msra.mxu0 0
    %2516 = vmatprep.mubr.bf16.mxu0 0
    %2517 = vmatmul.mubr.bf16.gmra.mxu0 %v2483
    %v2518 = vpop.f32.mrf.mxu0
    %v2519 = vadd.f32 0.0, %v2518
    %v2520 = vpop.f32.mrf.mxu0
    %v2521 = vadd.f32 0.0, %v2520
    %v2522 = vpop.f32.mrf.mxu0
    %v2523 = vpop.f32.mrf.mxu0
    %2524 = vdwg.mxu0
    %2525 = vmatprep.subr.bf16.mxu0 %v2229
    %2526 = vmatpush1.bf16.msra.mxu0 %v2228
    %2527 = vmatprep.subr.bf16.mxu0 %v2225
    %2528 = vmatpush1.bf16.msra.mxu0 %v2224
    %2529 = vmatprep.subr.bf16.mxu0 %v2221
    %2530 = vmatpush1.bf16.msra.mxu0 %v2220
    %2531 = vmatprep.subr.bf16.mxu0 %v2217
    %2532 = vmatpush1.bf16.msra.mxu0 %v2216
    %2533 = vmatprep.subr.bf16.mxu0 %v2213
    %2534 = vmatpush1.bf16.msra.mxu0 %v2212
    %2535 = vmatprep.subr.bf16.mxu0 %v2209
    %2536 = vmatpush1.bf16.msra.mxu0 %v2208
    %2537 = vmatprep.subr.bf16.mxu0 %v2205
    %2538 = vmatpush1.bf16.msra.mxu0 %v2204
    %2539 = vmatprep.subr.bf16.mxu0 %v2201
    %2540 = vmatpush1.bf16.msra.mxu0 %v2200
    %2541 = vmatprep.subr.bf16.mxu0 0
    %2542 = vmatpush2.bf16.msra.mxu0 0
    %2543 = vmatprep.subr.bf16.mxu0 0
    %2544 = vmatpush2.bf16.msra.mxu0 0
    %2545 = vmatprep.subr.bf16.mxu0 0
    %2546 = vmatpush2.bf16.msra.mxu0 0
    %2547 = vmatprep.subr.bf16.mxu0 0
    %2548 = vmatpush2.bf16.msra.mxu0 0
    %2549 = vmatprep.subr.bf16.mxu0 0
    %2550 = vmatpush2.bf16.msra.mxu0 0
    %2551 = vmatprep.subr.bf16.mxu0 0
    %2552 = vmatpush2.bf16.msra.mxu0 0
    %2553 = vmatprep.subr.bf16.mxu0 0
    %2554 = vmatpush2.bf16.msra.mxu0 0
    %2555 = vmatprep.subr.bf16.mxu0 0
    %2556 = vmatpush2.bf16.msra.mxu0 0
    %2557 = vmatprep.mubr.bf16.mxu0 0
    %2558 = vmatmul.mubr.bf16.gmra.mxu0 %v2483
    %v2559 = vpop.f32.mrf.mxu0
    %v2560 = vadd.f32 0.0, %v2559
    %v2561 = vpop.f32.mrf.mxu0
    %v2562 = vadd.f32 0.0, %v2561
    %v2563 = vpop.f32.mrf.mxu0
    %v2564 = vpop.f32.mrf.mxu0
    %2565 = vdwg.mxu0
    %v2566 = vadd.f32 %v2001, %v2519
    %v2567 = vadd.f32 %v2003, %v2521
    %v2568 = vadd.f32 %v2074, %v2560
    %v2569 = vadd.f32 %v2076, %v2562
    %v2570 = vxor.u32 %v2566, 2147483648
    %v2571 = vmul.f32 %v2570, 1.442695
    %v2572 = vpow.pop %v2571
    %v2573 = vadd.f32 %v2572, 1.0
    %v2574 = vrcp.pop %v2573
    %v2575 = vmul.f32 1.0, %v2574
    %v2576 = vxor.u32 %v2567, 2147483648
    %v2577 = vmul.f32 %v2576, 1.442695
    %v2578 = vpow.pop %v2577
    %v2579 = vadd.f32 %v2578, 1.0
    %v2580 = vrcp.pop %v2579
    %v2581 = vmul.f32 1.0, %v2580
    %v2582 = vtanh.pop %v2568
    %v2583 = vxor.u32 %v2569, 2147483648
    %v2584 = vmul.f32 %v2583, 1.442695
    %v2585 = vpow.pop %v2584
    %v2586 = vadd.f32 %v2585, 1.0
    %v2587 = vrcp.pop %v2586
    %v2588 = vmul.f32 1.0, %v2587
    %v2589 = vmul.f32 %v2581, %v2480
    %v2590 = vmul.f32 %v2575, %v2582
    %v2591 = vadd.f32 %v2589, %v2590
    %v2592 = vtanh.pop %v2591
    %v2593 = vmul.f32 %v2588, %v2592
    %v2594 = vpack.c.bf16 %v2593, %v2593
    %2595 = vmatprep.subr.bf16.mxu0 %v2227
    %2596 = vmatpush1.bf16.msra.mxu0 %v2226
    %2597 = vmatprep.subr.bf16.mxu0 %v2223
    %2598 = vmatpush1.bf16.msra.mxu0 %v2222
    %2599 = vmatprep.subr.bf16.mxu0 %v2219
    %2600 = vmatpush1.bf16.msra.mxu0 %v2218
    %2601 = vmatprep.subr.bf16.mxu0 %v2215
    %2602 = vmatpush1.bf16.msra.mxu0 %v2214
    %2603 = vmatprep.subr.bf16.mxu0 %v2211
    %2604 = vmatpush1.bf16.msra.mxu0 %v2210
    %2605 = vmatprep.subr.bf16.mxu0 %v2207
    %2606 = vmatpush1.bf16.msra.mxu0 %v2206
    %2607 = vmatprep.subr.bf16.mxu0 %v2203
    %2608 = vmatpush1.bf16.msra.mxu0 %v2202
    %2609 = vmatprep.subr.bf16.mxu0 %v2199
    %2610 = vmatpush1.bf16.msra.mxu0 %v2198
    %2611 = vmatprep.subr.bf16.mxu0 0
    %2612 = vmatpush2.bf16.msra.mxu0 0
    %2613 = vmatprep.subr.bf16.mxu0 0
    %2614 = vmatpush2.bf16.msra.mxu0 0
    %2615 = vmatprep.subr.bf16.mxu0 0
    %2616 = vmatpush2.bf16.msra.mxu0 0
    %2617 = vmatprep.subr.bf16.mxu0 0
    %2618 = vmatpush2.bf16.msra.mxu0 0
    %2619 = vmatprep.subr.bf16.mxu0 0
    %2620 = vmatpush2.bf16.msra.mxu0 0
    %2621 = vmatprep.subr.bf16.mxu0 0
    %2622 = vmatpush2.bf16.msra.mxu0 0
    %2623 = vmatprep.subr.bf16.mxu0 0
    %2624 = vmatpush2.bf16.msra.mxu0 0
    %2625 = vmatprep.subr.bf16.mxu0 0
    %2626 = vmatpush2.bf16.msra.mxu0 0
    %2627 = vmatprep.mubr.bf16.mxu0 0
    %2628 = vmatmul.mubr.bf16.gmra.mxu0 %v2594
    %v2629 = vpop.f32.mrf.mxu0
    %v2630 = vadd.f32 0.0, %v2629
    %v2631 = vpop.f32.mrf.mxu0
    %v2632 = vadd.f32 0.0, %v2631
    %v2633 = vpop.f32.mrf.mxu0
    %v2634 = vpop.f32.mrf.mxu0
    %2635 = vdwg.mxu0
    %2636 = vmatprep.subr.bf16.mxu0 %v2229
    %2637 = vmatpush1.bf16.msra.mxu0 %v2228
    %2638 = vmatprep.subr.bf16.mxu0 %v2225
    %2639 = vmatpush1.bf16.msra.mxu0 %v2224
    %2640 = vmatprep.subr.bf16.mxu0 %v2221
    %2641 = vmatpush1.bf16.msra.mxu0 %v2220
    %2642 = vmatprep.subr.bf16.mxu0 %v2217
    %2643 = vmatpush1.bf16.msra.mxu0 %v2216
    %2644 = vmatprep.subr.bf16.mxu0 %v2213
    %2645 = vmatpush1.bf16.msra.mxu0 %v2212
    %2646 = vmatprep.subr.bf16.mxu0 %v2209
    %2647 = vmatpush1.bf16.msra.mxu0 %v2208
    %2648 = vmatprep.subr.bf16.mxu0 %v2205
    %2649 = vmatpush1.bf16.msra.mxu0 %v2204
    %2650 = vmatprep.subr.bf16.mxu0 %v2201
    %2651 = vmatpush1.bf16.msra.mxu0 %v2200
    %2652 = vmatprep.subr.bf16.mxu0 0
    %2653 = vmatpush2.bf16.msra.mxu0 0
    %2654 = vmatprep.subr.bf16.mxu0 0
    %2655 = vmatpush2.bf16.msra.mxu0 0
    %2656 = vmatprep.subr.bf16.mxu0 0
    %2657 = vmatpush2.bf16.msra.mxu0 0
    %2658 = vmatprep.subr.bf16.mxu0 0
    %2659 = vmatpush2.bf16.msra.mxu0 0
    %2660 = vmatprep.subr.bf16.mxu0 0
    %2661 = vmatpush2.bf16.msra.mxu0 0
    %2662 = vmatprep.subr.bf16.mxu0 0
    %2663 = vmatpush2.bf16.msra.mxu0 0
    %2664 = vmatprep.subr.bf16.mxu0 0
    %2665 = vmatpush2.bf16.msra.mxu0 0
    %2666 = vmatprep.subr.bf16.mxu0 0
    %2667 = vmatpush2.bf16.msra.mxu0 0
    %2668 = vmatprep.mubr.bf16.mxu0 0
    %2669 = vmatmul.mubr.bf16.gmra.mxu0 %v2594
    %v2670 = vpop.f32.mrf.mxu0
    %v2671 = vadd.f32 0.0, %v2670
    %v2672 = vpop.f32.mrf.mxu0
    %v2673 = vadd.f32 0.0, %v2672
    %v2674 = vpop.f32.mrf.mxu0
    %v2675 = vpop.f32.mrf.mxu0
    %2676 = vdwg.mxu0
    %v2677 = vadd.f32 %v2005, %v2630
    %v2678 = vadd.f32 %v2007, %v2632
    %v2679 = vadd.f32 %v2078, %v2671
    %v2680 = vadd.f32 %v2080, %v2673
    %v2681 = vxor.u32 %v2677, 2147483648
    %v2682 = vmul.f32 %v2681, 1.442695
    %v2683 = vpow.pop %v2682
    %v2684 = vadd.f32 %v2683, 1.0
    %v2685 = vrcp.pop %v2684
    %v2686 = vmul.f32 1.0, %v2685
    %v2687 = vxor.u32 %v2678, 2147483648
    %v2688 = vmul.f32 %v2687, 1.442695
    %v2689 = vpow.pop %v2688
    %v2690 = vadd.f32 %v2689, 1.0
    %v2691 = vrcp.pop %v2690
    %v2692 = vmul.f32 1.0, %v2691
    %v2693 = vtanh.pop %v2679
    %v2694 = vxor.u32 %v2680, 2147483648
    %v2695 = vmul.f32 %v2694, 1.442695
    %v2696 = vpow.pop %v2695
    %v2697 = vadd.f32 %v2696, 1.0
    %v2698 = vrcp.pop %v2697
    %v2699 = vmul.f32 1.0, %v2698
    %v2700 = vmul.f32 %v2692, %v2591
    %v2701 = vmul.f32 %v2686, %v2693
    %v2702 = vadd.f32 %v2700, %v2701
    %v2703 = vtanh.pop %v2702
    %v2704 = vmul.f32 %v2699, %v2703
    %v2705 = vpack.c.bf16 %v2704, %v2704
    %2706 = vmatprep.subr.bf16.mxu0 %v2227
    %2707 = vmatpush1.bf16.msra.mxu0 %v2226
    %2708 = vmatprep.subr.bf16.mxu0 %v2223
    %2709 = vmatpush1.bf16.msra.mxu0 %v2222
    %2710 = vmatprep.subr.bf16.mxu0 %v2219
    %2711 = vmatpush1.bf16.msra.mxu0 %v2218
    %2712 = vmatprep.subr.bf16.mxu0 %v2215
    %2713 = vmatpush1.bf16.msra.mxu0 %v2214
    %2714 = vmatprep.subr.bf16.mxu0 %v2211
    %2715 = vmatpush1.bf16.msra.mxu0 %v2210
    %2716 = vmatprep.subr.bf16.mxu0 %v2207
    %2717 = vmatpush1.bf16.msra.mxu0 %v2206
    %2718 = vmatprep.subr.bf16.mxu0 %v2203
    %2719 = vmatpush1.bf16.msra.mxu0 %v2202
    %2720 = vmatprep.subr.bf16.mxu0 %v2199
    %2721 = vmatpush1.bf16.msra.mxu0 %v2198
    %2722 = vmatprep.subr.bf16.mxu0 0
    %2723 = vmatpush2.bf16.msra.mxu0 0
    %2724 = vmatprep.subr.bf16.mxu0 0
    %2725 = vmatpush2.bf16.msra.mxu0 0
    %2726 = vmatprep.subr.bf16.mxu0 0
    %2727 = vmatpush2.bf16.msra.mxu0 0
    %2728 = vmatprep.subr.bf16.mxu0 0
    %2729 = vmatpush2.bf16.msra.mxu0 0
    %2730 = vmatprep.subr.bf16.mxu0 0
    %2731 = vmatpush2.bf16.msra.mxu0 0
    %2732 = vmatprep.subr.bf16.mxu0 0
    %2733 = vmatpush2.bf16.msra.mxu0 0
    %2734 = vmatprep.subr.bf16.mxu0 0
    %2735 = vmatpush2.bf16.msra.mxu0 0
    %2736 = vmatprep.subr.bf16.mxu0 0
    %2737 = vmatpush2.bf16.msra.mxu0 0
    %2738 = vmatprep.mubr.bf16.mxu0 0
    %2739 = vmatmul.mubr.bf16.gmra.mxu0 %v2705
    %v2740 = vpop.f32.mrf.mxu0
    %v2741 = vadd.f32 0.0, %v2740
    %v2742 = vpop.f32.mrf.mxu0
    %v2743 = vadd.f32 0.0, %v2742
    %v2744 = vpop.f32.mrf.mxu0
    %v2745 = vpop.f32.mrf.mxu0
    %2746 = vdwg.mxu0
    %2747 = vmatprep.subr.bf16.mxu0 %v2229
    %2748 = vmatpush1.bf16.msra.mxu0 %v2228
    %2749 = vmatprep.subr.bf16.mxu0 %v2225
    %2750 = vmatpush1.bf16.msra.mxu0 %v2224
    %2751 = vmatprep.subr.bf16.mxu0 %v2221
    %2752 = vmatpush1.bf16.msra.mxu0 %v2220
    %2753 = vmatprep.subr.bf16.mxu0 %v2217
    %2754 = vmatpush1.bf16.msra.mxu0 %v2216
    %2755 = vmatprep.subr.bf16.mxu0 %v2213
    %2756 = vmatpush1.bf16.msra.mxu0 %v2212
    %2757 = vmatprep.subr.bf16.mxu0 %v2209
    %2758 = vmatpush1.bf16.msra.mxu0 %v2208
    %2759 = vmatprep.subr.bf16.mxu0 %v2205
    %2760 = vmatpush1.bf16.msra.mxu0 %v2204
    %2761 = vmatprep.subr.bf16.mxu0 %v2201
    %2762 = vmatpush1.bf16.msra.mxu0 %v2200
    %2763 = vmatprep.subr.bf16.mxu0 0
    %2764 = vmatpush2.bf16.msra.mxu0 0
    %2765 = vmatprep.subr.bf16.mxu0 0
    %2766 = vmatpush2.bf16.msra.mxu0 0
    %2767 = vmatprep.subr.bf16.mxu0 0
    %2768 = vmatpush2.bf16.msra.mxu0 0
    %2769 = vmatprep.subr.bf16.mxu0 0
    %2770 = vmatpush2.bf16.msra.mxu0 0
    %2771 = vmatprep.subr.bf16.mxu0 0
    %2772 = vmatpush2.bf16.msra.mxu0 0
    %2773 = vmatprep.subr.bf16.mxu0 0
    %2774 = vmatpush2.bf16.msra.mxu0 0
    %2775 = vmatprep.subr.bf16.mxu0 0
    %2776 = vmatpush2.bf16.msra.mxu0 0
    %2777 = vmatprep.subr.bf16.mxu0 0
    %2778 = vmatpush2.bf16.msra.mxu0 0
    %2779 = vmatprep.mubr.bf16.mxu0 0
    %2780 = vmatmul.mubr.bf16.gmra.mxu0 %v2705
    %v2781 = vpop.f32.mrf.mxu0
    %v2782 = vadd.f32 0.0, %v2781
    %v2783 = vpop.f32.mrf.mxu0
    %v2784 = vadd.f32 0.0, %v2783
    %v2785 = vpop.f32.mrf.mxu0
    %v2786 = vpop.f32.mrf.mxu0
    %2787 = vdwg.mxu0
    %v2788 = vadd.f32 %v2011, %v2741
    %v2789 = vadd.f32 %v2013, %v2743
    %v2790 = vadd.f32 %v2084, %v2782
    %v2791 = vadd.f32 %v2086, %v2784
    %v2792 = vxor.u32 %v2788, 2147483648
    %v2793 = vmul.f32 %v2792, 1.442695
    %v2794 = vpow.pop %v2793
    %v2795 = vadd.f32 %v2794, 1.0
    %v2796 = vrcp.pop %v2795
    %v2797 = vmul.f32 1.0, %v2796
    %v2798 = vxor.u32 %v2789, 2147483648
    %v2799 = vmul.f32 %v2798, 1.442695
    %v2800 = vpow.pop %v2799
    %v2801 = vadd.f32 %v2800, 1.0
    %v2802 = vrcp.pop %v2801
    %v2803 = vmul.f32 1.0, %v2802
    %v2804 = vtanh.pop %v2790
    %v2805 = vxor.u32 %v2791, 2147483648
    %v2806 = vmul.f32 %v2805, 1.442695
    %v2807 = vpow.pop %v2806
    %v2808 = vadd.f32 %v2807, 1.0
    %v2809 = vrcp.pop %v2808
    %v2810 = vmul.f32 1.0, %v2809
    %v2811 = vmul.f32 %v2803, %v2702
    %v2812 = vmul.f32 %v2797, %v2804
    %v2813 = vadd.f32 %v2811, %v2812
    %v2814 = vtanh.pop %v2813
    %v2815 = vmul.f32 %v2810, %v2814
    %v2816 = vpack.c.bf16 %v2815, %v2815
    %2817 = vmatprep.subr.bf16.mxu0 %v2227
    %2818 = vmatpush1.bf16.msra.mxu0 %v2226
    %2819 = vmatprep.subr.bf16.mxu0 %v2223
    %2820 = vmatpush1.bf16.msra.mxu0 %v2222
    %2821 = vmatprep.subr.bf16.mxu0 %v2219
    %2822 = vmatpush1.bf16.msra.mxu0 %v2218
    %2823 = vmatprep.subr.bf16.mxu0 %v2215
    %2824 = vmatpush1.bf16.msra.mxu0 %v2214
    %2825 = vmatprep.subr.bf16.mxu0 %v2211
    %2826 = vmatpush1.bf16.msra.mxu0 %v2210
    %2827 = vmatprep.subr.bf16.mxu0 %v2207
    %2828 = vmatpush1.bf16.msra.mxu0 %v2206
    %2829 = vmatprep.subr.bf16.mxu0 %v2203
    %2830 = vmatpush1.bf16.msra.mxu0 %v2202
    %2831 = vmatprep.subr.bf16.mxu0 %v2199
    %2832 = vmatpush1.bf16.msra.mxu0 %v2198
    %2833 = vmatprep.subr.bf16.mxu0 0
    %2834 = vmatpush2.bf16.msra.mxu0 0
    %2835 = vmatprep.subr.bf16.mxu0 0
    %2836 = vmatpush2.bf16.msra.mxu0 0
    %2837 = vmatprep.subr.bf16.mxu0 0
    %2838 = vmatpush2.bf16.msra.mxu0 0
    %2839 = vmatprep.subr.bf16.mxu0 0
    %2840 = vmatpush2.bf16.msra.mxu0 0
    %2841 = vmatprep.subr.bf16.mxu0 0
    %2842 = vmatpush2.bf16.msra.mxu0 0
    %2843 = vmatprep.subr.bf16.mxu0 0
    %2844 = vmatpush2.bf16.msra.mxu0 0
    %2845 = vmatprep.subr.bf16.mxu0 0
    %2846 = vmatpush2.bf16.msra.mxu0 0
    %2847 = vmatprep.subr.bf16.mxu0 0
    %2848 = vmatpush2.bf16.msra.mxu0 0
    %2849 = vmatprep.mubr.bf16.mxu0 0
    %2850 = vmatmul.mubr.bf16.gmra.mxu0 %v2816
    %v2851 = vpop.f32.mrf.mxu0
    %v2852 = vadd.f32 0.0, %v2851
    %v2853 = vpop.f32.mrf.mxu0
    %v2854 = vadd.f32 0.0, %v2853
    %v2855 = vpop.f32.mrf.mxu0
    %v2856 = vpop.f32.mrf.mxu0
    %2857 = vdwg.mxu0
    %2858 = vmatprep.subr.bf16.mxu0 %v2229
    %2859 = vmatpush1.bf16.msra.mxu0 %v2228
    %2860 = vmatprep.subr.bf16.mxu0 %v2225
    %2861 = vmatpush1.bf16.msra.mxu0 %v2224
    %2862 = vmatprep.subr.bf16.mxu0 %v2221
    %2863 = vmatpush1.bf16.msra.mxu0 %v2220
    %2864 = vmatprep.subr.bf16.mxu0 %v2217
    %2865 = vmatpush1.bf16.msra.mxu0 %v2216
    %2866 = vmatprep.subr.bf16.mxu0 %v2213
    %2867 = vmatpush1.bf16.msra.mxu0 %v2212
    %2868 = vmatprep.subr.bf16.mxu0 %v2209
    %2869 = vmatpush1.bf16.msra.mxu0 %v2208
    %2870 = vmatprep.subr.bf16.mxu0 %v2205
    %2871 = vmatpush1.bf16.msra.mxu0 %v2204
    %2872 = vmatprep.subr.bf16.mxu0 %v2201
    %2873 = vmatpush1.bf16.msra.mxu0 %v2200
    %2874 = vmatprep.subr.bf16.mxu0 0
    %2875 = vmatpush2.bf16.msra.mxu0 0
    %2876 = vmatprep.subr.bf16.mxu0 0
    %2877 = vmatpush2.bf16.msra.mxu0 0
    %2878 = vmatprep.subr.bf16.mxu0 0
    %2879 = vmatpush2.bf16.msra.mxu0 0
    %2880 = vmatprep.subr.bf16.mxu0 0
    %2881 = vmatpush2.bf16.msra.mxu0 0
    %2882 = vmatprep.subr.bf16.mxu0 0
    %2883 = vmatpush2.bf16.msra.mxu0 0
    %2884 = vmatprep.subr.bf16.mxu0 0
    %2885 = vmatpush2.bf16.msra.mxu0 0
    %2886 = vmatprep.subr.bf16.mxu0 0
    %2887 = vmatpush2.bf16.msra.mxu0 0
    %2888 = vmatprep.subr.bf16.mxu0 0
    %2889 = vmatpush2.bf16.msra.mxu0 0
    %2890 = vmatprep.mubr.bf16.mxu0 0
    %2891 = vmatmul.mubr.bf16.gmra.mxu0 %v2816
    %v2892 = vpop.f32.mrf.mxu0
    %v2893 = vadd.f32 0.0, %v2892
    %v2894 = vpop.f32.mrf.mxu0
    %v2895 = vadd.f32 0.0, %v2894
    %v2896 = vpop.f32.mrf.mxu0
    %v2897 = vpop.f32.mrf.mxu0
    %2898 = vdwg.mxu0
    %v2899 = vadd.f32 %v2015, %v2852
    %v2900 = vadd.f32 %v2017, %v2854
    %v2901 = vadd.f32 %v2088, %v2893
    %v2902 = vadd.f32 %v2090, %v2895
    %v2903 = vxor.u32 %v2899, 2147483648
    %v2904 = vmul.f32 %v2903, 1.442695
    %v2905 = vpow.pop %v2904
    %v2906 = vadd.f32 %v2905, 1.0
    %v2907 = vrcp.pop %v2906
    %v2908 = vmul.f32 1.0, %v2907
    %v2909 = vxor.u32 %v2900, 2147483648
    %v2910 = vmul.f32 %v2909, 1.442695
    %v2911 = vpow.pop %v2910
    %v2912 = vadd.f32 %v2911, 1.0
    %v2913 = vrcp.pop %v2912
    %v2914 = vmul.f32 1.0, %v2913
    %v2915 = vtanh.pop %v2901
    %v2916 = vxor.u32 %v2902, 2147483648
    %v2917 = vmul.f32 %v2916, 1.442695
    %v2918 = vpow.pop %v2917
    %v2919 = vadd.f32 %v2918, 1.0
    %v2920 = vrcp.pop %v2919
    %v2921 = vmul.f32 1.0, %v2920
    %v2922 = vmul.f32 %v2914, %v2813
    %v2923 = vmul.f32 %v2908, %v2915
    %v2924 = vadd.f32 %v2922, %v2923
    %v2925 = vtanh.pop %v2924
    %v2926 = vmul.f32 %v2921, %v2925
    %v2927 = vpack.c.bf16 %v2926, %v2926
    %2928 = vmatprep.subr.bf16.mxu0 %v2227
    %2929 = vmatpush1.bf16.msra.mxu0 %v2226
    %2930 = vmatprep.subr.bf16.mxu0 %v2223
    %2931 = vmatpush1.bf16.msra.mxu0 %v2222
    %2932 = vmatprep.subr.bf16.mxu0 %v2219
    %2933 = vmatpush1.bf16.msra.mxu0 %v2218
    %2934 = vmatprep.subr.bf16.mxu0 %v2215
    %2935 = vmatpush1.bf16.msra.mxu0 %v2214
    %2936 = vmatprep.subr.bf16.mxu0 %v2211
    %2937 = vmatpush1.bf16.msra.mxu0 %v2210
    %2938 = vmatprep.subr.bf16.mxu0 %v2207
    %2939 = vmatpush1.bf16.msra.mxu0 %v2206
    %2940 = vmatprep.subr.bf16.mxu0 %v2203
    %2941 = vmatpush1.bf16.msra.mxu0 %v2202
    %2942 = vmatprep.subr.bf16.mxu0 %v2199
    %2943 = vmatpush1.bf16.msra.mxu0 %v2198
    %2944 = vmatprep.subr.bf16.mxu0 0
    %2945 = vmatpush2.bf16.msra.mxu0 0
    %2946 = vmatprep.subr.bf16.mxu0 0
    %2947 = vmatpush2.bf16.msra.mxu0 0
    %2948 = vmatprep.subr.bf16.mxu0 0
    %2949 = vmatpush2.bf16.msra.mxu0 0
    %2950 = vmatprep.subr.bf16.mxu0 0
    %2951 = vmatpush2.bf16.msra.mxu0 0
    %2952 = vmatprep.subr.bf16.mxu0 0
    %2953 = vmatpush2.bf16.msra.mxu0 0
    %2954 = vmatprep.subr.bf16.mxu0 0
    %2955 = vmatpush2.bf16.msra.mxu0 0
    %2956 = vmatprep.subr.bf16.mxu0 0
    %2957 = vmatpush2.bf16.msra.mxu0 0
    %2958 = vmatprep.subr.bf16.mxu0 0
    %2959 = vmatpush2.bf16.msra.mxu0 0
    %2960 = vmatprep.mubr.bf16.mxu0 0
    %2961 = vmatmul.mubr.bf16.gmra.mxu0 %v2927
    %v2962 = vpop.f32.mrf.mxu0
    %v2963 = vadd.f32 0.0, %v2962
    %v2964 = vpop.f32.mrf.mxu0
    %v2965 = vadd.f32 0.0, %v2964
    %v2966 = vpop.f32.mrf.mxu0
    %v2967 = vpop.f32.mrf.mxu0
    %2968 = vdwg.mxu0
    %2969 = vmatprep.subr.bf16.mxu0 %v2229
    %2970 = vmatpush1.bf16.msra.mxu0 %v2228
    %2971 = vmatprep.subr.bf16.mxu0 %v2225
    %2972 = vmatpush1.bf16.msra.mxu0 %v2224
    %2973 = vmatprep.subr.bf16.mxu0 %v2221
    %2974 = vmatpush1.bf16.msra.mxu0 %v2220
    %2975 = vmatprep.subr.bf16.mxu0 %v2217
    %2976 = vmatpush1.bf16.msra.mxu0 %v2216
    %2977 = vmatprep.subr.bf16.mxu0 %v2213
    %2978 = vmatpush1.bf16.msra.mxu0 %v2212
    %2979 = vmatprep.subr.bf16.mxu0 %v2209
    %2980 = vmatpush1.bf16.msra.mxu0 %v2208
    %2981 = vmatprep.subr.bf16.mxu0 %v2205
    %2982 = vmatpush1.bf16.msra.mxu0 %v2204
    %2983 = vmatprep.subr.bf16.mxu0 %v2201
    %2984 = vmatpush1.bf16.msra.mxu0 %v2200
    %2985 = vmatprep.subr.bf16.mxu0 0
    %2986 = vmatpush2.bf16.msra.mxu0 0
    %2987 = vmatprep.subr.bf16.mxu0 0
    %2988 = vmatpush2.bf16.msra.mxu0 0
    %2989 = vmatprep.subr.bf16.mxu0 0
    %2990 = vmatpush2.bf16.msra.mxu0 0
    %2991 = vmatprep.subr.bf16.mxu0 0
    %2992 = vmatpush2.bf16.msra.mxu0 0
    %2993 = vmatprep.subr.bf16.mxu0 0
    %2994 = vmatpush2.bf16.msra.mxu0 0
    %2995 = vmatprep.subr.bf16.mxu0 0
    %2996 = vmatpush2.bf16.msra.mxu0 0
    %2997 = vmatprep.subr.bf16.mxu0 0
    %2998 = vmatpush2.bf16.msra.mxu0 0
    %2999 = vmatprep.subr.bf16.mxu0 0
    %3000 = vmatpush2.bf16.msra.mxu0 0
    %3001 = vmatprep.mubr.bf16.mxu0 0
    %3002 = vmatmul.mubr.bf16.gmra.mxu0 %v2927
    %v3003 = vpop.f32.mrf.mxu0
    %v3004 = vadd.f32 0.0, %v3003
    %v3005 = vpop.f32.mrf.mxu0
    %v3006 = vadd.f32 0.0, %v3005
    %v3007 = vpop.f32.mrf.mxu0
    %v3008 = vpop.f32.mrf.mxu0
    %3009 = vdwg.mxu0
    %v3010 = vadd.f32 %v2021, %v2963
    %v3011 = vadd.f32 %v2023, %v2965
    %v3012 = vadd.f32 %v2094, %v3004
    %v3013 = vadd.f32 %v2096, %v3006
    %v3014 = vxor.u32 %v3010, 2147483648
    %v3015 = vmul.f32 %v3014, 1.442695
    %v3016 = vpow.pop %v3015
    %v3017 = vadd.f32 %v3016, 1.0
    %v3018 = vrcp.pop %v3017
    %v3019 = vmul.f32 1.0, %v3018
    %v3020 = vxor.u32 %v3011, 2147483648
    %v3021 = vmul.f32 %v3020, 1.442695
    %v3022 = vpow.pop %v3021
    %v3023 = vadd.f32 %v3022, 1.0
    %v3024 = vrcp.pop %v3023
    %v3025 = vmul.f32 1.0, %v3024
    %v3026 = vtanh.pop %v3012
    %v3027 = vxor.u32 %v3013, 2147483648
    %v3028 = vmul.f32 %v3027, 1.442695
    %v3029 = vpow.pop %v3028
    %v3030 = vadd.f32 %v3029, 1.0
    %v3031 = vrcp.pop %v3030
    %v3032 = vmul.f32 1.0, %v3031
    %v3033 = vmul.f32 %v3025, %v2924
    %v3034 = vmul.f32 %v3019, %v3026
    %v3035 = vadd.f32 %v3033, %v3034
    %v3036 = vtanh.pop %v3035
    %v3037 = vmul.f32 %v3032, %v3036
    %v3038 = vpack.c.bf16 %v3037, %v3037
    %3039 = vmatprep.subr.bf16.mxu0 %v2227
    %3040 = vmatpush1.bf16.msra.mxu0 %v2226
    %3041 = vmatprep.subr.bf16.mxu0 %v2223
    %3042 = vmatpush1.bf16.msra.mxu0 %v2222
    %3043 = vmatprep.subr.bf16.mxu0 %v2219
    %3044 = vmatpush1.bf16.msra.mxu0 %v2218
    %3045 = vmatprep.subr.bf16.mxu0 %v2215
    %3046 = vmatpush1.bf16.msra.mxu0 %v2214
    %3047 = vmatprep.subr.bf16.mxu0 %v2211
    %3048 = vmatpush1.bf16.msra.mxu0 %v2210
    %3049 = vmatprep.subr.bf16.mxu0 %v2207
    %3050 = vmatpush1.bf16.msra.mxu0 %v2206
    %3051 = vmatprep.subr.bf16.mxu0 %v2203
    %3052 = vmatpush1.bf16.msra.mxu0 %v2202
    %3053 = vmatprep.subr.bf16.mxu0 %v2199
    %3054 = vmatpush1.bf16.msra.mxu0 %v2198
    %3055 = vmatprep.subr.bf16.mxu0 0
    %3056 = vmatpush2.bf16.msra.mxu0 0
    %3057 = vmatprep.subr.bf16.mxu0 0
    %3058 = vmatpush2.bf16.msra.mxu0 0
    %3059 = vmatprep.subr.bf16.mxu0 0
    %3060 = vmatpush2.bf16.msra.mxu0 0
    %3061 = vmatprep.subr.bf16.mxu0 0
    %3062 = vmatpush2.bf16.msra.mxu0 0
    %3063 = vmatprep.subr.bf16.mxu0 0
    %3064 = vmatpush2.bf16.msra.mxu0 0
    %3065 = vmatprep.subr.bf16.mxu0 0
    %3066 = vmatpush2.bf16.msra.mxu0 0
    %3067 = vmatprep.subr.bf16.mxu0 0
    %3068 = vmatpush2.bf16.msra.mxu0 0
    %3069 = vmatprep.subr.bf16.mxu0 0
    %3070 = vmatpush2.bf16.msra.mxu0 0
    %3071 = vmatprep.mubr.bf16.mxu0 0
    %3072 = vmatmul.mubr.bf16.gmra.mxu0 %v3038
    %v3073 = vpop.f32.mrf.mxu0
    %v3074 = vadd.f32 0.0, %v3073
    %v3075 = vpop.f32.mrf.mxu0
    %v3076 = vadd.f32 0.0, %v3075
    %v3077 = vpop.f32.mrf.mxu0
    %v3078 = vpop.f32.mrf.mxu0
    %3079 = vdwg.mxu0
    %3080 = vmatprep.subr.bf16.mxu0 %v2229
    %3081 = vmatpush1.bf16.msra.mxu0 %v2228
    %3082 = vmatprep.subr.bf16.mxu0 %v2225
    %3083 = vmatpush1.bf16.msra.mxu0 %v2224
    %3084 = vmatprep.subr.bf16.mxu0 %v2221
    %3085 = vmatpush1.bf16.msra.mxu0 %v2220
    %3086 = vmatprep.subr.bf16.mxu0 %v2217
    %3087 = vmatpush1.bf16.msra.mxu0 %v2216
    %3088 = vmatprep.subr.bf16.mxu0 %v2213
    %3089 = vmatpush1.bf16.msra.mxu0 %v2212
    %3090 = vmatprep.subr.bf16.mxu0 %v2209
    %3091 = vmatpush1.bf16.msra.mxu0 %v2208
    %3092 = vmatprep.subr.bf16.mxu0 %v2205
    %3093 = vmatpush1.bf16.msra.mxu0 %v2204
    %3094 = vmatprep.subr.bf16.mxu0 %v2201
    %3095 = vmatpush1.bf16.msra.mxu0 %v2200
    %3096 = vmatprep.subr.bf16.mxu0 0
    %3097 = vmatpush2.bf16.msra.mxu0 0
    %3098 = vmatprep.subr.bf16.mxu0 0
    %3099 = vmatpush2.bf16.msra.mxu0 0
    %3100 = vmatprep.subr.bf16.mxu0 0
    %3101 = vmatpush2.bf16.msra.mxu0 0
    %3102 = vmatprep.subr.bf16.mxu0 0
    %3103 = vmatpush2.bf16.msra.mxu0 0
    %3104 = vmatprep.subr.bf16.mxu0 0
    %3105 = vmatpush2.bf16.msra.mxu0 0
    %3106 = vmatprep.subr.bf16.mxu0 0
    %3107 = vmatpush2.bf16.msra.mxu0 0
    %3108 = vmatprep.subr.bf16.mxu0 0
    %3109 = vmatpush2.bf16.msra.mxu0 0
    %3110 = vmatprep.subr.bf16.mxu0 0
    %3111 = vmatpush2.bf16.msra.mxu0 0
    %3112 = vmatprep.mubr.bf16.mxu0 0
    %3113 = vmatmul.mubr.bf16.gmra.mxu0 %v3038
    %v3114 = vpop.f32.mrf.mxu0
    %v3115 = vadd.f32 0.0, %v3114
    %v3116 = vpop.f32.mrf.mxu0
    %v3117 = vadd.f32 0.0, %v3116
    %v3118 = vpop.f32.mrf.mxu0
    %v3119 = vpop.f32.mrf.mxu0
    %3120 = vdwg.mxu0
    %v3121 = vadd.f32 %v2025, %v3074
    %v3122 = vadd.f32 %v2027, %v3076
    %v3123 = vadd.f32 %v2098, %v3115
    %v3124 = vadd.f32 %v2100, %v3117
    %v3125 = vxor.u32 %v3121, 2147483648
    %v3126 = vmul.f32 %v3125, 1.442695
    %v3127 = vpow.pop %v3126
    %v3128 = vadd.f32 %v3127, 1.0
    %v3129 = vrcp.pop %v3128
    %v3130 = vmul.f32 1.0, %v3129
    %v3131 = vxor.u32 %v3122, 2147483648
    %v3132 = vmul.f32 %v3131, 1.442695
    %v3133 = vpow.pop %v3132
    %v3134 = vadd.f32 %v3133, 1.0
    %v3135 = vrcp.pop %v3134
    %v3136 = vmul.f32 1.0, %v3135
    %v3137 = vtanh.pop %v3123
    %v3138 = vxor.u32 %v3124, 2147483648
    %v3139 = vmul.f32 %v3138, 1.442695
    %v3140 = vpow.pop %v3139
    %v3141 = vadd.f32 %v3140, 1.0
    %v3142 = vrcp.pop %v3141
    %v3143 = vmul.f32 1.0, %v3142
    %v3144 = vmul.f32 %v3136, %v3035
    %v3145 = vmul.f32 %v3130, %v3137
    %v3146 = vadd.f32 %v3144, %v3145
    %v3147 = vtanh.pop %v3146
    %v3148 = vmul.f32 %v3143, %v3147
    %v3149 = vpack.c.bf16 %v3148, %v3148
    %v3150 = vld [vmem:[%s8] sm:$0xf]
    %v3151 = vld [vmem:[%s8 + $0x4] sm:$0xf]
    %v3152 = vld [vmem:[%s8 + $0x8] sm:$0xf]
    %v3153 = vld [vmem:[%s8 + $0xc] sm:$0xf]
    %v3154 = vld [vmem:[%s8 + $0x10] sm:$0xf]
    %v3155 = vld [vmem:[%s8 + $0x14] sm:$0xf]
    %v3156 = vld [vmem:[%s8 + $0x18] sm:$0xf]
    %v3157 = vld [vmem:[%s8 + $0x1c] sm:$0xf]
    %v3158 = vld [vmem:[%s8 + $0x20] sm:$0xf]
    %v3159 = vld [vmem:[%s8 + $0x24] sm:$0xf]
    %v3160 = vld [vmem:[%s8 + $0x28] sm:$0xf]
    %v3161 = vld [vmem:[%s8 + $0x2c] sm:$0xf]
    %v3162 = vld [vmem:[%s8 + $0x30] sm:$0xf]
    %v3163 = vld [vmem:[%s8 + $0x34] sm:$0xf]
    %v3164 = vld [vmem:[%s8 + $0x38] sm:$0xf]
    %v3165 = vld [vmem:[%s8 + $0x3c] sm:$0xf]
    %v3166 = vld [vmem:[%s9] sm:$0x1]
    %v3168 = vlaneseq
    %v3169 = vshrl.u32 %v3168, 7
    %v3170 = vsub.s32 0, %v3169
    %v3171 = vrot.slane %v3166, %v3170
    %v3189 = vunpack.c.l.b16 %v3150
    %v3190 = vunpack.c.l.b16 %v3151
    %v3191 = vunpack.c.l.b16 %v3152
    %v3192 = vunpack.c.l.b16 %v3153
    %v3193 = vunpack.c.l.b16 %v3154
    %v3194 = vunpack.c.l.b16 %v3155
    %v3195 = vunpack.c.l.b16 %v3156
    %v3196 = vunpack.c.l.b16 %v3157
    %v3197 = vunpack.c.l.b16 %v3158
    %v3198 = vunpack.c.l.b16 %v3159
    %v3199 = vunpack.c.l.b16 %v3160
    %v3200 = vunpack.c.l.b16 %v3161
    %v3201 = vunpack.c.l.b16 %v3162
    %v3202 = vunpack.c.l.b16 %v3163
    %v3203 = vunpack.c.l.b16 %v3164
    %v3204 = vunpack.c.l.b16 %v3165
    %v3205 = vpack.c.b16 %v3190, %v3189
    %v3206 = vpack.c.b16 %v3192, %v3191
    %v3207 = vpack.c.b16 %v3194, %v3193
    %v3208 = vpack.c.b16 %v3196, %v3195
    %v3209 = vpack.c.b16 %v3198, %v3197
    %v3210 = vpack.c.b16 %v3200, %v3199
    %v3211 = vpack.c.b16 %v3202, %v3201
    %v3212 = vpack.c.b16 %v3204, %v3203
    %3221 = vmatprep.subr.bf16.mxu0 0
    %3222 = vmatpush1.bf16.msra.mxu0 %v3212
    %3223 = vmatprep.subr.bf16.mxu0 0
    %3224 = vmatpush1.bf16.msra.mxu0 %v3211
    %3225 = vmatprep.subr.bf16.mxu0 0
    %3226 = vmatpush1.bf16.msra.mxu0 %v3210
    %3227 = vmatprep.subr.bf16.mxu0 0
    %3228 = vmatpush1.bf16.msra.mxu0 %v3209
    %3229 = vmatprep.subr.bf16.mxu0 0
    %3230 = vmatpush1.bf16.msra.mxu0 %v3208
    %3231 = vmatprep.subr.bf16.mxu0 0
    %3232 = vmatpush1.bf16.msra.mxu0 %v3207
    %3233 = vmatprep.subr.bf16.mxu0 0
    %3234 = vmatpush1.bf16.msra.mxu0 %v3206
    %3235 = vmatprep.subr.bf16.mxu0 0
    %3236 = vmatpush1.bf16.msra.mxu0 %v3205
    %3237 = vmatprep.subr.bf16.mxu0 0
    %3238 = vmatpush2.bf16.msra.mxu0 0
    %3239 = vmatprep.subr.bf16.mxu0 0
    %3240 = vmatpush2.bf16.msra.mxu0 0
    %3241 = vmatprep.subr.bf16.mxu0 0
    %3242 = vmatpush2.bf16.msra.mxu0 0
    %3243 = vmatprep.subr.bf16.mxu0 0
    %3244 = vmatpush2.bf16.msra.mxu0 0
    %3245 = vmatprep.subr.bf16.mxu0 0
    %3246 = vmatpush2.bf16.msra.mxu0 0
    %3247 = vmatprep.subr.bf16.mxu0 0
    %3248 = vmatpush2.bf16.msra.mxu0 0
    %3249 = vmatprep.subr.bf16.mxu0 0
    %3250 = vmatpush2.bf16.msra.mxu0 0
    %3251 = vmatprep.subr.bf16.mxu0 0
    %3252 = vmatpush2.bf16.msra.mxu0 0
    %3253 = vmatprep.mubr.bf16.mxu0 0
    %3254 = vmatmul.mubr.bf16.gmra.mxu0 %v3149
    %v3255 = vpop.f32.mrf.mxu0
    %v3256 = vadd.f32 %v3171, %v3255
    %v3257 = vpop.f32.mrf.mxu0
    %v3258 = vpop.f32.mrf.mxu0
    %v3259 = vpop.f32.mrf.mxu0
    %3260 = vdwg.mxu0
    %3261 = vst [vmem:[%s10] sm:$0xff] %v3256
    // Predicated region
    $region58: #{movie_review_forward.1} parent=1 // pred_check
      _
    $region59: #{movie_review_forward.1} parent=1 // pred_check_branch
      %3263 = sbr.rel (0) target = $region61
    $region60: #{movie_review_forward.1} parent=1 // pred_region
      _
    $region61: #{movie_review_forward.1} parent=1 // pred_fallthru
      _
    // Predicated region
    $region62: #{movie_review_forward.1} parent=1 // pred_check
      _
    $region63: #{movie_review_forward.1} parent=1 // pred_check_branch
      %3265 = sbr.rel (0) target = $region65
    $region64: #{movie_review_forward.1} parent=1 // pred_region
      _
    $region65: #{movie_review_forward.1} parent=1 // pred_fallthru
      _
    %3266 = vsyncpa [#allocation3], 1
    %3267 = vsyncpa [#allocation5], 1
    %3268 = vsyncpa [#allocation8], 1

</llo_original>
